<compile_context>
chip_gen: v7x
topology: tpu7x:2x2x1
jax: 0.10.0
libtpu: 0.0.40
codegen_flags: <defaults>
</compile_context>

<pallas_src>
import functools
import math

import jax
import jax.numpy as jnp
from jax import lax
from jax.experimental import pallas as pl
from jax.experimental.pallas import tpu as pltpu


_VMEM_LIMIT_BYTES = 32 * 1024 * 1024  # safe on v5e/v6e (128 MiB) and v7x (64 MiB)
_HIGHEST = jax.lax.Precision.HIGHEST


def _layer_norm(y, gamma, beta, eps=1e-5):
    """LayerNorm over the last axis (biased variance, eps inside rsqrt)."""
    mean = jnp.mean(y, axis=-1, keepdims=True)
    yc = y - mean
    var = jnp.mean(yc * yc, axis=-1, keepdims=True)
    return yc * lax.rsqrt(var + eps) * gamma + beta


# ---------------------------------------------------------------------------
# Fused attention sub-layer kernel:
#   [optional x += pos_emb] -> QKV proj -> masked MHA -> out proj -> residual -> LN
# One grid step = one batch element; all operands are full-array blocks.
# ---------------------------------------------------------------------------
def _attn_block_kernel(*refs, n_head, fuse_pos):
    if fuse_pos:
        xq_ref, pos_ref, xkv_ref, mask_ref, w_ref, b_ref, ln_ref, o_ref = refs
    else:
        xq_ref, xkv_ref, mask_ref, w_ref, b_ref, ln_ref, o_ref = refs
        pos_ref = None

    x = xq_ref[0].astype(jnp.float32)              # (S, D)
    if fuse_pos:
        # Fused positional-embedding add (saves a standalone HBM round trip).
        x = x + pos_ref[0].astype(jnp.float32)
    kv = xkv_ref[0].astype(jnp.float32)            # (Skv, D)

    S, D = x.shape
    d_head = D // n_head
    scale = 1.0 / math.sqrt(d_head)

    q = jnp.dot(x, w_ref[0], preferred_element_type=jnp.float32) + b_ref[0]
    k = jnp.dot(kv, w_ref[1], preferred_element_type=jnp.float32) + b_ref[1]
    v = jnp.dot(kv, w_ref[2], preferred_element_type=jnp.float32) + b_ref[2]

    head_outs = []
    for h in range(n_head):                        # static unroll over heads
        lo, hi = h * d_head, (h + 1) * d_head
        qh, kh, vh = q[:, lo:hi], k[:, lo:hi], v[:, lo:hi]
        # scores = qh @ kh^T without an explicit transpose.
        s = lax.dot_general(qh, kh, (((1,), (1,)), ((), ())),
                            preferred_element_type=jnp.float32) * scale
        s = s + mask_ref[h]                        # additive mask bias (-1e9 where masked)
        m = jnp.max(s, axis=-1, keepdims=True)
        p = jnp.exp(s - m)
        p = p / jnp.sum(p, axis=-1, keepdims=True)
        head_outs.append(jnp.dot(p, vh, preferred_element_type=jnp.float32))
    attn = jnp.concatenate(head_outs, axis=-1)     # (S, D)
    attn = jnp.dot(attn, w_ref[3], preferred_element_type=jnp.float32) + b_ref[3]

    # Residual (eval-mode dropout = identity) + LayerNorm, stored lane-dense.
    y = _layer_norm(x + attn, ln_ref[0], ln_ref[1])
    o_ref[0] = y.astype(o_ref.dtype)


def attention_block(xq, xkv, mask_bias, w, b, ln, *, n_head, pos=None):
    """xq: (B,S,D), xkv: (B,Skv,D), mask_bias: (n_head,S,Skv) additive bias."""
    B, S, D = xq.shape
    Skv = xkv.shape[1]
    assert D % n_head == 0
    assert w.shape == (4, D, D) and b.shape == (4, 1, D) and ln.shape == (2, 1, D)
    assert mask_bias.shape == (n_head, S, Skv)
    fuse_pos = pos is not None
    if fuse_pos:
        assert pos.shape == (1, S, D)

    # Blocks equal the full array in their last two dims, so the (8,128)
    # BlockSpec constraint is satisfied for any S/D; D is a multiple of 128 in
    # the demo so output stores are unmasked (lane-dense) vst.
    itemsize = jnp.dtype(xq.dtype).itemsize
    per_step = (2 * S * D + Skv * D + (S * D if fuse_pos else 0)) * itemsize
    per_step += (mask_bias.size + w.size + b.size + ln.size) * 4
    assert 2 * per_step < _VMEM_LIMIT_BYTES, "block too large for VMEM budget"

    kernel = functools.partial(_attn_block_kernel, n_head=n_head, fuse_pos=fuse_pos)

    in_specs = [pl.BlockSpec((1, S, D), lambda i: (i, 0, 0))]
    operands = [xq]
    if fuse_pos:
        in_specs.append(pl.BlockSpec((1, S, D), lambda i: (0, 0, 0)))
        operands.append(pos)
    in_specs += [
        pl.BlockSpec((1, Skv, D), lambda i: (i, 0, 0)),
        pl.BlockSpec((n_head, S, Skv), lambda i: (0, 0, 0)),
        pl.BlockSpec((4, D, D), lambda i: (0, 0, 0)),
        pl.BlockSpec((4, 1, D), lambda i: (0, 0, 0)),
        pl.BlockSpec((2, 1, D), lambda i: (0, 0, 0)),
    ]
    operands += [xkv, mask_bias, w, b, ln]

    return pl.pallas_call(
        kernel,
        out_shape=jax.ShapeDtypeStruct((B, S, D), xq.dtype),
        grid_spec=pltpu.PrefetchScalarGridSpec(
            num_scalar_prefetch=0,
            grid=(B,),
            in_specs=in_specs,
            out_specs=pl.BlockSpec((1, S, D), lambda i: (i, 0, 0)),
        ),
        compiler_params=pltpu.CompilerParams(
            dimension_semantics=("parallel",),      # shards over 2 TCs on v7x
            vmem_limit_bytes=_VMEM_LIMIT_BYTES,
        ),
    )(*operands)


# ---------------------------------------------------------------------------
# Fused feed-forward sub-layer kernel: Linear -> ReLU -> Linear -> residual -> LN
# ---------------------------------------------------------------------------
def _ffn_block_kernel(x_ref, w1_ref, b1_ref, w2_ref, b2_ref, ln_ref, o_ref):
    x = x_ref[0].astype(jnp.float32)                               # (S, D)
    h = jnp.dot(x, w1_ref[...], preferred_element_type=jnp.float32) + b1_ref[...]
    h = jnp.maximum(h, 0.0)                                        # ReLU
    y = jnp.dot(h, w2_ref[...], preferred_element_type=jnp.float32) + b2_ref[...]
    y = _layer_norm(x + y, ln_ref[0], ln_ref[1])                   # eval dropout = identity
    o_ref[0] = y.astype(o_ref.dtype)


def ffn_block(x, w1, b1, w2, b2, ln):
    B, S, D = x.shape
    d_ff = w1.shape[1]
    assert w1.shape == (D, d_ff) and w2.shape == (d_ff, D)
    assert b1.shape == (1, d_ff) and b2.shape == (1, D) and ln.shape == (2, 1, D)

    itemsize = jnp.dtype(x.dtype).itemsize
    per_step = (2 * S * D + S * d_ff) * itemsize
    per_step += (w1.size + w2.size + b1.size + b2.size + ln.size) * 4
    assert 2 * per_step < _VMEM_LIMIT_BYTES, "block too large for VMEM budget"

    return pl.pallas_call(
        _ffn_block_kernel,
        out_shape=jax.ShapeDtypeStruct((B, S, D), x.dtype),
        grid_spec=pltpu.PrefetchScalarGridSpec(
            num_scalar_prefetch=0,
            grid=(B,),
            in_specs=[
                pl.BlockSpec((1, S, D), lambda i: (i, 0, 0)),
                pl.BlockSpec((D, d_ff), lambda i: (0, 0)),
                pl.BlockSpec((1, d_ff), lambda i: (0, 0)),
                pl.BlockSpec((d_ff, D), lambda i: (0, 0)),
                pl.BlockSpec((1, D), lambda i: (0, 0)),
                pl.BlockSpec((2, 1, D), lambda i: (0, 0, 0)),
            ],
            out_specs=pl.BlockSpec((1, S, D), lambda i: (i, 0, 0)),
        ),
        compiler_params=pltpu.CompilerParams(
            dimension_semantics=("parallel",),
            vmem_limit_bytes=_VMEM_LIMIT_BYTES,
        ),
    )(x, w1, b1, w2, b2, ln)


# ---------------------------------------------------------------------------
# Full decoder forward (eval mode).
# ---------------------------------------------------------------------------
def transformer_decoder_forward(x, z, params, self_mask_bias, cross_mask_bias,
                                pos_emb, *, n_head):
    """x: (B,H,W,D) query input, z: (B,_H,_W,D) encoder output."""
    B, H, W, D = x.shape
    _, zH, zW, _ = z.shape
    S, Sz = H * W, zH * zW
    xf = x.reshape(B, S, D)
    zf = z.reshape(B, Sz, D)
    for li, lp in enumerate(params["layers"]):
        # Positional-embedding add is fused into the first self-attention kernel.
        pos = pos_emb if (li == 0 and pos_emb is not None) else None
        xf = attention_block(xf, xf, self_mask_bias, lp["sa_w"], lp["sa_b"],
                             lp["sa_ln"], n_head=n_head, pos=pos)
        xf = attention_block(xf, zf, cross_mask_bias, lp["ca_w"], lp["ca_b"],
                             lp["ca_ln"], n_head=n_head)
        xf = ffn_block(xf, lp["ff_w1"], lp["ff_b1"], lp["ff_w2"], lp["ff_b2"],
                       lp["ff_ln"])
    return xf.reshape(B, H, W, D)


# ---------------------------------------------------------------------------
# Pure-JAX reference (same math, HIGHEST matmul precision).
# ---------------------------------------------------------------------------
def _ref_attention_block(xq, xkv, mask_bias, w, b, ln, n_head, pos=None):
    if pos is not None:
        xq = xq + pos
    B, S, D = xq.shape
    Skv = xkv.shape[1]
    dh = D // n_head
    q = jnp.einsum("bsd,de->bse", xq, w[0], precision=_HIGHEST) + b[0]
    k = jnp.einsum("bsd,de->bse", xkv, w[1], precision=_HIGHEST) + b[1]
    v = jnp.einsum("bsd,de->bse", xkv, w[2], precision=_HIGHEST) + b[2]
    q = q.reshape(B, S, n_head, dh)
    k = k.reshape(B, Skv, n_head, dh)
    v = v.reshape(B, Skv, n_head, dh)
    s = jnp.einsum("bqhd,bkhd->bhqk", q, k, precision=_HIGHEST) / math.sqrt(dh)
    s = s + mask_bias[None]
    p = jax.nn.softmax(s, axis=-1)
    o = jnp.einsum("bhqk,bkhd->bqhd", p, v, precision=_HIGHEST).reshape(B, S, D)
    o = jnp.einsum("bsd,de->bse", o, w[3], precision=_HIGHEST) + b[3]
    return _layer_norm(xq + o, ln[0], ln[1])


def _ref_ffn_block(x, w1, b1, w2, b2, ln):
    h = jnp.maximum(jnp.einsum("bsd,df->bsf", x, w1, precision=_HIGHEST) + b1, 0.0)
    y = jnp.einsum("bsf,fd->bsd", h, w2, precision=_HIGHEST) + b2
    return _layer_norm(x + y, ln[0], ln[1])


def reference_forward(x, z, params, self_bias, cross_bias, pos_emb, n_head):
    B, H, W, D = x.shape
    _, zH, zW, _ = z.shape
    xf = x.reshape(B, H * W, D)
    zf = z.reshape(B, zH * zW, D)
    for li, lp in enumerate(params["layers"]):
        pos = pos_emb if li == 0 else None
        xf = _ref_attention_block(xf, xf, self_bias, lp["sa_w"], lp["sa_b"],
                                  lp["sa_ln"], n_head, pos=pos)
        xf = _ref_attention_block(xf, zf, cross_bias, lp["ca_w"], lp["ca_b"],
                                  lp["ca_ln"], n_head)
        xf = _ref_ffn_block(xf, lp["ff_w1"], lp["ff_b1"], lp["ff_w2"],
                            lp["ff_b2"], lp["ff_ln"])
    return xf.reshape(B, H, W, D)


# ---------------------------------------------------------------------------
# Deterministic parameter init.
# ---------------------------------------------------------------------------
def init_params(key, n_layer, d_embed, d_ff, dtype=jnp.float32):
    def dense(k, shape, scale):
        return (jax.random.normal(k, shape, dtype) * scale).astype(dtype)

    def ln_init(kg, kb):
        g = 1.0 + 0.05 * jax.random.normal(kg, (1, d_embed), dtype)
        b = 0.05 * jax.random.normal(kb, (1, d_embed), dtype)
        return jnp.stack([g, b])  # (2, 1, d_embed): [gamma; beta]

    w_scale = 1.0 / math.sqrt(d_embed)
    layers = []
    for _ in range(n_layer):
        key, k1, k2, k3, k4, k5, k6, k7, k8, k9 = jax.random.split(key, 10)
        kg1, kb1, kg2, kb2, kg3, kb3 = jax.random.split(k9, 6)
        layers.append(dict(
            sa_w=dense(k1, (4, d_embed, d_embed), w_scale),
            sa_b=dense(k2, (4, 1, d_embed), 0.02),
            sa_ln=ln_init(kg1, kb1),
            ca_w=dense(k3, (4, d_embed, d_embed), w_scale),
            ca_b=dense(k4, (4, 1, d_embed), 0.02),
            ca_ln=ln_init(kg2, kb2),
            ff_w1=dense(k5, (d_embed, d_ff), w_scale),
            ff_b1=dense(k6, (1, d_ff), 0.02),
            ff_w2=dense(k7, (d_ff, d_embed), 1.0 / math.sqrt(d_ff)),
            ff_b2=dense(k8, (1, d_embed), 0.02),
            ff_ln=ln_init(kg3, kb3),
        ))
    return {"layers": layers}


if __name__ == "__main__":
    # Small shapes: batch=2, H=2, W=4 (seq=8), d_embed=128 (lane-dense), 4 heads,
    # d_ff=256, 2 decoder layers. Encoder output has the same spatial extent.
    B, H, W, D = 2, 2, 4, 128
    zH, zW = 2, 4
    n_head, d_ff, n_layer = 4, 256, 2
    S, Sz = H * W, zH * zW

    key = jax.random.PRNGKey(0)
    kx, kz, kp, kparams = jax.random.split(key, 4)

    x = jax.random.normal(kx, (B, H, W, D), dtype=jnp.float32)
    z = jax.random.normal(kz, (B, zH, zW, D), dtype=jnp.float32)
    # Learned absolute positional embedding, trunc_normal_(std=0.02)-style init.
    pos_emb = (jax.random.truncated_normal(kp, -2.0, 2.0, (1, S, D), jnp.float32)
               * 0.02)

    params = init_params(kparams, n_layer, D, d_ff)

    # Mask buffers (True = masked), analogous to the module's registered
    # self_mask / cross_mask; converted once to additive -1e9 biases.
    qi = jnp.arange(S)
    ki = jnp.arange(Sz)
    self_mask = jnp.broadcast_to(qi[None, :] > qi[:, None], (n_head, S, S))
    cross_mask = jnp.broadcast_to(jnp.abs(qi[:, None] - ki[None, :]) > 3,
                                  (n_head, S, Sz))
    self_bias = jnp.where(self_mask, -1e9, 0.0).astype(jnp.float32)
    cross_bias = jnp.where(cross_mask, -1e9, 0.0).astype(jnp.float32)

    fwd = jax.jit(functools.partial(transformer_decoder_forward, n_head=n_head))
    out = fwd(x, z, params, self_bias, cross_bias, pos_emb)
    out = jax.block_until_ready(out)

    ref = reference_forward(x, z, params, self_bias, cross_bias, pos_emb, n_head)
    ref = jax.block_until_ready(ref)

    assert out.shape == (B, H, W, D)
    max_err = float(jnp.max(jnp.abs(out - ref)))
    assert jnp.allclose(out, ref, atol=3e-2, rtol=3e-2), f"mismatch vs reference (max_err={max_err})"

    print("KERNEL_OK")
</pallas_src>

<mosaic_0001>
module attributes {stable_mosaic.version = 11 : i64} {
  func.func @_ffn_block_kernel(%arg0: i32, %arg1: memref<1x8x128xf32, #tpu.memory_space<vmem>>, %arg2: memref<128x256xf32, #tpu.memory_space<vmem>>, %arg3: memref<1x256xf32, #tpu.memory_space<vmem>>, %arg4: memref<256x128xf32, #tpu.memory_space<vmem>>, %arg5: memref<1x128xf32, #tpu.memory_space<vmem>>, %arg6: memref<2x1x128xf32, #tpu.memory_space<vmem>>, %arg7: memref<1x8x128xf32, #tpu.memory_space<vmem>>) attributes {dimension_semantics = [#tpu.dimension_semantics<parallel>], iteration_bounds = array<i64: 2>, scalar_prefetch = 0 : i64, scratch_operands = 0 : i64, tpu.core_type = #tpu.core_type<tc>, window_params = [{transform_indices = @transform_0, window_bounds = array<i64: 1, 8, 128>}, {pipeline_mode = #tpu.pipeline_mode<synchronous>, transform_indices = @transform_1, window_bounds = array<i64: 128, 256>}, {pipeline_mode = #tpu.pipeline_mode<synchronous>, transform_indices = @transform_2, window_bounds = array<i64: 1, 256>}, {pipeline_mode = #tpu.pipeline_mode<synchronous>, transform_indices = @transform_3, window_bounds = array<i64: 256, 128>}, {pipeline_mode = #tpu.pipeline_mode<synchronous>, transform_indices = @transform_4, window_bounds = array<i64: 1, 128>}, {pipeline_mode = #tpu.pipeline_mode<synchronous>, transform_indices = @transform_5, window_bounds = array<i64: 2, 1, 128>}, {transform_indices = @transform_6, window_bounds = array<i64: 1, 8, 128>}]} {
    %c0 = arith.constant 0 : index
    %c0_0 = arith.constant 0 : index
    %c0_1 = arith.constant 0 : index
    %0 = vector.load %arg1[%c0, %c0_0, %c0_1] : memref<1x8x128xf32, #tpu.memory_space<vmem>>, vector<1x8x128xf32>
    %1 = vector.shape_cast %0 : vector<1x8x128xf32> to vector<8x128xf32>
    %c0_2 = arith.constant 0 : index
    %c0_3 = arith.constant 0 : index
    %2 = vector.load %arg2[%c0_2, %c0_3] : memref<128x256xf32, #tpu.memory_space<vmem>>, vector<128x256xf32>
    %cst = arith.constant dense<0.000000e+00> : vector<8x256xf32>
    %3 = tpu.matmul %1, %2, %cst {dimension_numbers = #tpu.dot_dimension_numbers<[1], [0], [0], [1], [0, 0, 1, 1], [], []>} : vector<8x128xf32>, vector<128x256xf32>, vector<8x256xf32> -> vector<8x256xf32>
    %c0_4 = arith.constant 0 : index
    %c0_5 = arith.constant 0 : index
    %4 = vector.load %arg3[%c0_4, %c0_5] : memref<1x256xf32, #tpu.memory_space<vmem>>, vector<1x256xf32>
    %5 = vector.broadcast %4 : vector<1x256xf32> to vector<8x256xf32>
    %6 = arith.addf %3, %5 : vector<8x256xf32>
    %cst_6 = arith.constant 0.000000e+00 : f32
    %7 = vector.broadcast %cst_6 : f32 to vector<8x256xf32>
    %8 = arith.maximumf %6, %7 : vector<8x256xf32>
    %c0_7 = arith.constant 0 : index
    %c0_8 = arith.constant 0 : index
    %9 = vector.load %arg4[%c0_7, %c0_8] : memref<256x128xf32, #tpu.memory_space<vmem>>, vector<256x128xf32>
    %cst_9 = arith.constant dense<0.000000e+00> : vector<8x128xf32>
    %10 = tpu.matmul %8, %9, %cst_9 {dimension_numbers = #tpu.dot_dimension_numbers<[1], [0], [0], [1], [0, 0, 1, 1], [], []>} : vector<8x256xf32>, vector<256x128xf32>, vector<8x128xf32> -> vector<8x128xf32>
    %c0_10 = arith.constant 0 : index
    %c0_11 = arith.constant 0 : index
    %11 = vector.load %arg5[%c0_10, %c0_11] : memref<1x128xf32, #tpu.memory_space<vmem>>, vector<1x128xf32>
    %12 = vector.broadcast %11 : vector<1x128xf32> to vector<8x128xf32>
    %13 = arith.addf %10, %12 : vector<8x128xf32>
    %14 = arith.addf %1, %13 : vector<8x128xf32>
    %c0_12 = arith.constant 0 : index
    %c0_13 = arith.constant 0 : index
    %c0_14 = arith.constant 0 : index
    %15 = vector.load %arg6[%c0_12, %c0_13, %c0_14] : memref<2x1x128xf32, #tpu.memory_space<vmem>>, vector<1x1x128xf32>
    %16 = vector.shape_cast %15 : vector<1x1x128xf32> to vector<1x128xf32>
    %c1 = arith.constant 1 : index
    %c0_15 = arith.constant 0 : index
    %c0_16 = arith.constant 0 : index
    %17 = vector.load %arg6[%c1, %c0_15, %c0_16] : memref<2x1x128xf32, #tpu.memory_space<vmem>>, vector<1x1x128xf32>
    %18 = vector.shape_cast %17 : vector<1x1x128xf32> to vector<1x128xf32>
    %cst_17 = arith.constant dense<0.000000e+00> : vector<8xf32>
    %19 = vector.multi_reduction <add>, %14, %cst_17 [1] : vector<8x128xf32> to vector<8xf32>
    %20 = vector.shape_cast %19 : vector<8xf32> to vector<8x1xf32>
    %cst_18 = arith.constant 1.280000e+02 : f32
    %21 = vector.broadcast %cst_18 : f32 to vector<8x1xf32>
    %22 = arith.divf %20, %21 : vector<8x1xf32>
    %23 = vector.broadcast %22 : vector<8x1xf32> to vector<8x128xf32>
    %24 = arith.subf %14, %23 : vector<8x128xf32>
    %25 = arith.mulf %24, %24 : vector<8x128xf32>
    %cst_19 = arith.constant dense<0.000000e+00> : vector<8xf32>
    %26 = vector.multi_reduction <add>, %25, %cst_19 [1] : vector<8x128xf32> to vector<8xf32>
    %27 = vector.shape_cast %26 : vector<8xf32> to vector<8x1xf32>
    %cst_20 = arith.constant 1.280000e+02 : f32
    %28 = vector.broadcast %cst_20 : f32 to vector<8x1xf32>
    %29 = arith.divf %27, %28 : vector<8x1xf32>
    %cst_21 = arith.constant 9.99999974E-6 : f32
    %30 = vector.broadcast %cst_21 : f32 to vector<8x1xf32>
    %31 = arith.addf %29, %30 : vector<8x1xf32>
    %32 = math.rsqrt %31 : vector<8x1xf32>
    %33 = vector.broadcast %32 : vector<8x1xf32> to vector<8x128xf32>
    %34 = arith.mulf %24, %33 : vector<8x128xf32>
    %35 = vector.broadcast %16 : vector<1x128xf32> to vector<8x128xf32>
    %36 = arith.mulf %34, %35 : vector<8x128xf32>
    %37 = vector.broadcast %18 : vector<1x128xf32> to vector<8x128xf32>
    %38 = arith.addf %36, %37 : vector<8x128xf32>
    %c0_22 = arith.constant 0 : index
    %c0_23 = arith.constant 0 : index
    %c0_24 = arith.constant 0 : index
    %39 = vector.load %arg7[%c0_22, %c0_23, %c0_24] : memref<1x8x128xf32, #tpu.memory_space<vmem>>, vector<1x8x128xf32>
    %40 = vector.shape_cast %39 : vector<1x8x128xf32> to vector<8x128xf32>
    %41 = vector.shape_cast %38 : vector<8x128xf32> to vector<1x8x128xf32>
    tpu.vector_store %arg7[%c0_22, %c0_23, %c0_24], %41 {strides = array<i32>} : memref<1x8x128xf32, #tpu.memory_space<vmem>>, vector<1x8x128xf32>,
    return
  }
  func.func @transform_0(%arg0: i32) -> (i32, i32, i32) {
    %c0_i32 = arith.constant 0 : i32
    %c0_i32_0 = arith.constant 0 : i32
    %c0_i32_1 = arith.constant 0 : i32
    return %arg0, %c0_i32, %c0_i32_0 : i32, i32, i32
  }
  func.func @transform_1(%arg0: i32) -> (i32, i32) {
    %c0_i32 = arith.constant 0 : i32
    %c0_i32_0 = arith.constant 0 : i32
    %c0_i32_1 = arith.constant 0 : i32
    return %c0_i32, %c0_i32_0 : i32, i32
  }
  func.func @transform_2(%arg0: i32) -> (i32, i32) {
    %c0_i32 = arith.constant 0 : i32
    %c0_i32_0 = arith.constant 0 : i32
    %c0_i32_1 = arith.constant 0 : i32
    return %c0_i32, %c0_i32_0 : i32, i32
  }
  func.func @transform_3(%arg0: i32) -> (i32, i32) {
    %c0_i32 = arith.constant 0 : i32
    %c0_i32_0 = arith.constant 0 : i32
    %c0_i32_1 = arith.constant 0 : i32
    return %c0_i32, %c0_i32_0 : i32, i32
  }
  func.func @transform_4(%arg0: i32) -> (i32, i32) {
    %c0_i32 = arith.constant 0 : i32
    %c0_i32_0 = arith.constant 0 : i32
    %c0_i32_1 = arith.constant 0 : i32
    return %c0_i32, %c0_i32_0 : i32, i32
  }
  func.func @transform_5(%arg0: i32) -> (i32, i32, i32) {
    %c0_i32 = arith.constant 0 : i32
    %c0_i32_0 = arith.constant 0 : i32
    %c0_i32_1 = arith.constant 0 : i32
    %c0_i32_2 = arith.constant 0 : i32
    return %c0_i32, %c0_i32_0, %c0_i32_1 : i32, i32, i32
  }
  func.func @transform_6(%arg0: i32) -> (i32, i32, i32) {
    %c0_i32 = arith.constant 0 : i32
    %c0_i32_0 = arith.constant 0 : i32
    %c0_i32_1 = arith.constant 0 : i32
    return %arg0, %c0_i32, %c0_i32_0 : i32, i32, i32
  }
}

module attributes {stable_mosaic.version = 11 : i64} {
  func.func @_attn_block_kernel(%arg0: i32, %arg1: memref<1x8x128xf32, #tpu.memory_space<vmem>>, %arg2: memref<1x8x128xf32, #tpu.memory_space<vmem>>, %arg3: memref<4x8x8xf32, #tpu.memory_space<vmem>>, %arg4: memref<4x128x128xf32, #tpu.memory_space<vmem>>, %arg5: memref<4x1x128xf32, #tpu.memory_space<vmem>>, %arg6: memref<2x1x128xf32, #tpu.memory_space<vmem>>, %arg7: memref<1x8x128xf32, #tpu.memory_space<vmem>>) attributes {dimension_semantics = [#tpu.dimension_semantics<parallel>], iteration_bounds = array<i64: 2>, scalar_prefetch = 0 : i64, scratch_operands = 0 : i64, tpu.core_type = #tpu.core_type<tc>, window_params = [{transform_indices = @transform_0, window_bounds = array<i64: 1, 8, 128>}, {transform_indices = @transform_1, window_bounds = array<i64: 1, 8, 128>}, {pipeline_mode = #tpu.pipeline_mode<synchronous>, transform_indices = @transform_2, window_bounds = array<i64: 4, 8, 8>}, {pipeline_mode = #tpu.pipeline_mode<synchronous>, transform_indices = @transform_3, window_bounds = array<i64: 4, 128, 128>}, {pipeline_mode = #tpu.pipeline_mode<synchronous>, transform_indices = @transform_4, window_bounds = array<i64: 4, 1, 128>}, {pipeline_mode = #tpu.pipeline_mode<synchronous>, transform_indices = @transform_5, window_bounds = array<i64: 2, 1, 128>}, {transform_indices = @transform_6, window_bounds = array<i64: 1, 8, 128>}]} {
    %c0 = arith.constant 0 : index
    %c0_0 = arith.constant 0 : index
    %c0_1 = arith.constant 0 : index
    %0 = vector.load %arg1[%c0, %c0_0, %c0_1] : memref<1x8x128xf32, #tpu.memory_space<vmem>>, vector<1x8x128xf32>
    %1 = vector.shape_cast %0 : vector<1x8x128xf32> to vector<8x128xf32>
    %c0_2 = arith.constant 0 : index
    %c0_3 = arith.constant 0 : index
    %c0_4 = arith.constant 0 : index
    %2 = vector.load %arg2[%c0_2, %c0_3, %c0_4] : memref<1x8x128xf32, #tpu.memory_space<vmem>>, vector<1x8x128xf32>
    %3 = vector.shape_cast %2 : vector<1x8x128xf32> to vector<8x128xf32>
    %c0_5 = arith.constant 0 : index
    %c0_6 = arith.constant 0 : index
    %c0_7 = arith.constant 0 : index
    %4 = vector.load %arg4[%c0_5, %c0_6, %c0_7] : memref<4x128x128xf32, #tpu.memory_space<vmem>>, vector<1x128x128xf32>
    %5 = vector.shape_cast %4 : vector<1x128x128xf32> to vector<128x128xf32>
    %cst = arith.constant dense<0.000000e+00> : vector<8x128xf32>
    %6 = tpu.matmul %1, %5, %cst {dimension_numbers = #tpu.dot_dimension_numbers<[1], [0], [0], [1], [0, 0, 1, 1], [], []>} : vector<8x128xf32>, vector<128x128xf32>, vector<8x128xf32> -> vector<8x128xf32>
    %c0_8 = arith.constant 0 : index
    %c0_9 = arith.constant 0 : index
    %c0_10 = arith.constant 0 : index
    %7 = vector.load %arg5[%c0_8, %c0_9, %c0_10] : memref<4x1x128xf32, #tpu.memory_space<vmem>>, vector<1x1x128xf32>
    %8 = vector.shape_cast %7 : vector<1x1x128xf32> to vector<1x128xf32>
    %9 = vector.broadcast %8 : vector<1x128xf32> to vector<8x128xf32>
    %10 = arith.addf %6, %9 : vector<8x128xf32>
    %c1 = arith.constant 1 : index
    %c0_11 = arith.constant 0 : index
    %c0_12 = arith.constant 0 : index
    %11 = vector.load %arg4[%c1, %c0_11, %c0_12] : memref<4x128x128xf32, #tpu.memory_space<vmem>>, vector<1x128x128xf32>
    %12 = vector.shape_cast %11 : vector<1x128x128xf32> to vector<128x128xf32>
    %cst_13 = arith.constant dense<0.000000e+00> : vector<8x128xf32>
    %13 = tpu.matmul %3, %12, %cst_13 {dimension_numbers = #tpu.dot_dimension_numbers<[1], [0], [0], [1], [0, 0, 1, 1], [], []>} : vector<8x128xf32>, vector<128x128xf32>, vector<8x128xf32> -> vector<8x128xf32>
    %c1_14 = arith.constant 1 : index
    %c0_15 = arith.constant 0 : index
    %c0_16 = arith.constant 0 : index
    %14 = vector.load %arg5[%c1_14, %c0_15, %c0_16] : memref<4x1x128xf32, #tpu.memory_space<vmem>>, vector<1x1x128xf32>
    %15 = vector.shape_cast %14 : vector<1x1x128xf32> to vector<1x128xf32>
    %16 = vector.broadcast %15 : vector<1x128xf32> to vector<8x128xf32>
    %17 = arith.addf %13, %16 : vector<8x128xf32>
    %c2 = arith.constant 2 : index
    %c0_17 = arith.constant 0 : index
    %c0_18 = arith.constant 0 : index
    %18 = vector.load %arg4[%c2, %c0_17, %c0_18] : memref<4x128x128xf32, #tpu.memory_space<vmem>>, vector<1x128x128xf32>
    %19 = vector.shape_cast %18 : vector<1x128x128xf32> to vector<128x128xf32>
    %cst_19 = arith.constant dense<0.000000e+00> : vector<8x128xf32>
    %20 = tpu.matmul %3, %19, %cst_19 {dimension_numbers = #tpu.dot_dimension_numbers<[1], [0], [0], [1], [0, 0, 1, 1], [], []>} : vector<8x128xf32>, vector<128x128xf32>, vector<8x128xf32> -> vector<8x128xf32>
    %c2_20 = arith.constant 2 : index
    %c0_21 = arith.constant 0 : index
    %c0_22 = arith.constant 0 : index
    %21 = vector.load %arg5[%c2_20, %c0_21, %c0_22] : memref<4x1x128xf32, #tpu.memory_space<vmem>>, vector<1x1x128xf32>
    %22 = vector.shape_cast %21 : vector<1x1x128xf32> to vector<1x128xf32>
    %23 = vector.broadcast %22 : vector<1x128xf32> to vector<8x128xf32>
    %24 = arith.addf %20, %23 : vector<8x128xf32>
    %25 = vector.extract_strided_slice %10 {offsets = [0, 0], sizes = [8, 32], strides = [1, 1]} : vector<8x128xf32> to vector<8x32xf32>
    %26 = vector.extract_strided_slice %17 {offsets = [0, 0], sizes = [8, 32], strides = [1, 1]} : vector<8x128xf32> to vector<8x32xf32>
    %27 = vector.extract_strided_slice %24 {offsets = [0, 0], sizes = [8, 32], strides = [1, 1]} : vector<8x128xf32> to vector<8x32xf32>
    %cst_23 = arith.constant dense<0.000000e+00> : vector<8x8xf32>
    %28 = tpu.matmul %25, %26, %cst_23 {dimension_numbers = #tpu.dot_dimension_numbers<[1], [1], [0], [0], [0, 0, 1, 0], [], []>} : vector<8x32xf32>, vector<8x32xf32>, vector<8x8xf32> -> vector<8x8xf32>
    %cst_24 = arith.constant 0.176776692 : f32
    %29 = vector.broadcast %cst_24 : f32 to vector<8x8xf32>
    %30 = arith.mulf %28, %29 : vector<8x8xf32>
    %c0_25 = arith.constant 0 : index
    %c0_26 = arith.constant 0 : index
    %c0_27 = arith.constant 0 : index
    %31 = vector.load %arg3[%c0_25, %c0_26, %c0_27] : memref<4x8x8xf32, #tpu.memory_space<vmem>>, vector<1x8x8xf32>
    %32 = vector.shape_cast %31 : vector<1x8x8xf32> to vector<8x8xf32>
    %33 = arith.addf %30, %32 : vector<8x8xf32>
    %cst_28 = arith.constant dense<0xFF800000> : vector<8xf32>
    %34 = vector.multi_reduction <maximumf>, %33, %cst_28 [1] : vector<8x8xf32> to vector<8xf32>
    %35 = vector.shape_cast %34 : vector<8xf32> to vector<8x1xf32>
    %36 = vector.broadcast %35 : vector<8x1xf32> to vector<8x8xf32>
    %37 = arith.subf %33, %36 : vector<8x8xf32>
    %38 = math.exp %37 : vector<8x8xf32>
    %cst_29 = arith.constant dense<0.000000e+00> : vector<8xf32>
    %39 = vector.multi_reduction <add>, %38, %cst_29 [1] : vector<8x8xf32> to vector<8xf32>
    %40 = vector.shape_cast %39 : vector<8xf32> to vector<8x1xf32>
    %41 = vector.broadcast %40 : vector<8x1xf32> to vector<8x8xf32>
    %42 = arith.divf %38, %41 : vector<8x8xf32>
    %cst_30 = arith.constant dense<0.000000e+00> : vector<8x32xf32>
    %43 = tpu.matmul %42, %27, %cst_30 {dimension_numbers = #tpu.dot_dimension_numbers<[1], [0], [0], [1], [0, 0, 1, 1], [], []>} : vector<8x8xf32>, vector<8x32xf32>, vector<8x32xf32> -> vector<8x32xf32>
    %44 = vector.extract_strided_slice %10 {offsets = [0, 32], sizes = [8, 32], strides = [1, 1]} : vector<8x128xf32> to vector<8x32xf32>
    %45 = vector.extract_strided_slice %17 {offsets = [0, 32], sizes = [8, 32], strides = [1, 1]} : vector<8x128xf32> to vector<8x32xf32>
    %46 = vector.extract_strided_slice %24 {offsets = [0, 32], sizes = [8, 32], strides = [1, 1]} : vector<8x128xf32> to vector<8x32xf32>
    %cst_31 = arith.constant dense<0.000000e+00> : vector<8x8xf32>
    %47 = tpu.matmul %44, %45, %cst_31 {dimension_numbers = #tpu.dot_dimension_numbers<[1], [1], [0], [0], [0, 0, 1, 0], [], []>} : vector<8x32xf32>, vector<8x32xf32>, vector<8x8xf32> -> vector<8x8xf32>
    %cst_32 = arith.constant 0.176776692 : f32
    %48 = vector.broadcast %cst_32 : f32 to vector<8x8xf32>
    %49 = arith.mulf %47, %48 : vector<8x8xf32>
    %c1_33 = arith.constant 1 : index
    %c0_34 = arith.constant 0 : index
    %c0_35 = arith.constant 0 : index
    %50 = vector.load %arg3[%c1_33, %c0_34, %c0_35] : memref<4x8x8xf32, #tpu.memory_space<vmem>>, vector<1x8x8xf32>
    %51 = vector.shape_cast %50 : vector<1x8x8xf32> to vector<8x8xf32>
    %52 = arith.addf %49, %51 : vector<8x8xf32>
    %cst_36 = arith.constant dense<0xFF800000> : vector<8xf32>
    %53 = vector.multi_reduction <maximumf>, %52, %cst_36 [1] : vector<8x8xf32> to vector<8xf32>
    %54 = vector.shape_cast %53 : vector<8xf32> to vector<8x1xf32>
    %55 = vector.broadcast %54 : vector<8x1xf32> to vector<8x8xf32>
    %56 = arith.subf %52, %55 : vector<8x8xf32>
    %57 = math.exp %56 : vector<8x8xf32>
    %cst_37 = arith.constant dense<0.000000e+00> : vector<8xf32>
    %58 = vector.multi_reduction <add>, %57, %cst_37 [1] : vector<8x8xf32> to vector<8xf32>
    %59 = vector.shape_cast %58 : vector<8xf32> to vector<8x1xf32>
    %60 = vector.broadcast %59 : vector<8x1xf32> to vector<8x8xf32>
    %61 = arith.divf %57, %60 : vector<8x8xf32>
    %cst_38 = arith.constant dense<0.000000e+00> : vector<8x32xf32>
    %62 = tpu.matmul %61, %46, %cst_38 {dimension_numbers = #tpu.dot_dimension_numbers<[1], [0], [0], [1], [0, 0, 1, 1], [], []>} : vector<8x8xf32>, vector<8x32xf32>, vector<8x32xf32> -> vector<8x32xf32>
    %63 = vector.extract_strided_slice %10 {offsets = [0, 64], sizes = [8, 32], strides = [1, 1]} : vector<8x128xf32> to vector<8x32xf32>
    %64 = vector.extract_strided_slice %17 {offsets = [0, 64], sizes = [8, 32], strides = [1, 1]} : vector<8x128xf32> to vector<8x32xf32>
    %65 = vector.extract_strided_slice %24 {offsets = [0, 64], sizes = [8, 32], strides = [1, 1]} : vector<8x128xf32> to vector<8x32xf32>
    %cst_39 = arith.constant dense<0.000000e+00> : vector<8x8xf32>
    %66 = tpu.matmul %63, %64, %cst_39 {dimension_numbers = #tpu.dot_dimension_numbers<[1], [1], [0], [0], [0, 0, 1, 0], [], []>} : vector<8x32xf32>, vector<8x32xf32>, vector<8x8xf32> -> vector<8x8xf32>
    %cst_40 = arith.constant 0.176776692 : f32
    %67 = vector.broadcast %cst_40 : f32 to vector<8x8xf32>
    %68 = arith.mulf %66, %67 : vector<8x8xf32>
    %c2_41 = arith.constant 2 : index
    %c0_42 = arith.constant 0 : index
    %c0_43 = arith.constant 0 : index
    %69 = vector.load %arg3[%c2_41, %c0_42, %c0_43] : memref<4x8x8xf32, #tpu.memory_space<vmem>>, vector<1x8x8xf32>
    %70 = vector.shape_cast %69 : vector<1x8x8xf32> to vector<8x8xf32>
    %71 = arith.addf %68, %70 : vector<8x8xf32>
    %cst_44 = arith.constant dense<0xFF800000> : vector<8xf32>
    %72 = vector.multi_reduction <maximumf>, %71, %cst_44 [1] : vector<8x8xf32> to vector<8xf32>
    %73 = vector.shape_cast %72 : vector<8xf32> to vector<8x1xf32>
    %74 = vector.broadcast %73 : vector<8x1xf32> to vector<8x8xf32>
    %75 = arith.subf %71, %74 : vector<8x8xf32>
    %76 = math.exp %75 : vector<8x8xf32>
    %cst_45 = arith.constant dense<0.000000e+00> : vector<8xf32>
    %77 = vector.multi_reduction <add>, %76, %cst_45 [1] : vector<8x8xf32> to vector<8xf32>
    %78 = vector.shape_cast %77 : vector<8xf32> to vector<8x1xf32>
    %79 = vector.broadcast %78 : vector<8x1xf32> to vector<8x8xf32>
    %80 = arith.divf %76, %79 : vector<8x8xf32>
    %cst_46 = arith.constant dense<0.000000e+00> : vector<8x32xf32>
    %81 = tpu.matmul %80, %65, %cst_46 {dimension_numbers = #tpu.dot_dimension_numbers<[1], [0], [0], [1], [0, 0, 1, 1], [], []>} : vector<8x8xf32>, vector<8x32xf32>, vector<8x32xf32> -> vector<8x32xf32>
    %82 = vector.extract_strided_slice %10 {offsets = [0, 96], sizes = [8, 32], strides = [1, 1]} : vector<8x128xf32> to vector<8x32xf32>
    %83 = vector.extract_strided_slice %17 {offsets = [0, 96], sizes = [8, 32], strides = [1, 1]} : vector<8x128xf32> to vector<8x32xf32>
    %84 = vector.extract_strided_slice %24 {offsets = [0, 96], sizes = [8, 32], strides = [1, 1]} : vector<8x128xf32> to vector<8x32xf32>
    %cst_47 = arith.constant dense<0.000000e+00> : vector<8x8xf32>
    %85 = tpu.matmul %82, %83, %cst_47 {dimension_numbers = #tpu.dot_dimension_numbers<[1], [1], [0], [0], [0, 0, 1, 0], [], []>} : vector<8x32xf32>, vector<8x32xf32>, vector<8x8xf32> -> vector<8x8xf32>
    %cst_48 = arith.constant 0.176776692 : f32
    %86 = vector.broadcast %cst_48 : f32 to vector<8x8xf32>
    %87 = arith.mulf %85, %86 : vector<8x8xf32>
    %c3 = arith.constant 3 : index
    %c0_49 = arith.constant 0 : index
    %c0_50 = arith.constant 0 : index
    %88 = vector.load %arg3[%c3, %c0_49, %c0_50] : memref<4x8x8xf32, #tpu.memory_space<vmem>>, vector<1x8x8xf32>
    %89 = vector.shape_cast %88 : vector<1x8x8xf32> to vector<8x8xf32>
    %90 = arith.addf %87, %89 : vector<8x8xf32>
    %cst_51 = arith.constant dense<0xFF800000> : vector<8xf32>
    %91 = vector.multi_reduction <maximumf>, %90, %cst_51 [1] : vector<8x8xf32> to vector<8xf32>
    %92 = vector.shape_cast %91 : vector<8xf32> to vector<8x1xf32>
    %93 = vector.broadcast %92 : vector<8x1xf32> to vector<8x8xf32>
    %94 = arith.subf %90, %93 : vector<8x8xf32>
    %95 = math.exp %94 : vector<8x8xf32>
    %cst_52 = arith.constant dense<0.000000e+00> : vector<8xf32>
    %96 = vector.multi_reduction <add>, %95, %cst_52 [1] : vector<8x8xf32> to vector<8xf32>
    %97 = vector.shape_cast %96 : vector<8xf32> to vector<8x1xf32>
    %98 = vector.broadcast %97 : vector<8x1xf32> to vector<8x8xf32>
    %99 = arith.divf %95, %98 : vector<8x8xf32>
    %cst_53 = arith.constant dense<0.000000e+00> : vector<8x32xf32>
    %100 = tpu.matmul %99, %84, %cst_53 {dimension_numbers = #tpu.dot_dimension_numbers<[1], [0], [0], [1], [0, 0, 1, 1], [], []>} : vector<8x8xf32>, vector<8x32xf32>, vector<8x32xf32> -> vector<8x32xf32>
    %101 = tpu.concatenate %43, %62, %81, %100 in 1 : vector<8x32xf32>, vector<8x32xf32>, vector<8x32xf32>, vector<8x32xf32> -> vector<8x128xf32>
    %c3_54 = arith.constant 3 : index
    %c0_55 = arith.constant 0 : index
    %c0_56 = arith.constant 0 : index
    %102 = vector.load %arg4[%c3_54, %c0_55, %c0_56] : memref<4x128x128xf32, #tpu.memory_space<vmem>>, vector<1x128x128xf32>
    %103 = vector.shape_cast %102 : vector<1x128x128xf32> to vector<128x128xf32>
    %cst_57 = arith.constant dense<0.000000e+00> : vector<8x128xf32>
    %104 = tpu.matmul %101, %103, %cst_57 {dimension_numbers = #tpu.dot_dimension_numbers<[1], [0], [0], [1], [0, 0, 1, 1], [], []>} : vector<8x128xf32>, vector<128x128xf32>, vector<8x128xf32> -> vector<8x128xf32>
    %c3_58 = arith.constant 3 : index
    %c0_59 = arith.constant 0 : index
    %c0_60 = arith.constant 0 : index
    %105 = vector.load %arg5[%c3_58, %c0_59, %c0_60] : memref<4x1x128xf32, #tpu.memory_space<vmem>>, vector<1x1x128xf32>
    %106 = vector.shape_cast %105 : vector<1x1x128xf32> to vector<1x128xf32>
    %107 = vector.broadcast %106 : vector<1x128xf32> to vector<8x128xf32>
    %108 = arith.addf %104, %107 : vector<8x128xf32>
    %109 = arith.addf %1, %108 : vector<8x128xf32>
    %c0_61 = arith.constant 0 : index
    %c0_62 = arith.constant 0 : index
    %c0_63 = arith.constant 0 : index
    %110 = vector.load %arg6[%c0_61, %c0_62, %c0_63] : memref<2x1x128xf32, #tpu.memory_space<vmem>>, vector<1x1x128xf32>
    %111 = vector.shape_cast %110 : vector<1x1x128xf32> to vector<1x128xf32>
    %c1_64 = arith.constant 1 : index
    %c0_65 = arith.constant 0 : index
    %c0_66 = arith.constant 0 : index
    %112 = vector.load %arg6[%c1_64, %c0_65, %c0_66] : memref<2x1x128xf32, #tpu.memory_space<vmem>>, vector<1x1x128xf32>
    %113 = vector.shape_cast %112 : vector<1x1x128xf32> to vector<1x128xf32>
    %cst_67 = arith.constant dense<0.000000e+00> : vector<8xf32>
    %114 = vector.multi_reduction <add>, %109, %cst_67 [1] : vector<8x128xf32> to vector<8xf32>
    %115 = vector.shape_cast %114 : vector<8xf32> to vector<8x1xf32>
    %cst_68 = arith.constant 1.280000e+02 : f32
    %116 = vector.broadcast %cst_68 : f32 to vector<8x1xf32>
    %117 = arith.divf %115, %116 : vector<8x1xf32>
    %118 = vector.broadcast %117 : vector<8x1xf32> to vector<8x128xf32>
    %119 = arith.subf %109, %118 : vector<8x128xf32>
    %120 = arith.mulf %119, %119 : vector<8x128xf32>
    %cst_69 = arith.constant dense<0.000000e+00> : vector<8xf32>
    %121 = vector.multi_reduction <add>, %120, %cst_69 [1] : vector<8x128xf32> to vector<8xf32>
    %122 = vector.shape_cast %121 : vector<8xf32> to vector<8x1xf32>
    %cst_70 = arith.constant 1.280000e+02 : f32
    %123 = vector.broadcast %cst_70 : f32 to vector<8x1xf32>
    %124 = arith.divf %122, %123 : vector<8x1xf32>
    %cst_71 = arith.constant 9.99999974E-6 : f32
    %125 = vector.broadcast %cst_71 : f32 to vector<8x1xf32>
    %126 = arith.addf %124, %125 : vector<8x1xf32>
    %127 = math.rsqrt %126 : vector<8x1xf32>
    %128 = vector.broadcast %127 : vector<8x1xf32> to vector<8x128xf32>
    %129 = arith.mulf %119, %128 : vector<8x128xf32>
    %130 = vector.broadcast %111 : vector<1x128xf32> to vector<8x128xf32>
    %131 = arith.mulf %129, %130 : vector<8x128xf32>
    %132 = vector.broadcast %113 : vector<1x128xf32> to vector<8x128xf32>
    %133 = arith.addf %131, %132 : vector<8x128xf32>
    %c0_72 = arith.constant 0 : index
    %c0_73 = arith.constant 0 : index
    %c0_74 = arith.constant 0 : index
    %134 = vector.load %arg7[%c0_72, %c0_73, %c0_74] : memref<1x8x128xf32, #tpu.memory_space<vmem>>, vector<1x8x128xf32>
    %135 = vector.shape_cast %134 : vector<1x8x128xf32> to vector<8x128xf32>
    %136 = vector.shape_cast %133 : vector<8x128xf32> to vector<1x8x128xf32>
    tpu.vector_store %arg7[%c0_72, %c0_73, %c0_74], %136 {strides = array<i32>} : memref<1x8x128xf32, #tpu.memory_space<vmem>>, vector<1x8x128xf32>,
    return
  }
  func.func @transform_0(%arg0: i32) -> (i32, i32, i32) {
    %c0_i32 = arith.constant 0 : i32
    %c0_i32_0 = arith.constant 0 : i32
    %c0_i32_1 = arith.constant 0 : i32
    return %arg0, %c0_i32, %c0_i32_0 : i32, i32, i32
  }
  func.func @transform_1(%arg0: i32) -> (i32, i32, i32) {
    %c0_i32 = arith.constant 0 : i32
    %c0_i32_0 = arith.constant 0 : i32
    %c0_i32_1 = arith.constant 0 : i32
    return %arg0, %c0_i32, %c0_i32_0 : i32, i32, i32
  }
  func.func @transform_2(%arg0: i32) -> (i32, i32, i32) {
    %c0_i32 = arith.constant 0 : i32
    %c0_i32_0 = arith.constant 0 : i32
    %c0_i32_1 = arith.constant 0 : i32
    %c0_i32_2 = arith.constant 0 : i32
    return %c0_i32, %c0_i32_0, %c0_i32_1 : i32, i32, i32
  }
  func.func @transform_3(%arg0: i32) -> (i32, i32, i32) {
    %c0_i32 = arith.constant 0 : i32
    %c0_i32_0 = arith.constant 0 : i32
    %c0_i32_1 = arith.constant 0 : i32
    %c0_i32_2 = arith.constant 0 : i32
    return %c0_i32, %c0_i32_0, %c0_i32_1 : i32, i32, i32
  }
  func.func @transform_4(%arg0: i32) -> (i32, i32, i32) {
    %c0_i32 = arith.constant 0 : i32
    %c0_i32_0 = arith.constant 0 : i32
    %c0_i32_1 = arith.constant 0 : i32
    %c0_i32_2 = arith.constant 0 : i32
    return %c0_i32, %c0_i32_0, %c0_i32_1 : i32, i32, i32
  }
  func.func @transform_5(%arg0: i32) -> (i32, i32, i32) {
    %c0_i32 = arith.constant 0 : i32
    %c0_i32_0 = arith.constant 0 : i32
    %c0_i32_1 = arith.constant 0 : i32
    %c0_i32_2 = arith.constant 0 : i32
    return %c0_i32, %c0_i32_0, %c0_i32_1 : i32, i32, i32
  }
  func.func @transform_6(%arg0: i32) -> (i32, i32, i32) {
    %c0_i32 = arith.constant 0 : i32
    %c0_i32_0 = arith.constant 0 : i32
    %c0_i32_1 = arith.constant 0 : i32
    return %arg0, %c0_i32, %c0_i32_0 : i32, i32, i32
  }
}

module attributes {stable_mosaic.version = 11 : i64} {
  func.func @_attn_block_kernel(%arg0: i32, %arg1: memref<1x8x128xf32, #tpu.memory_space<vmem>>, %arg2: memref<1x8x128xf32, #tpu.memory_space<vmem>>, %arg3: memref<1x8x128xf32, #tpu.memory_space<vmem>>, %arg4: memref<4x8x8xf32, #tpu.memory_space<vmem>>, %arg5: memref<4x128x128xf32, #tpu.memory_space<vmem>>, %arg6: memref<4x1x128xf32, #tpu.memory_space<vmem>>, %arg7: memref<2x1x128xf32, #tpu.memory_space<vmem>>, %arg8: memref<1x8x128xf32, #tpu.memory_space<vmem>>) attributes {dimension_semantics = [#tpu.dimension_semantics<parallel>], iteration_bounds = array<i64: 2>, scalar_prefetch = 0 : i64, scratch_operands = 0 : i64, tpu.core_type = #tpu.core_type<tc>, window_params = [{transform_indices = @transform_0, window_bounds = array<i64: 1, 8, 128>}, {pipeline_mode = #tpu.pipeline_mode<synchronous>, transform_indices = @transform_1, window_bounds = array<i64: 1, 8, 128>}, {transform_indices = @transform_2, window_bounds = array<i64: 1, 8, 128>}, {pipeline_mode = #tpu.pipeline_mode<synchronous>, transform_indices = @transform_3, window_bounds = array<i64: 4, 8, 8>}, {pipeline_mode = #tpu.pipeline_mode<synchronous>, transform_indices = @transform_4, window_bounds = array<i64: 4, 128, 128>}, {pipeline_mode = #tpu.pipeline_mode<synchronous>, transform_indices = @transform_5, window_bounds = array<i64: 4, 1, 128>}, {pipeline_mode = #tpu.pipeline_mode<synchronous>, transform_indices = @transform_6, window_bounds = array<i64: 2, 1, 128>}, {transform_indices = @transform_7, window_bounds = array<i64: 1, 8, 128>}]} {
    %c0 = arith.constant 0 : index
    %c0_0 = arith.constant 0 : index
    %c0_1 = arith.constant 0 : index
    %0 = vector.load %arg1[%c0, %c0_0, %c0_1] : memref<1x8x128xf32, #tpu.memory_space<vmem>>, vector<1x8x128xf32>
    %1 = vector.shape_cast %0 : vector<1x8x128xf32> to vector<8x128xf32>
    %c0_2 = arith.constant 0 : index
    %c0_3 = arith.constant 0 : index
    %c0_4 = arith.constant 0 : index
    %2 = vector.load %arg2[%c0_2, %c0_3, %c0_4] : memref<1x8x128xf32, #tpu.memory_space<vmem>>, vector<1x8x128xf32>
    %3 = vector.shape_cast %2 : vector<1x8x128xf32> to vector<8x128xf32>
    %4 = arith.addf %1, %3 : vector<8x128xf32>
    %c0_5 = arith.constant 0 : index
    %c0_6 = arith.constant 0 : index
    %c0_7 = arith.constant 0 : index
    %5 = vector.load %arg3[%c0_5, %c0_6, %c0_7] : memref<1x8x128xf32, #tpu.memory_space<vmem>>, vector<1x8x128xf32>
    %6 = vector.shape_cast %5 : vector<1x8x128xf32> to vector<8x128xf32>
    %c0_8 = arith.constant 0 : index
    %c0_9 = arith.constant 0 : index
    %c0_10 = arith.constant 0 : index
    %7 = vector.load %arg5[%c0_8, %c0_9, %c0_10] : memref<4x128x128xf32, #tpu.memory_space<vmem>>, vector<1x128x128xf32>
    %8 = vector.shape_cast %7 : vector<1x128x128xf32> to vector<128x128xf32>
    %cst = arith.constant dense<0.000000e+00> : vector<8x128xf32>
    %9 = tpu.matmul %4, %8, %cst {dimension_numbers = #tpu.dot_dimension_numbers<[1], [0], [0], [1], [0, 0, 1, 1], [], []>} : vector<8x128xf32>, vector<128x128xf32>, vector<8x128xf32> -> vector<8x128xf32>
    %c0_11 = arith.constant 0 : index
    %c0_12 = arith.constant 0 : index
    %c0_13 = arith.constant 0 : index
    %10 = vector.load %arg6[%c0_11, %c0_12, %c0_13] : memref<4x1x128xf32, #tpu.memory_space<vmem>>, vector<1x1x128xf32>
    %11 = vector.shape_cast %10 : vector<1x1x128xf32> to vector<1x128xf32>
    %12 = vector.broadcast %11 : vector<1x128xf32> to vector<8x128xf32>
    %13 = arith.addf %9, %12 : vector<8x128xf32>
    %c1 = arith.constant 1 : index
    %c0_14 = arith.constant 0 : index
    %c0_15 = arith.constant 0 : index
    %14 = vector.load %arg5[%c1, %c0_14, %c0_15] : memref<4x128x128xf32, #tpu.memory_space<vmem>>, vector<1x128x128xf32>
    %15 = vector.shape_cast %14 : vector<1x128x128xf32> to vector<128x128xf32>
    %cst_16 = arith.constant dense<0.000000e+00> : vector<8x128xf32>
    %16 = tpu.matmul %6, %15, %cst_16 {dimension_numbers = #tpu.dot_dimension_numbers<[1], [0], [0], [1], [0, 0, 1, 1], [], []>} : vector<8x128xf32>, vector<128x128xf32>, vector<8x128xf32> -> vector<8x128xf32>
    %c1_17 = arith.constant 1 : index
    %c0_18 = arith.constant 0 : index
    %c0_19 = arith.constant 0 : index
    %17 = vector.load %arg6[%c1_17, %c0_18, %c0_19] : memref<4x1x128xf32, #tpu.memory_space<vmem>>, vector<1x1x128xf32>
    %18 = vector.shape_cast %17 : vector<1x1x128xf32> to vector<1x128xf32>
    %19 = vector.broadcast %18 : vector<1x128xf32> to vector<8x128xf32>
    %20 = arith.addf %16, %19 : vector<8x128xf32>
    %c2 = arith.constant 2 : index
    %c0_20 = arith.constant 0 : index
    %c0_21 = arith.constant 0 : index
    %21 = vector.load %arg5[%c2, %c0_20, %c0_21] : memref<4x128x128xf32, #tpu.memory_space<vmem>>, vector<1x128x128xf32>
    %22 = vector.shape_cast %21 : vector<1x128x128xf32> to vector<128x128xf32>
    %cst_22 = arith.constant dense<0.000000e+00> : vector<8x128xf32>
    %23 = tpu.matmul %6, %22, %cst_22 {dimension_numbers = #tpu.dot_dimension_numbers<[1], [0], [0], [1], [0, 0, 1, 1], [], []>} : vector<8x128xf32>, vector<128x128xf32>, vector<8x128xf32> -> vector<8x128xf32>
    %c2_23 = arith.constant 2 : index
    %c0_24 = arith.constant 0 : index
    %c0_25 = arith.constant 0 : index
    %24 = vector.load %arg6[%c2_23, %c0_24, %c0_25] : memref<4x1x128xf32, #tpu.memory_space<vmem>>, vector<1x1x128xf32>
    %25 = vector.shape_cast %24 : vector<1x1x128xf32> to vector<1x128xf32>
    %26 = vector.broadcast %25 : vector<1x128xf32> to vector<8x128xf32>
    %27 = arith.addf %23, %26 : vector<8x128xf32>
    %28 = vector.extract_strided_slice %13 {offsets = [0, 0], sizes = [8, 32], strides = [1, 1]} : vector<8x128xf32> to vector<8x32xf32>
    %29 = vector.extract_strided_slice %20 {offsets = [0, 0], sizes = [8, 32], strides = [1, 1]} : vector<8x128xf32> to vector<8x32xf32>
    %30 = vector.extract_strided_slice %27 {offsets = [0, 0], sizes = [8, 32], strides = [1, 1]} : vector<8x128xf32> to vector<8x32xf32>
    %cst_26 = arith.constant dense<0.000000e+00> : vector<8x8xf32>
    %31 = tpu.matmul %28, %29, %cst_26 {dimension_numbers = #tpu.dot_dimension_numbers<[1], [1], [0], [0], [0, 0, 1, 0], [], []>} : vector<8x32xf32>, vector<8x32xf32>, vector<8x8xf32> -> vector<8x8xf32>
    %cst_27 = arith.constant 0.176776692 : f32
    %32 = vector.broadcast %cst_27 : f32 to vector<8x8xf32>
    %33 = arith.mulf %31, %32 : vector<8x8xf32>
    %c0_28 = arith.constant 0 : index
    %c0_29 = arith.constant 0 : index
    %c0_30 = arith.constant 0 : index
    %34 = vector.load %arg4[%c0_28, %c0_29, %c0_30] : memref<4x8x8xf32, #tpu.memory_space<vmem>>, vector<1x8x8xf32>
    %35 = vector.shape_cast %34 : vector<1x8x8xf32> to vector<8x8xf32>
    %36 = arith.addf %33, %35 : vector<8x8xf32>
    %cst_31 = arith.constant dense<0xFF800000> : vector<8xf32>
    %37 = vector.multi_reduction <maximumf>, %36, %cst_31 [1] : vector<8x8xf32> to vector<8xf32>
    %38 = vector.shape_cast %37 : vector<8xf32> to vector<8x1xf32>
    %39 = vector.broadcast %38 : vector<8x1xf32> to vector<8x8xf32>
    %40 = arith.subf %36, %39 : vector<8x8xf32>
    %41 = math.exp %40 : vector<8x8xf32>
    %cst_32 = arith.constant dense<0.000000e+00> : vector<8xf32>
    %42 = vector.multi_reduction <add>, %41, %cst_32 [1] : vector<8x8xf32> to vector<8xf32>
    %43 = vector.shape_cast %42 : vector<8xf32> to vector<8x1xf32>
    %44 = vector.broadcast %43 : vector<8x1xf32> to vector<8x8xf32>
    %45 = arith.divf %41, %44 : vector<8x8xf32>
    %cst_33 = arith.constant dense<0.000000e+00> : vector<8x32xf32>
    %46 = tpu.matmul %45, %30, %cst_33 {dimension_numbers = #tpu.dot_dimension_numbers<[1], [0], [0], [1], [0, 0, 1, 1], [], []>} : vector<8x8xf32>, vector<8x32xf32>, vector<8x32xf32> -> vector<8x32xf32>
    %47 = vector.extract_strided_slice %13 {offsets = [0, 32], sizes = [8, 32], strides = [1, 1]} : vector<8x128xf32> to vector<8x32xf32>
    %48 = vector.extract_strided_slice %20 {offsets = [0, 32], sizes = [8, 32], strides = [1, 1]} : vector<8x128xf32> to vector<8x32xf32>
    %49 = vector.extract_strided_slice %27 {offsets = [0, 32], sizes = [8, 32], strides = [1, 1]} : vector<8x128xf32> to vector<8x32xf32>
    %cst_34 = arith.constant dense<0.000000e+00> : vector<8x8xf32>
    %50 = tpu.matmul %47, %48, %cst_34 {dimension_numbers = #tpu.dot_dimension_numbers<[1], [1], [0], [0], [0, 0, 1, 0], [], []>} : vector<8x32xf32>, vector<8x32xf32>, vector<8x8xf32> -> vector<8x8xf32>
    %cst_35 = arith.constant 0.176776692 : f32
    %51 = vector.broadcast %cst_35 : f32 to vector<8x8xf32>
    %52 = arith.mulf %50, %51 : vector<8x8xf32>
    %c1_36 = arith.constant 1 : index
    %c0_37 = arith.constant 0 : index
    %c0_38 = arith.constant 0 : index
    %53 = vector.load %arg4[%c1_36, %c0_37, %c0_38] : memref<4x8x8xf32, #tpu.memory_space<vmem>>, vector<1x8x8xf32>
    %54 = vector.shape_cast %53 : vector<1x8x8xf32> to vector<8x8xf32>
    %55 = arith.addf %52, %54 : vector<8x8xf32>
    %cst_39 = arith.constant dense<0xFF800000> : vector<8xf32>
    %56 = vector.multi_reduction <maximumf>, %55, %cst_39 [1] : vector<8x8xf32> to vector<8xf32>
    %57 = vector.shape_cast %56 : vector<8xf32> to vector<8x1xf32>
    %58 = vector.broadcast %57 : vector<8x1xf32> to vector<8x8xf32>
    %59 = arith.subf %55, %58 : vector<8x8xf32>
    %60 = math.exp %59 : vector<8x8xf32>
    %cst_40 = arith.constant dense<0.000000e+00> : vector<8xf32>
    %61 = vector.multi_reduction <add>, %60, %cst_40 [1] : vector<8x8xf32> to vector<8xf32>
    %62 = vector.shape_cast %61 : vector<8xf32> to vector<8x1xf32>
    %63 = vector.broadcast %62 : vector<8x1xf32> to vector<8x8xf32>
    %64 = arith.divf %60, %63 : vector<8x8xf32>
    %cst_41 = arith.constant dense<0.000000e+00> : vector<8x32xf32>
    %65 = tpu.matmul %64, %49, %cst_41 {dimension_numbers = #tpu.dot_dimension_numbers<[1], [0], [0], [1], [0, 0, 1, 1], [], []>} : vector<8x8xf32>, vector<8x32xf32>, vector<8x32xf32> -> vector<8x32xf32>
    %66 = vector.extract_strided_slice %13 {offsets = [0, 64], sizes = [8, 32], strides = [1, 1]} : vector<8x128xf32> to vector<8x32xf32>
    %67 = vector.extract_strided_slice %20 {offsets = [0, 64], sizes = [8, 32], strides = [1, 1]} : vector<8x128xf32> to vector<8x32xf32>
    %68 = vector.extract_strided_slice %27 {offsets = [0, 64], sizes = [8, 32], strides = [1, 1]} : vector<8x128xf32> to vector<8x32xf32>
    %cst_42 = arith.constant dense<0.000000e+00> : vector<8x8xf32>
    %69 = tpu.matmul %66, %67, %cst_42 {dimension_numbers = #tpu.dot_dimension_numbers<[1], [1], [0], [0], [0, 0, 1, 0], [], []>} : vector<8x32xf32>, vector<8x32xf32>, vector<8x8xf32> -> vector<8x8xf32>
    %cst_43 = arith.constant 0.176776692 : f32
    %70 = vector.broadcast %cst_43 : f32 to vector<8x8xf32>
    %71 = arith.mulf %69, %70 : vector<8x8xf32>
    %c2_44 = arith.constant 2 : index
    %c0_45 = arith.constant 0 : index
    %c0_46 = arith.constant 0 : index
    %72 = vector.load %arg4[%c2_44, %c0_45, %c0_46] : memref<4x8x8xf32, #tpu.memory_space<vmem>>, vector<1x8x8xf32>
    %73 = vector.shape_cast %72 : vector<1x8x8xf32> to vector<8x8xf32>
    %74 = arith.addf %71, %73 : vector<8x8xf32>
    %cst_47 = arith.constant dense<0xFF800000> : vector<8xf32>
    %75 = vector.multi_reduction <maximumf>, %74, %cst_47 [1] : vector<8x8xf32> to vector<8xf32>
    %76 = vector.shape_cast %75 : vector<8xf32> to vector<8x1xf32>
    %77 = vector.broadcast %76 : vector<8x1xf32> to vector<8x8xf32>
    %78 = arith.subf %74, %77 : vector<8x8xf32>
    %79 = math.exp %78 : vector<8x8xf32>
    %cst_48 = arith.constant dense<0.000000e+00> : vector<8xf32>
    %80 = vector.multi_reduction <add>, %79, %cst_48 [1] : vector<8x8xf32> to vector<8xf32>
    %81 = vector.shape_cast %80 : vector<8xf32> to vector<8x1xf32>
    %82 = vector.broadcast %81 : vector<8x1xf32> to vector<8x8xf32>
    %83 = arith.divf %79, %82 : vector<8x8xf32>
    %cst_49 = arith.constant dense<0.000000e+00> : vector<8x32xf32>
    %84 = tpu.matmul %83, %68, %cst_49 {dimension_numbers = #tpu.dot_dimension_numbers<[1], [0], [0], [1], [0, 0, 1, 1], [], []>} : vector<8x8xf32>, vector<8x32xf32>, vector<8x32xf32> -> vector<8x32xf32>
    %85 = vector.extract_strided_slice %13 {offsets = [0, 96], sizes = [8, 32], strides = [1, 1]} : vector<8x128xf32> to vector<8x32xf32>
    %86 = vector.extract_strided_slice %20 {offsets = [0, 96], sizes = [8, 32], strides = [1, 1]} : vector<8x128xf32> to vector<8x32xf32>
    %87 = vector.extract_strided_slice %27 {offsets = [0, 96], sizes = [8, 32], strides = [1, 1]} : vector<8x128xf32> to vector<8x32xf32>
    %cst_50 = arith.constant dense<0.000000e+00> : vector<8x8xf32>
    %88 = tpu.matmul %85, %86, %cst_50 {dimension_numbers = #tpu.dot_dimension_numbers<[1], [1], [0], [0], [0, 0, 1, 0], [], []>} : vector<8x32xf32>, vector<8x32xf32>, vector<8x8xf32> -> vector<8x8xf32>
    %cst_51 = arith.constant 0.176776692 : f32
    %89 = vector.broadcast %cst_51 : f32 to vector<8x8xf32>
    %90 = arith.mulf %88, %89 : vector<8x8xf32>
    %c3 = arith.constant 3 : index
    %c0_52 = arith.constant 0 : index
    %c0_53 = arith.constant 0 : index
    %91 = vector.load %arg4[%c3, %c0_52, %c0_53] : memref<4x8x8xf32, #tpu.memory_space<vmem>>, vector<1x8x8xf32>
    %92 = vector.shape_cast %91 : vector<1x8x8xf32> to vector<8x8xf32>
    %93 = arith.addf %90, %92 : vector<8x8xf32>
    %cst_54 = arith.constant dense<0xFF800000> : vector<8xf32>
    %94 = vector.multi_reduction <maximumf>, %93, %cst_54 [1] : vector<8x8xf32> to vector<8xf32>
    %95 = vector.shape_cast %94 : vector<8xf32> to vector<8x1xf32>
    %96 = vector.broadcast %95 : vector<8x1xf32> to vector<8x8xf32>
    %97 = arith.subf %93, %96 : vector<8x8xf32>
    %98 = math.exp %97 : vector<8x8xf32>
    %cst_55 = arith.constant dense<0.000000e+00> : vector<8xf32>
    %99 = vector.multi_reduction <add>, %98, %cst_55 [1] : vector<8x8xf32> to vector<8xf32>
    %100 = vector.shape_cast %99 : vector<8xf32> to vector<8x1xf32>
    %101 = vector.broadcast %100 : vector<8x1xf32> to vector<8x8xf32>
    %102 = arith.divf %98, %101 : vector<8x8xf32>
    %cst_56 = arith.constant dense<0.000000e+00> : vector<8x32xf32>
    %103 = tpu.matmul %102, %87, %cst_56 {dimension_numbers = #tpu.dot_dimension_numbers<[1], [0], [0], [1], [0, 0, 1, 1], [], []>} : vector<8x8xf32>, vector<8x32xf32>, vector<8x32xf32> -> vector<8x32xf32>
    %104 = tpu.concatenate %46, %65, %84, %103 in 1 : vector<8x32xf32>, vector<8x32xf32>, vector<8x32xf32>, vector<8x32xf32> -> vector<8x128xf32>
    %c3_57 = arith.constant 3 : index
    %c0_58 = arith.constant 0 : index
    %c0_59 = arith.constant 0 : index
    %105 = vector.load %arg5[%c3_57, %c0_58, %c0_59] : memref<4x128x128xf32, #tpu.memory_space<vmem>>, vector<1x128x128xf32>
    %106 = vector.shape_cast %105 : vector<1x128x128xf32> to vector<128x128xf32>
    %cst_60 = arith.constant dense<0.000000e+00> : vector<8x128xf32>
    %107 = tpu.matmul %104, %106, %cst_60 {dimension_numbers = #tpu.dot_dimension_numbers<[1], [0], [0], [1], [0, 0, 1, 1], [], []>} : vector<8x128xf32>, vector<128x128xf32>, vector<8x128xf32> -> vector<8x128xf32>
    %c3_61 = arith.constant 3 : index
    %c0_62 = arith.constant 0 : index
    %c0_63 = arith.constant 0 : index
    %108 = vector.load %arg6[%c3_61, %c0_62, %c0_63] : memref<4x1x128xf32, #tpu.memory_space<vmem>>, vector<1x1x128xf32>
    %109 = vector.shape_cast %108 : vector<1x1x128xf32> to vector<1x128xf32>
    %110 = vector.broadcast %109 : vector<1x128xf32> to vector<8x128xf32>
    %111 = arith.addf %107, %110 : vector<8x128xf32>
    %112 = arith.addf %4, %111 : vector<8x128xf32>
    %c0_64 = arith.constant 0 : index
    %c0_65 = arith.constant 0 : index
    %c0_66 = arith.constant 0 : index
    %113 = vector.load %arg7[%c0_64, %c0_65, %c0_66] : memref<2x1x128xf32, #tpu.memory_space<vmem>>, vector<1x1x128xf32>
    %114 = vector.shape_cast %113 : vector<1x1x128xf32> to vector<1x128xf32>
    %c1_67 = arith.constant 1 : index
    %c0_68 = arith.constant 0 : index
    %c0_69 = arith.constant 0 : index
    %115 = vector.load %arg7[%c1_67, %c0_68, %c0_69] : memref<2x1x128xf32, #tpu.memory_space<vmem>>, vector<1x1x128xf32>
    %116 = vector.shape_cast %115 : vector<1x1x128xf32> to vector<1x128xf32>
    %cst_70 = arith.constant dense<0.000000e+00> : vector<8xf32>
    %117 = vector.multi_reduction <add>, %112, %cst_70 [1] : vector<8x128xf32> to vector<8xf32>
    %118 = vector.shape_cast %117 : vector<8xf32> to vector<8x1xf32>
    %cst_71 = arith.constant 1.280000e+02 : f32
    %119 = vector.broadcast %cst_71 : f32 to vector<8x1xf32>
    %120 = arith.divf %118, %119 : vector<8x1xf32>
    %121 = vector.broadcast %120 : vector<8x1xf32> to vector<8x128xf32>
    %122 = arith.subf %112, %121 : vector<8x128xf32>
    %123 = arith.mulf %122, %122 : vector<8x128xf32>
    %cst_72 = arith.constant dense<0.000000e+00> : vector<8xf32>
    %124 = vector.multi_reduction <add>, %123, %cst_72 [1] : vector<8x128xf32> to vector<8xf32>
    %125 = vector.shape_cast %124 : vector<8xf32> to vector<8x1xf32>
    %cst_73 = arith.constant 1.280000e+02 : f32
    %126 = vector.broadcast %cst_73 : f32 to vector<8x1xf32>
    %127 = arith.divf %125, %126 : vector<8x1xf32>
    %cst_74 = arith.constant 9.99999974E-6 : f32
    %128 = vector.broadcast %cst_74 : f32 to vector<8x1xf32>
    %129 = arith.addf %127, %128 : vector<8x1xf32>
    %130 = math.rsqrt %129 : vector<8x1xf32>
    %131 = vector.broadcast %130 : vector<8x1xf32> to vector<8x128xf32>
    %132 = arith.mulf %122, %131 : vector<8x128xf32>
    %133 = vector.broadcast %114 : vector<1x128xf32> to vector<8x128xf32>
    %134 = arith.mulf %132, %133 : vector<8x128xf32>
    %135 = vector.broadcast %116 : vector<1x128xf32> to vector<8x128xf32>
    %136 = arith.addf %134, %135 : vector<8x128xf32>
    %c0_75 = arith.constant 0 : index
    %c0_76 = arith.constant 0 : index
    %c0_77 = arith.constant 0 : index
    %137 = vector.load %arg8[%c0_75, %c0_76, %c0_77] : memref<1x8x128xf32, #tpu.memory_space<vmem>>, vector<1x8x128xf32>
    %138 = vector.shape_cast %137 : vector<1x8x128xf32> to vector<8x128xf32>
    %139 = vector.shape_cast %136 : vector<8x128xf32> to vector<1x8x128xf32>
    tpu.vector_store %arg8[%c0_75, %c0_76, %c0_77], %139 {strides = array<i32>} : memref<1x8x128xf32, #tpu.memory_space<vmem>>, vector<1x8x128xf32>,
    return
  }
  func.func @transform_0(%arg0: i32) -> (i32, i32, i32) {
    %c0_i32 = arith.constant 0 : i32
    %c0_i32_0 = arith.constant 0 : i32
    %c0_i32_1 = arith.constant 0 : i32
    return %arg0, %c0_i32, %c0_i32_0 : i32, i32, i32
  }
  func.func @transform_1(%arg0: i32) -> (i32, i32, i32) {
    %c0_i32 = arith.constant 0 : i32
    %c0_i32_0 = arith.constant 0 : i32
    %c0_i32_1 = arith.constant 0 : i32
    %c0_i32_2 = arith.constant 0 : i32
    return %c0_i32, %c0_i32_0, %c0_i32_1 : i32, i32, i32
  }
  func.func @transform_2(%arg0: i32) -> (i32, i32, i32) {
    %c0_i32 = arith.constant 0 : i32
    %c0_i32_0 = arith.constant 0 : i32
    %c0_i32_1 = arith.constant 0 : i32
    return %arg0, %c0_i32, %c0_i32_0 : i32, i32, i32
  }
  func.func @transform_3(%arg0: i32) -> (i32, i32, i32) {
    %c0_i32 = arith.constant 0 : i32
    %c0_i32_0 = arith.constant 0 : i32
    %c0_i32_1 = arith.constant 0 : i32
    %c0_i32_2 = arith.constant 0 : i32
    return %c0_i32, %c0_i32_0, %c0_i32_1 : i32, i32, i32
  }
  func.func @transform_4(%arg0: i32) -> (i32, i32, i32) {
    %c0_i32 = arith.constant 0 : i32
    %c0_i32_0 = arith.constant 0 : i32
    %c0_i32_1 = arith.constant 0 : i32
    %c0_i32_2 = arith.constant 0 : i32
    return %c0_i32, %c0_i32_0, %c0_i32_1 : i32, i32, i32
  }
  func.func @transform_5(%arg0: i32) -> (i32, i32, i32) {
    %c0_i32 = arith.constant 0 : i32
    %c0_i32_0 = arith.constant 0 : i32
    %c0_i32_1 = arith.constant 0 : i32
    %c0_i32_2 = arith.constant 0 : i32
    return %c0_i32, %c0_i32_0, %c0_i32_1 : i32, i32, i32
  }
  func.func @transform_6(%arg0: i32) -> (i32, i32, i32) {
    %c0_i32 = arith.constant 0 : i32
    %c0_i32_0 = arith.constant 0 : i32
    %c0_i32_1 = arith.constant 0 : i32
    %c0_i32_2 = arith.constant 0 : i32
    return %c0_i32, %c0_i32_0, %c0_i32_1 : i32, i32, i32
  }
  func.func @transform_7(%arg0: i32) -> (i32, i32, i32) {
    %c0_i32 = arith.constant 0 : i32
    %c0_i32_0 = arith.constant 0 : i32
    %c0_i32_1 = arith.constant 0 : i32
    return %arg0, %c0_i32, %c0_i32_0 : i32, i32, i32
  }
}

module attributes {stable_mosaic.version = 11 : i64} {
  func.func @_ffn_block_kernel(%arg0: i32, %arg1: memref<1x8x128xf32, #tpu.memory_space<vmem>>, %arg2: memref<128x256xf32, #tpu.memory_space<vmem>>, %arg3: memref<1x256xf32, #tpu.memory_space<vmem>>, %arg4: memref<256x128xf32, #tpu.memory_space<vmem>>, %arg5: memref<1x128xf32, #tpu.memory_space<vmem>>, %arg6: memref<2x1x128xf32, #tpu.memory_space<vmem>>, %arg7: memref<1x8x128xf32, #tpu.memory_space<vmem>>) attributes {dimension_semantics = [#tpu.dimension_semantics<parallel>], iteration_bounds = array<i64: 2>, scalar_prefetch = 0 : i64, scratch_operands = 0 : i64, tpu.core_type = #tpu.core_type<tc>, window_params = [{transform_indices = @transform_0, window_bounds = array<i64: 1, 8, 128>}, {pipeline_mode = #tpu.pipeline_mode<synchronous>, transform_indices = @transform_1, window_bounds = array<i64: 128, 256>}, {pipeline_mode = #tpu.pipeline_mode<synchronous>, transform_indices = @transform_2, window_bounds = array<i64: 1, 256>}, {pipeline_mode = #tpu.pipeline_mode<synchronous>, transform_indices = @transform_3, window_bounds = array<i64: 256, 128>}, {pipeline_mode = #tpu.pipeline_mode<synchronous>, transform_indices = @transform_4, window_bounds = array<i64: 1, 128>}, {pipeline_mode = #tpu.pipeline_mode<synchronous>, transform_indices = @transform_5, window_bounds = array<i64: 2, 1, 128>}, {transform_indices = @transform_6, window_bounds = array<i64: 1, 8, 128>}]} {
    %c0 = arith.constant 0 : index
    %c0_0 = arith.constant 0 : index
    %c0_1 = arith.constant 0 : index
    %0 = vector.load %arg1[%c0, %c0_0, %c0_1] : memref<1x8x128xf32, #tpu.memory_space<vmem>>, vector<1x8x128xf32>
    %1 = vector.shape_cast %0 : vector<1x8x128xf32> to vector<8x128xf32>
    %c0_2 = arith.constant 0 : index
    %c0_3 = arith.constant 0 : index
    %2 = vector.load %arg2[%c0_2, %c0_3] : memref<128x256xf32, #tpu.memory_space<vmem>>, vector<128x256xf32>
    %cst = arith.constant dense<0.000000e+00> : vector<8x256xf32>
    %3 = tpu.matmul %1, %2, %cst {dimension_numbers = #tpu.dot_dimension_numbers<[1], [0], [0], [1], [0, 0, 1, 1], [], []>} : vector<8x128xf32>, vector<128x256xf32>, vector<8x256xf32> -> vector<8x256xf32>
    %c0_4 = arith.constant 0 : index
    %c0_5 = arith.constant 0 : index
    %4 = vector.load %arg3[%c0_4, %c0_5] : memref<1x256xf32, #tpu.memory_space<vmem>>, vector<1x256xf32>
    %5 = vector.broadcast %4 : vector<1x256xf32> to vector<8x256xf32>
    %6 = arith.addf %3, %5 : vector<8x256xf32>
    %cst_6 = arith.constant 0.000000e+00 : f32
    %7 = vector.broadcast %cst_6 : f32 to vector<8x256xf32>
    %8 = arith.maximumf %6, %7 : vector<8x256xf32>
    %c0_7 = arith.constant 0 : index
    %c0_8 = arith.constant 0 : index
    %9 = vector.load %arg4[%c0_7, %c0_8] : memref<256x128xf32, #tpu.memory_space<vmem>>, vector<256x128xf32>
    %cst_9 = arith.constant dense<0.000000e+00> : vector<8x128xf32>
    %10 = tpu.matmul %8, %9, %cst_9 {dimension_numbers = #tpu.dot_dimension_numbers<[1], [0], [0], [1], [0, 0, 1, 1], [], []>} : vector<8x256xf32>, vector<256x128xf32>, vector<8x128xf32> -> vector<8x128xf32>
    %c0_10 = arith.constant 0 : index
    %c0_11 = arith.constant 0 : index
    %11 = vector.load %arg5[%c0_10, %c0_11] : memref<1x128xf32, #tpu.memory_space<vmem>>, vector<1x128xf32>
    %12 = vector.broadcast %11 : vector<1x128xf32> to vector<8x128xf32>
    %13 = arith.addf %10, %12 : vector<8x128xf32>
    %14 = arith.addf %1, %13 : vector<8x128xf32>
    %c0_12 = arith.constant 0 : index
    %c0_13 = arith.constant 0 : index
    %c0_14 = arith.constant 0 : index
    %15 = vector.load %arg6[%c0_12, %c0_13, %c0_14] : memref<2x1x128xf32, #tpu.memory_space<vmem>>, vector<1x1x128xf32>
    %16 = vector.shape_cast %15 : vector<1x1x128xf32> to vector<1x128xf32>
    %c1 = arith.constant 1 : index
    %c0_15 = arith.constant 0 : index
    %c0_16 = arith.constant 0 : index
    %17 = vector.load %arg6[%c1, %c0_15, %c0_16] : memref<2x1x128xf32, #tpu.memory_space<vmem>>, vector<1x1x128xf32>
    %18 = vector.shape_cast %17 : vector<1x1x128xf32> to vector<1x128xf32>
    %cst_17 = arith.constant dense<0.000000e+00> : vector<8xf32>
    %19 = vector.multi_reduction <add>, %14, %cst_17 [1] : vector<8x128xf32> to vector<8xf32>
    %20 = vector.shape_cast %19 : vector<8xf32> to vector<8x1xf32>
    %cst_18 = arith.constant 1.280000e+02 : f32
    %21 = vector.broadcast %cst_18 : f32 to vector<8x1xf32>
    %22 = arith.divf %20, %21 : vector<8x1xf32>
    %23 = vector.broadcast %22 : vector<8x1xf32> to vector<8x128xf32>
    %24 = arith.subf %14, %23 : vector<8x128xf32>
    %25 = arith.mulf %24, %24 : vector<8x128xf32>
    %cst_19 = arith.constant dense<0.000000e+00> : vector<8xf32>
    %26 = vector.multi_reduction <add>, %25, %cst_19 [1] : vector<8x128xf32> to vector<8xf32>
    %27 = vector.shape_cast %26 : vector<8xf32> to vector<8x1xf32>
    %cst_20 = arith.constant 1.280000e+02 : f32
    %28 = vector.broadcast %cst_20 : f32 to vector<8x1xf32>
    %29 = arith.divf %27, %28 : vector<8x1xf32>
    %cst_21 = arith.constant 9.99999974E-6 : f32
    %30 = vector.broadcast %cst_21 : f32 to vector<8x1xf32>
    %31 = arith.addf %29, %30 : vector<8x1xf32>
    %32 = math.rsqrt %31 : vector<8x1xf32>
    %33 = vector.broadcast %32 : vector<8x1xf32> to vector<8x128xf32>
    %34 = arith.mulf %24, %33 : vector<8x128xf32>
    %35 = vector.broadcast %16 : vector<1x128xf32> to vector<8x128xf32>
    %36 = arith.mulf %34, %35 : vector<8x128xf32>
    %37 = vector.broadcast %18 : vector<1x128xf32> to vector<8x128xf32>
    %38 = arith.addf %36, %37 : vector<8x128xf32>
    %c0_22 = arith.constant 0 : index
    %c0_23 = arith.constant 0 : index
    %c0_24 = arith.constant 0 : index
    %39 = vector.load %arg7[%c0_22, %c0_23, %c0_24] : memref<1x8x128xf32, #tpu.memory_space<vmem>>, vector<1x8x128xf32>
    %40 = vector.shape_cast %39 : vector<1x8x128xf32> to vector<8x128xf32>
    %41 = vector.shape_cast %38 : vector<8x128xf32> to vector<1x8x128xf32>
    tpu.vector_store %arg7[%c0_22, %c0_23, %c0_24], %41 {strides = array<i32>} : memref<1x8x128xf32, #tpu.memory_space<vmem>>, vector<1x8x128xf32>,
    return
  }
  func.func @transform_0(%arg0: i32) -> (i32, i32, i32) {
    %c0_i32 = arith.constant 0 : i32
    %c0_i32_0 = arith.constant 0 : i32
    %c0_i32_1 = arith.constant 0 : i32
    return %arg0, %c0_i32, %c0_i32_0 : i32, i32, i32
  }
  func.func @transform_1(%arg0: i32) -> (i32, i32) {
    %c0_i32 = arith.constant 0 : i32
    %c0_i32_0 = arith.constant 0 : i32
    %c0_i32_1 = arith.constant 0 : i32
    return %c0_i32, %c0_i32_0 : i32, i32
  }
  func.func @transform_2(%arg0: i32) -> (i32, i32) {
    %c0_i32 = arith.constant 0 : i32
    %c0_i32_0 = arith.constant 0 : i32
    %c0_i32_1 = arith.constant 0 : i32
    return %c0_i32, %c0_i32_0 : i32, i32
  }
  func.func @transform_3(%arg0: i32) -> (i32, i32) {
    %c0_i32 = arith.constant 0 : i32
    %c0_i32_0 = arith.constant 0 : i32
    %c0_i32_1 = arith.constant 0 : i32
    return %c0_i32, %c0_i32_0 : i32, i32
  }
  func.func @transform_4(%arg0: i32) -> (i32, i32) {
    %c0_i32 = arith.constant 0 : i32
    %c0_i32_0 = arith.constant 0 : i32
    %c0_i32_1 = arith.constant 0 : i32
    return %c0_i32, %c0_i32_0 : i32, i32
  }
  func.func @transform_5(%arg0: i32) -> (i32, i32, i32) {
    %c0_i32 = arith.constant 0 : i32
    %c0_i32_0 = arith.constant 0 : i32
    %c0_i32_1 = arith.constant 0 : i32
    %c0_i32_2 = arith.constant 0 : i32
    return %c0_i32, %c0_i32_0, %c0_i32_1 : i32, i32, i32
  }
  func.func @transform_6(%arg0: i32) -> (i32, i32, i32) {
    %c0_i32 = arith.constant 0 : i32
    %c0_i32_0 = arith.constant 0 : i32
    %c0_i32_1 = arith.constant 0 : i32
    return %arg0, %c0_i32, %c0_i32_0 : i32, i32, i32
  }
}

</mosaic_0001>

<llo_original>
// kernel: transformer_decoder_forward.8
$region0: #{transformer_decoder_forward.8}
  #allocation0 [shape = 'u32[]', space=smem, size = 0x4, offset = 0x4, fixed_abs, tag = 'smem constant byte address 0x4 - core index']
  #allocation1 [shape = 'u32[144,128]{1,0:T(1,128)}', space=vmem, size = 0x12000, scoped, tag = 'internal scratch']
  %s0 = inlined_call_operand.vmem [shape: f32[2,8,128], index: 0, kind: input, shape index: {}]
  %s1 = inlined_call_operand.vmem [shape: f32[128,256], index: 1, kind: input, shape index: {}]
  %s2 = inlined_call_operand.vmem [shape: f32[1,256], index: 2, kind: input, shape index: {}]
  %s3 = inlined_call_operand.vmem [shape: f32[256,128], index: 3, kind: input, shape index: {}]
  %s4 = inlined_call_operand.vmem [shape: f32[1,128], index: 4, kind: input, shape index: {}]
  %s5 = inlined_call_operand.vmem [shape: f32[2,1,128], index: 5, kind: input, shape index: {}]
  %s6 = inlined_call_operand.vmem [shape: f32[2,8,128], index: 6, kind: output, shape index: {}]
  %s7 = sld [smem:[#allocation0]]
  $region57: #{transformer_decoder_forward.8} parent=0
    _
  %s9 = ssub.s32 1, %s7
  %s10 = scalar_select 0, %s9, %s7
  loop: start=0, step=1, limit=4
  $region2: #{transformer_decoder_forward.8} parent=0 // loop_pre_header
    _
  $region3: #{transformer_decoder_forward.8} parent=0 // loop_header
    %s12 = sphi 0, %s16
    %p13 = scmp.ge.s32.totalorder %s12, 4
    %s22 = sphi 0, %s24
    %s25 = sphi 0, %s22
    %s26 = sphi 0, %s25
    %s42 = sphi 0, %s26
    %s46 = sphi 0, %s46
    %s48 = sphi 0, %s46
    %s49 = sphi 0, %s48
    %s63 = sphi 0, %s49
    %s67 = sphi 0, %s67
    %s69 = sphi 0, %s67
    %s70 = sphi 0, %s69
    %s84 = sphi 0, %s70
    %s88 = sphi 0, %s88
    %s90 = sphi 0, %s88
    %s91 = sphi 0, %s90
    %s105 = sphi 0, %s91
    %s109 = sphi 0, %s109
    %s111 = sphi 0, %s109
    %s112 = sphi 0, %s111
    %s126 = sphi 0, %s112
    %s130 = sphi 0, %s130
    %s132 = sphi 0, %s130
    %s133 = sphi 0, %s132
    %s147 = sphi 0, %s133
    %s153 = sphi 0, %s155
    %s156 = sphi 0, %s153
    %s157 = sphi 0, %s156
    %s173 = sphi 0, %s157
  $region4: #{transformer_decoder_forward.8} parent=0 // loop_header_branch
    %15 = sbr.rel (%p13) target = $region8
  $region5: #{transformer_decoder_forward.8} parent=0 // loop_body
    %s17 = ssub.s32 %s12, 1
    %s18 = ssub.s32 %s12, 2
    %s19 = sadd.s32 %s12, 1
    %s20 = ssub.s32 %s12, %s19
    %p21 = scmp.eq.s32.totalorder %s20, 0
    %s23 = sadd.s32 %s22, 1
    %s24 = scalar_select %p21, %s22, %s23
    %p27 = pneg %p21
    %p28 = scmp.eq.s32.totalorder %s12, 1
    %p29 = por %p27, %p28
    %p30 = scmp.ne.s32.totalorder %s22, %s25
    %p31 = scmp.eq.s32.totalorder %s12, 0
    %p32 = por %p30, %p31
    %p33 = scmp.ne.s32.totalorder %s22, %s25
    %p34 = scmp.eq.s32.totalorder %s17, 1
    %p35 = por %p33, %p34
    %p36 = scmp.ne.s32.totalorder %s25, %s26
    %p37 = scmp.eq.s32.totalorder %s17, 0
    %p38 = por %p36, %p37
    %p39 = scmp.ne.s32.totalorder %s25, %s26
    %p40 = scmp.eq.s32.totalorder %s18, 1
    %p41 = por %p39, %p40
    %p43 = scmp.ne.s32.totalorder %s26, %s42
    %p44 = scmp.eq.s32.totalorder %s18, 0
    %p45 = por %p43, %p44
    %s47 = sadd.s32 %s46, 1
    %p50 = scmp.eq.s32.totalorder %s12, 1
    %p51 = scmp.ne.s32.totalorder %s46, %s48
    %p52 = scmp.eq.s32.totalorder %s12, 0
    %p53 = por %p51, %p52
    %p54 = scmp.ne.s32.totalorder %s46, %s48
    %p55 = scmp.eq.s32.totalorder %s17, 1
    %p56 = por %p54, %p55
    %p57 = scmp.ne.s32.totalorder %s48, %s49
    %p58 = scmp.eq.s32.totalorder %s17, 0
    %p59 = por %p57, %p58
    %p60 = scmp.ne.s32.totalorder %s48, %s49
    %p61 = scmp.eq.s32.totalorder %s18, 1
    %p62 = por %p60, %p61
    %p64 = scmp.ne.s32.totalorder %s49, %s63
    %p65 = scmp.eq.s32.totalorder %s18, 0
    %p66 = por %p64, %p65
    %s68 = sadd.s32 %s67, 1
    %p71 = scmp.eq.s32.totalorder %s12, 1
    %p72 = scmp.ne.s32.totalorder %s67, %s69
    %p73 = scmp.eq.s32.totalorder %s12, 0
    %p74 = por %p72, %p73
    %p75 = scmp.ne.s32.totalorder %s67, %s69
    %p76 = scmp.eq.s32.totalorder %s17, 1
    %p77 = por %p75, %p76
    %p78 = scmp.ne.s32.totalorder %s69, %s70
    %p79 = scmp.eq.s32.totalorder %s17, 0
    %p80 = por %p78, %p79
    %p81 = scmp.ne.s32.totalorder %s69, %s70
    %p82 = scmp.eq.s32.totalorder %s18, 1
    %p83 = por %p81, %p82
    %p85 = scmp.ne.s32.totalorder %s70, %s84
    %p86 = scmp.eq.s32.totalorder %s18, 0
    %p87 = por %p85, %p86
    %s89 = sadd.s32 %s88, 1
    %p92 = scmp.eq.s32.totalorder %s12, 1
    %p93 = scmp.ne.s32.totalorder %s88, %s90
    %p94 = scmp.eq.s32.totalorder %s12, 0
    %p95 = por %p93, %p94
    %p96 = scmp.ne.s32.totalorder %s88, %s90
    %p97 = scmp.eq.s32.totalorder %s17, 1
    %p98 = por %p96, %p97
    %p99 = scmp.ne.s32.totalorder %s90, %s91
    %p100 = scmp.eq.s32.totalorder %s17, 0
    %p101 = por %p99, %p100
    %p102 = scmp.ne.s32.totalorder %s90, %s91
    %p103 = scmp.eq.s32.totalorder %s18, 1
    %p104 = por %p102, %p103
    %p106 = scmp.ne.s32.totalorder %s91, %s105
    %p107 = scmp.eq.s32.totalorder %s18, 0
    %p108 = por %p106, %p107
    %s110 = sadd.s32 %s109, 1
    %p113 = scmp.eq.s32.totalorder %s12, 1
    %p114 = scmp.ne.s32.totalorder %s109, %s111
    %p115 = scmp.eq.s32.totalorder %s12, 0
    %p116 = por %p114, %p115
    %p117 = scmp.ne.s32.totalorder %s109, %s111
    %p118 = scmp.eq.s32.totalorder %s17, 1
    %p119 = por %p117, %p118
    %p120 = scmp.ne.s32.totalorder %s111, %s112
    %p121 = scmp.eq.s32.totalorder %s17, 0
    %p122 = por %p120, %p121
    %p123 = scmp.ne.s32.totalorder %s111, %s112
    %p124 = scmp.eq.s32.totalorder %s18, 1
    %p125 = por %p123, %p124
    %p127 = scmp.ne.s32.totalorder %s112, %s126
    %p128 = scmp.eq.s32.totalorder %s18, 0
    %p129 = por %p127, %p128
    %s131 = sadd.s32 %s130, 1
    %p134 = scmp.eq.s32.totalorder %s12, 1
    %p135 = scmp.ne.s32.totalorder %s130, %s132
    %p136 = scmp.eq.s32.totalorder %s12, 0
    %p137 = por %p135, %p136
    %p138 = scmp.ne.s32.totalorder %s130, %s132
    %p139 = scmp.eq.s32.totalorder %s17, 1
    %p140 = por %p138, %p139
    %p141 = scmp.ne.s32.totalorder %s132, %s133
    %p142 = scmp.eq.s32.totalorder %s17, 0
    %p143 = por %p141, %p142
    %p144 = scmp.ne.s32.totalorder %s132, %s133
    %p145 = scmp.eq.s32.totalorder %s18, 1
    %p146 = por %p144, %p145
    %p148 = scmp.ne.s32.totalorder %s133, %s147
    %p149 = scmp.eq.s32.totalorder %s18, 0
    %p150 = por %p148, %p149
    %s151 = ssub.s32 %s12, %s19
    %p152 = scmp.eq.s32.totalorder %s151, 0
    %s154 = sadd.s32 %s153, 1
    %s155 = scalar_select %p152, %s153, %s154
    %p158 = pneg %p152
    %p159 = scmp.eq.s32.totalorder %s12, 1
    %p160 = por %p158, %p159
    %p161 = scmp.ne.s32.totalorder %s153, %s156
    %p162 = scmp.eq.s32.totalorder %s12, 0
    %p163 = por %p161, %p162
    %p164 = scmp.ne.s32.totalorder %s153, %s156
    %p165 = scmp.eq.s32.totalorder %s17, 1
    %p166 = por %p164, %p165
    %p167 = scmp.ne.s32.totalorder %s156, %s157
    %p168 = scmp.eq.s32.totalorder %s17, 0
    %p169 = por %p167, %p168
    %p170 = scmp.ne.s32.totalorder %s156, %s157
    %p171 = scmp.eq.s32.totalorder %s18, 1
    %p172 = por %p170, %p171
    %p174 = scmp.ne.s32.totalorder %s157, %s173
    %p175 = scmp.eq.s32.totalorder %s18, 0
    %p176 = por %p174, %p175
    %p177 = scmp.le.s32.totalorder 1, %s12
    %p178 = scmp.lt.s32.totalorder %s12, 3
    %p179 = pnand %p177, %p178
    %p180 = pneg %p179
    // Predicated region
    $region9: #{transformer_decoder_forward.8} parent=5 // pred_check
      _
    $region10: #{transformer_decoder_forward.8} parent=5 // pred_check_branch
      %182 = sbr.rel (%p179) target = $region12
    $region11: #{transformer_decoder_forward.8} parent=5 // pred_region
      %s183 = ssub.s32 %s12, 1
      // Predicated region
      $region13: #{transformer_decoder_forward.8} parent=11 // pred_check
        %p184 = pneg %p59
      $region14: #{transformer_decoder_forward.8} parent=11 // pred_check_branch
        %186 = sbr.rel (%p184) target = $region16
      $region15: #{transformer_decoder_forward.8} parent=11 // pred_region
        _
      $region16: #{transformer_decoder_forward.8} parent=11 // pred_fallthru
        _
      // Predicated region
      $region17: #{transformer_decoder_forward.8} parent=11 // pred_check
        %p187 = pneg %p80
      $region18: #{transformer_decoder_forward.8} parent=11 // pred_check_branch
        %189 = sbr.rel (%p187) target = $region20
      $region19: #{transformer_decoder_forward.8} parent=11 // pred_region
        _
      $region20: #{transformer_decoder_forward.8} parent=11 // pred_fallthru
        _
      // Predicated region
      $region21: #{transformer_decoder_forward.8} parent=11 // pred_check
        %p190 = pneg %p101
      $region22: #{transformer_decoder_forward.8} parent=11 // pred_check_branch
        %192 = sbr.rel (%p190) target = $region24
      $region23: #{transformer_decoder_forward.8} parent=11 // pred_region
        _
      $region24: #{transformer_decoder_forward.8} parent=11 // pred_fallthru
        _
      // Predicated region
      $region25: #{transformer_decoder_forward.8} parent=11 // pred_check
        %p193 = pneg %p122
      $region26: #{transformer_decoder_forward.8} parent=11 // pred_check_branch
        %195 = sbr.rel (%p193) target = $region28
      $region27: #{transformer_decoder_forward.8} parent=11 // pred_region
        _
      $region28: #{transformer_decoder_forward.8} parent=11 // pred_fallthru
        _
      // Predicated region
      $region29: #{transformer_decoder_forward.8} parent=11 // pred_check
        %p196 = pneg %p143
      $region30: #{transformer_decoder_forward.8} parent=11 // pred_check_branch
        %198 = sbr.rel (%p196) target = $region32
      $region31: #{transformer_decoder_forward.8} parent=11 // pred_region
        _
      $region32: #{transformer_decoder_forward.8} parent=11 // pred_fallthru
        _
    $region12: #{transformer_decoder_forward.8} parent=5 // pred_fallthru
      _
    %p199 = scmp.lt.s32.totalorder %s12, 2
    // Predicated region
    $region33: #{transformer_decoder_forward.8} parent=5 // pred_check
      %p200 = pneg %p199
    $region34: #{transformer_decoder_forward.8} parent=5 // pred_check_branch
      %202 = sbr.rel (%p200) target = $region36
    $region35: #{transformer_decoder_forward.8} parent=5 // pred_region
      // Predicated region
      $region37: #{transformer_decoder_forward.8} parent=35 // pred_check
        %p203 = pneg %p32
      $region38: #{transformer_decoder_forward.8} parent=35 // pred_check_branch
        %205 = sbr.rel (%p203) target = $region40
      $region39: #{transformer_decoder_forward.8} parent=35 // pred_region
        %p206 = scmp.lt.s32.totalorder %s12, 1
        %s207 = scalar_select %p206, %s12, 1
        %s208 = smul.addr %s207, 8
        %s209 = scalar_lea.vmem %s0, %s208
      $region40: #{transformer_decoder_forward.8} parent=35 // pred_fallthru
        _
    $region36: #{transformer_decoder_forward.8} parent=5 // pred_fallthru
      _
    %p210 = scmp.le.s32.totalorder 1, %s12
    %p211 = scmp.lt.s32.totalorder %s12, 3
    %p212 = pnand %p210, %p211
    %p213 = pneg %p212
    // Predicated region
    $region41: #{transformer_decoder_forward.8} parent=5 // pred_check
      _
    $region42: #{transformer_decoder_forward.8} parent=5 // pred_check_branch
      %215 = sbr.rel (%p212) target = $region44
    $region43: #{transformer_decoder_forward.8} parent=5 // pred_region
      %s216 = ssub.s32 %s12, 1
      %p217 = scmp.lt.s32.totalorder %s17, 1
      %s218 = scalar_select %p217, %s17, 1
      %s219 = smul.addr %s218, 8
      %s220 = scalar_lea.vmem %s0, %s219
      %p221 = pneg %p38
      %p222 = pneg %p35
      %p223 = pneg %p59
      %p224 = pneg %p56
      %p225 = pneg %p80
      %p226 = pneg %p77
      %p227 = pneg %p101
      %p228 = pneg %p98
      %p229 = pneg %p122
      %p230 = pneg %p119
      %p231 = pneg %p143
      %p232 = pneg %p140
      %p233 = pneg %p169
      %p234 = pneg %p166
      %p235 = scmp.lt.s32.totalorder %s17, 1
      %s236 = scalar_select %p235, %s17, 1
      %s237 = smul.addr %s236, 8
      %s238 = scalar_lea.vmem %s6, %s237
      %p239 = scmp.lt.s32.totalorder %s17, 1
      %s240 = scalar_select %p239, %s17, 1
      %s241 = smul.addr %s240, 8
      %s242 = scalar_lea.vmem %s0, %s241
      %p243 = scmp.lt.s32.totalorder %s17, 1
      %s244 = scalar_select %p243, %s17, 1
      %s245 = smul.addr %s244, 8
      %s246 = scalar_lea.vmem %s6, %s245
      %v247 = vld [vmem:[%s242] sm:$0xff]
      %v248 = vld [vmem:[%s1] sm:$0xff]
      %v249 = vld [vmem:[%s1 + $0x8] sm:$0xff]
      %v250 = vld [vmem:[%s1 + $0x10] sm:$0xff]
      %v251 = vld [vmem:[%s1 + $0x18] sm:$0xff]
      %v252 = vld [vmem:[%s1 + $0x20] sm:$0xff]
      %v253 = vld [vmem:[%s1 + $0x28] sm:$0xff]
      %v254 = vld [vmem:[%s1 + $0x30] sm:$0xff]
      %v255 = vld [vmem:[%s1 + $0x38] sm:$0xff]
      %v256 = vld [vmem:[%s1 + $0x40] sm:$0xff]
      %v257 = vld [vmem:[%s1 + $0x48] sm:$0xff]
      %v258 = vld [vmem:[%s1 + $0x50] sm:$0xff]
      %v259 = vld [vmem:[%s1 + $0x58] sm:$0xff]
      %v260 = vld [vmem:[%s1 + $0x60] sm:$0xff]
      %v261 = vld [vmem:[%s1 + $0x68] sm:$0xff]
      %v262 = vld [vmem:[%s1 + $0x70] sm:$0xff]
      %v263 = vld [vmem:[%s1 + $0x78] sm:$0xff]
      %v264 = vld [vmem:[%s1 + $0x80] sm:$0xff]
      %v265 = vld [vmem:[%s1 + $0x88] sm:$0xff]
      %v266 = vld [vmem:[%s1 + $0x90] sm:$0xff]
      %v267 = vld [vmem:[%s1 + $0x98] sm:$0xff]
      %v268 = vld [vmem:[%s1 + $0xa0] sm:$0xff]
      %v269 = vld [vmem:[%s1 + $0xa8] sm:$0xff]
      %v270 = vld [vmem:[%s1 + $0xb0] sm:$0xff]
      %v271 = vld [vmem:[%s1 + $0xb8] sm:$0xff]
      %v272 = vld [vmem:[%s1 + $0xc0] sm:$0xff]
      %v273 = vld [vmem:[%s1 + $0xc8] sm:$0xff]
      %v274 = vld [vmem:[%s1 + $0xd0] sm:$0xff]
      %v275 = vld [vmem:[%s1 + $0xd8] sm:$0xff]
      %v276 = vld [vmem:[%s1 + $0xe0] sm:$0xff]
      %v277 = vld [vmem:[%s1 + $0xe8] sm:$0xff]
      %v278 = vld [vmem:[%s1 + $0xf0] sm:$0xff]
      %v279 = vld [vmem:[%s1 + $0xf8] sm:$0xff]
      %v280 = vld [vmem:[%s2] sm:$0x3]
      %v282 = vlaneseq
      %v283 = vshrl.u32 %v282, 7
      %v284 = vsub.s32 0, %v283
      %v285 = vrot.slane %v280, %v284
      %v286 = vlaneseq
      %v287 = vshrl.u32 %v286, 7
      %v288 = vsub.s32 1, %v287
      %v289 = vrot.slane %v280, %v288
      %292 = vmatprep.subr.mxu0 %v249
      %293 = vmatpush1.msra.mxu0 %v248
      %294 = vmatprep.subr.mxu0 %v251
      %295 = vmatpush1.msra.mxu0 %v250
      %296 = vmatprep.subr.mxu0 %v253
      %297 = vmatpush1.msra.mxu0 %v252
      %298 = vmatprep.subr.mxu0 %v255
      %299 = vmatpush1.msra.mxu0 %v254
      %300 = vmatprep.subr.mxu0 %v257
      %301 = vmatpush1.msra.mxu0 %v256
      %302 = vmatprep.subr.mxu0 %v259
      %303 = vmatpush1.msra.mxu0 %v258
      %304 = vmatprep.subr.mxu0 %v261
      %305 = vmatpush1.msra.mxu0 %v260
      %306 = vmatprep.subr.mxu0 %v263
      %307 = vmatpush1.msra.mxu0 %v262
      %308 = vmatprep.subr.mxu0 %v265
      %309 = vmatpush1.msra.mxu0 %v264
      %310 = vmatprep.subr.mxu0 %v267
      %311 = vmatpush1.msra.mxu0 %v266
      %312 = vmatprep.subr.mxu0 %v269
      %313 = vmatpush1.msra.mxu0 %v268
      %314 = vmatprep.subr.mxu0 %v271
      %315 = vmatpush1.msra.mxu0 %v270
      %316 = vmatprep.subr.mxu0 %v273
      %317 = vmatpush1.msra.mxu0 %v272
      %318 = vmatprep.subr.mxu0 %v275
      %319 = vmatpush1.msra.mxu0 %v274
      %320 = vmatprep.subr.mxu0 %v277
      %321 = vmatpush1.msra.mxu0 %v276
      %322 = vmatprep.subr.mxu0 %v279
      %323 = vmatpush1.msra.mxu0 %v278
      %324 = vmatprep.subr.mxu0 0.0
      %325 = vmatpush1.msra.mxu0 0.0
      %326 = vmatprep.subr.mxu0 0.0
      %327 = vmatpush1.msra.mxu0 0.0
      %328 = vmatprep.subr.mxu0 0.0
      %329 = vmatpush1.msra.mxu0 0.0
      %330 = vmatprep.subr.mxu0 0.0
      %331 = vmatpush1.msra.mxu0 0.0
      %332 = vmatprep.subr.mxu0 0.0
      %333 = vmatpush1.msra.mxu0 0.0
      %334 = vmatprep.subr.mxu0 0.0
      %335 = vmatpush1.msra.mxu0 0.0
      %336 = vmatprep.subr.mxu0 0.0
      %337 = vmatpush1.msra.mxu0 0.0
      %338 = vmatprep.subr.mxu0 0.0
      %339 = vmatpush1.msra.mxu0 0.0
      %340 = vmatprep.subr.mxu0 0.0
      %341 = vmatpush1.msra.mxu0 0.0
      %342 = vmatprep.subr.mxu0 0.0
      %343 = vmatpush1.msra.mxu0 0.0
      %344 = vmatprep.subr.mxu0 0.0
      %345 = vmatpush1.msra.mxu0 0.0
      %346 = vmatprep.subr.mxu0 0.0
      %347 = vmatpush1.msra.mxu0 0.0
      %348 = vmatprep.subr.mxu0 0.0
      %349 = vmatpush1.msra.mxu0 0.0
      %350 = vmatprep.subr.mxu0 0.0
      %351 = vmatpush1.msra.mxu0 0.0
      %352 = vmatprep.subr.mxu0 0.0
      %353 = vmatpush1.msra.mxu0 0.0
      %354 = vmatprep.subr.mxu0 0.0
      %355 = vmatpush1.msra.mxu0 0.0
      %356 = vmatprep.mubr.f32.mxu0 0.0
      %357 = vmatmul.mubr.f32.gmra.mrb[0].mxu0 %v247
      %v358 = vpop.f32.mrb[0].mxu0
      %v359 = vadd.f32 %v285, %v358
      %v360 = vpop.f32.mrb[0].mxu0
      %v361 = vadd.f32 %v289, %v360
      %362 = vdwg.mxu0
      %v363 = vmax.f32 %v359, 0.0
      %v364 = vmax.f32 %v361, 0.0
      %v365 = vld [vmem:[%s3] sm:$0xff]
      %v366 = vld [vmem:[%s3 + $0x8] sm:$0xff]
      %v367 = vld [vmem:[%s3 + $0x10] sm:$0xff]
      %v368 = vld [vmem:[%s3 + $0x18] sm:$0xff]
      %v369 = vld [vmem:[%s3 + $0x20] sm:$0xff]
      %v370 = vld [vmem:[%s3 + $0x28] sm:$0xff]
      %v371 = vld [vmem:[%s3 + $0x30] sm:$0xff]
      %v372 = vld [vmem:[%s3 + $0x38] sm:$0xff]
      %v373 = vld [vmem:[%s3 + $0x40] sm:$0xff]
      %v374 = vld [vmem:[%s3 + $0x48] sm:$0xff]
      %v375 = vld [vmem:[%s3 + $0x50] sm:$0xff]
      %v376 = vld [vmem:[%s3 + $0x58] sm:$0xff]
      %v377 = vld [vmem:[%s3 + $0x60] sm:$0xff]
      %v378 = vld [vmem:[%s3 + $0x68] sm:$0xff]
      %v379 = vld [vmem:[%s3 + $0x70] sm:$0xff]
      %v380 = vld [vmem:[%s3 + $0x78] sm:$0xff]
      %v381 = vld [vmem:[%s3 + $0x80] sm:$0xff]
      %v382 = vld [vmem:[%s3 + $0x88] sm:$0xff]
      %v383 = vld [vmem:[%s3 + $0x90] sm:$0xff]
      %v384 = vld [vmem:[%s3 + $0x98] sm:$0xff]
      %v385 = vld [vmem:[%s3 + $0xa0] sm:$0xff]
      %v386 = vld [vmem:[%s3 + $0xa8] sm:$0xff]
      %v387 = vld [vmem:[%s3 + $0xb0] sm:$0xff]
      %v388 = vld [vmem:[%s3 + $0xb8] sm:$0xff]
      %v389 = vld [vmem:[%s3 + $0xc0] sm:$0xff]
      %v390 = vld [vmem:[%s3 + $0xc8] sm:$0xff]
      %v391 = vld [vmem:[%s3 + $0xd0] sm:$0xff]
      %v392 = vld [vmem:[%s3 + $0xd8] sm:$0xff]
      %v393 = vld [vmem:[%s3 + $0xe0] sm:$0xff]
      %v394 = vld [vmem:[%s3 + $0xe8] sm:$0xff]
      %v395 = vld [vmem:[%s3 + $0xf0] sm:$0xff]
      %v396 = vld [vmem:[%s3 + $0xf8] sm:$0xff]
      %v397 = vld [vmem:[%s4] sm:$0x1]
      %v399 = vlaneseq
      %v400 = vshrl.u32 %v399, 7
      %v401 = vsub.s32 0, %v400
      %v402 = vrot.slane %v397, %v401
      %404 = vmatprep.subr.mxu0 0.0
      %405 = vmatpush1.msra.mxu0 %v365
      %406 = vmatprep.subr.mxu0 0.0
      %407 = vmatpush1.msra.mxu0 %v366
      %408 = vmatprep.subr.mxu0 0.0
      %409 = vmatpush1.msra.mxu0 %v367
      %410 = vmatprep.subr.mxu0 0.0
      %411 = vmatpush1.msra.mxu0 %v368
      %412 = vmatprep.subr.mxu0 0.0
      %413 = vmatpush1.msra.mxu0 %v369
      %414 = vmatprep.subr.mxu0 0.0
      %415 = vmatpush1.msra.mxu0 %v370
      %416 = vmatprep.subr.mxu0 0.0
      %417 = vmatpush1.msra.mxu0 %v371
      %418 = vmatprep.subr.mxu0 0.0
      %419 = vmatpush1.msra.mxu0 %v372
      %420 = vmatprep.subr.mxu0 0.0
      %421 = vmatpush1.msra.mxu0 %v373
      %422 = vmatprep.subr.mxu0 0.0
      %423 = vmatpush1.msra.mxu0 %v374
      %424 = vmatprep.subr.mxu0 0.0
      %425 = vmatpush1.msra.mxu0 %v375
      %426 = vmatprep.subr.mxu0 0.0
      %427 = vmatpush1.msra.mxu0 %v376
      %428 = vmatprep.subr.mxu0 0.0
      %429 = vmatpush1.msra.mxu0 %v377
      %430 = vmatprep.subr.mxu0 0.0
      %431 = vmatpush1.msra.mxu0 %v378
      %432 = vmatprep.subr.mxu0 0.0
      %433 = vmatpush1.msra.mxu0 %v379
      %434 = vmatprep.subr.mxu0 0.0
      %435 = vmatpush1.msra.mxu0 %v380
      %436 = vmatprep.subr.mxu0 0.0
      %437 = vmatpush1.msra.mxu0 %v381
      %438 = vmatprep.subr.mxu0 0.0
      %439 = vmatpush1.msra.mxu0 %v382
      %440 = vmatprep.subr.mxu0 0.0
      %441 = vmatpush1.msra.mxu0 %v383
      %442 = vmatprep.subr.mxu0 0.0
      %443 = vmatpush1.msra.mxu0 %v384
      %444 = vmatprep.subr.mxu0 0.0
      %445 = vmatpush1.msra.mxu0 %v385
      %446 = vmatprep.subr.mxu0 0.0
      %447 = vmatpush1.msra.mxu0 %v386
      %448 = vmatprep.subr.mxu0 0.0
      %449 = vmatpush1.msra.mxu0 %v387
      %450 = vmatprep.subr.mxu0 0.0
      %451 = vmatpush1.msra.mxu0 %v388
      %452 = vmatprep.subr.mxu0 0.0
      %453 = vmatpush1.msra.mxu0 %v389
      %454 = vmatprep.subr.mxu0 0.0
      %455 = vmatpush1.msra.mxu0 %v390
      %456 = vmatprep.subr.mxu0 0.0
      %457 = vmatpush1.msra.mxu0 %v391
      %458 = vmatprep.subr.mxu0 0.0
      %459 = vmatpush1.msra.mxu0 %v392
      %460 = vmatprep.subr.mxu0 0.0
      %461 = vmatpush1.msra.mxu0 %v393
      %462 = vmatprep.subr.mxu0 0.0
      %463 = vmatpush1.msra.mxu0 %v394
      %464 = vmatprep.subr.mxu0 0.0
      %465 = vmatpush1.msra.mxu0 %v395
      %466 = vmatprep.subr.mxu0 0.0
      %467 = vmatpush1.msra.mxu0 %v396
      %468 = vmatprep.mubr.f32.mxu0 %v364
      %469 = vmatmul.mubr.f32.gmra.mrb[0].mxu0 %v363
      %v470 = vpop.f32.mrb[0].mxu0
      %v471 = vadd.f32 %v402, %v470
      %v472 = vpop.f32.mrb[0].mxu0
      %473 = vdwg.mxu0
      %v474 = vadd.f32 %v247, %v471
      %v475 = vld [vmem:[%s5] sm:$0x1]
      %s476 = scalar_lea.vmem %s5, 1
      %v477 = vld [vmem:[%s476] sm:$0x1]
      %478 = vadd.xlane.f32.xlu0 %v474
      %v479 = vpop.xlane.xlu0 %478
      %v480 = vrcp.pop 128.0
      %v481 = vmul.f32 %v479, %v480
      %v482 = vsub.f32 %v474, %v481
      %v483 = vmul.f32 %v482, %v482
      %484 = vadd.xlane.f32.xlu0 %v483
      %v485 = vpop.xlane.xlu0 %484
      %v486 = vmul.f32 %v485, %v480
      %v487 = vadd.f32 %v486, 1e-05
      %v488 = vrsqrt.pop %v487
      %v489 = vmul.f32 %v482, %v488
      %v491 = vlaneseq
      %v492 = vshrl.u32 %v491, 7
      %v493 = vsub.s32 0, %v492
      %v494 = vrot.slane %v475, %v493
      %v496 = vmul.f32 %v489, %v494
      %v498 = vlaneseq
      %v499 = vshrl.u32 %v498, 7
      %v500 = vsub.s32 0, %v499
      %v501 = vrot.slane %v477, %v500
      %v503 = vadd.f32 %v496, %v501
      %504 = vst [vmem:[%s246] sm:$0xff] %v503
      %p505 = scmp.lt.s32.totalorder %s17, 1
      %s506 = scalar_select %p505, %s17, 1
      %s507 = smul.addr %s506, 8
      %s508 = scalar_lea.vmem %s6, %s507
      // Predicated region
      $region45: #{transformer_decoder_forward.8} parent=43 // pred_check
        %p509 = pneg %p166
      $region46: #{transformer_decoder_forward.8} parent=43 // pred_check_branch
        %511 = sbr.rel (%p509) target = $region48
      $region47: #{transformer_decoder_forward.8} parent=43 // pred_region
        _
      $region48: #{transformer_decoder_forward.8} parent=43 // pred_fallthru
        _
    $region44: #{transformer_decoder_forward.8} parent=5 // pred_fallthru
      _
    %p512 = scmp.le.s32.totalorder 2, %s12
    // Predicated region
    $region49: #{transformer_decoder_forward.8} parent=5 // pred_check
      %p513 = pneg %p512
    $region50: #{transformer_decoder_forward.8} parent=5 // pred_check_branch
      %515 = sbr.rel (%p513) target = $region52
    $region51: #{transformer_decoder_forward.8} parent=5 // pred_region
      %s516 = ssub.s32 %s12, 2
      // Predicated region
      $region53: #{transformer_decoder_forward.8} parent=51 // pred_check
        %p517 = pneg %p172
      $region54: #{transformer_decoder_forward.8} parent=51 // pred_check_branch
        %519 = sbr.rel (%p517) target = $region56
      $region55: #{transformer_decoder_forward.8} parent=51 // pred_region
        %p520 = scmp.lt.s32.totalorder %s18, 1
        %s521 = scalar_select %p520, %s18, 1
        %s522 = smul.addr %s521, 8
        %s523 = scalar_lea.vmem %s6, %s522
      $region56: #{transformer_decoder_forward.8} parent=51 // pred_fallthru
        _
    $region52: #{transformer_decoder_forward.8} parent=5 // pred_fallthru
      _
  $region6: #{transformer_decoder_forward.8} parent=0 // loop_footer
    %s16 = sadd.s32 1, %s12
  $region7: #{transformer_decoder_forward.8} parent=0 // loop_footer_branch
    %11 = sbr.rel target = $region3
  $region8: #{transformer_decoder_forward.8} parent=0 // loop_exit
    _

// kernel: transformer_decoder_forward.11
$region0: #{transformer_decoder_forward.11}
  #allocation0 [shape = 'u32[]', space=smem, size = 0x4, offset = 0x4, fixed_abs, tag = 'smem constant byte address 0x4 - core index']
  #allocation1 [shape = 'u32[144,128]{1,0:T(1,128)}', space=vmem, size = 0x12000, scoped, tag = 'internal scratch']
  %s0 = inlined_call_operand.vmem [shape: f32[2,8,128], index: 0, kind: input, shape index: {}]
  %s1 = inlined_call_operand.vmem [shape: f32[128,256], index: 1, kind: input, shape index: {}]
  %s2 = inlined_call_operand.vmem [shape: f32[1,256], index: 2, kind: input, shape index: {}]
  %s3 = inlined_call_operand.vmem [shape: f32[256,128], index: 3, kind: input, shape index: {}]
  %s4 = inlined_call_operand.vmem [shape: f32[1,128], index: 4, kind: input, shape index: {}]
  %s5 = inlined_call_operand.vmem [shape: f32[2,1,128], index: 5, kind: input, shape index: {}]
  %s6 = inlined_call_operand.hbm [shape: f32[2,8,128], index: 6, kind: output, shape index: {}]
  %s7 = sld [smem:[#allocation0]]
  $region57: #{transformer_decoder_forward.11} parent=0
    _
  %s9 = ssub.s32 1, %s7
  %s10 = scalar_select 0, %s9, %s7
  $region1: #{transformer_decoder_forward.11} parent=0
    #allocation2 [shape = 'u8[8192]{0}', space=vmem, size = 0x2000, scoped, tag = 'output window, operand 0']
    #allocation3 [shape = 's32[2]{0}', space=sflag, size = 0x8, scoped, tag = 'scoped memory for transformer_decoder_forward.11']
    %11 = vsyncpa [#allocation3], 0
    %s12 = scalar_lea.sflag [#allocation3], 1
    %13 = vsyncpa %s12, 0
    loop: start=0, step=1, limit=4
    $region2: #{transformer_decoder_forward.11} parent=1 // loop_pre_header
      _
    $region3: #{transformer_decoder_forward.11} parent=1 // loop_header
      %s15 = sphi 0, %s19
      %p16 = scmp.ge.s32.totalorder %s15, 4
      %s25 = sphi 0, %s27
      %s28 = sphi 0, %s25
      %s29 = sphi 0, %s28
      %s45 = sphi 0, %s29
      %s49 = sphi 0, %s49
      %s51 = sphi 0, %s49
      %s52 = sphi 0, %s51
      %s66 = sphi 0, %s52
      %s70 = sphi 0, %s70
      %s72 = sphi 0, %s70
      %s73 = sphi 0, %s72
      %s87 = sphi 0, %s73
      %s91 = sphi 0, %s91
      %s93 = sphi 0, %s91
      %s94 = sphi 0, %s93
      %s108 = sphi 0, %s94
      %s112 = sphi 0, %s112
      %s114 = sphi 0, %s112
      %s115 = sphi 0, %s114
      %s129 = sphi 0, %s115
      %s133 = sphi 0, %s133
      %s135 = sphi 0, %s133
      %s136 = sphi 0, %s135
      %s150 = sphi 0, %s136
      %s156 = sphi 0, %s158
      %s159 = sphi 0, %s156
      %s160 = sphi 0, %s159
      %s176 = sphi 0, %s160
    $region4: #{transformer_decoder_forward.11} parent=1 // loop_header_branch
      %18 = sbr.rel (%p16) target = $region8
    $region5: #{transformer_decoder_forward.11} parent=1 // loop_body
      %s20 = ssub.s32 %s15, 1
      %s21 = ssub.s32 %s15, 2
      %s22 = sadd.s32 %s15, 1
      %s23 = ssub.s32 %s15, %s22
      %p24 = scmp.eq.s32.totalorder %s23, 0
      %s26 = sadd.s32 %s25, 1
      %s27 = scalar_select %p24, %s25, %s26
      %p30 = pneg %p24
      %p31 = scmp.eq.s32.totalorder %s15, 1
      %p32 = por %p30, %p31
      %p33 = scmp.ne.s32.totalorder %s25, %s28
      %p34 = scmp.eq.s32.totalorder %s15, 0
      %p35 = por %p33, %p34
      %p36 = scmp.ne.s32.totalorder %s25, %s28
      %p37 = scmp.eq.s32.totalorder %s20, 1
      %p38 = por %p36, %p37
      %p39 = scmp.ne.s32.totalorder %s28, %s29
      %p40 = scmp.eq.s32.totalorder %s20, 0
      %p41 = por %p39, %p40
      %p42 = scmp.ne.s32.totalorder %s28, %s29
      %p43 = scmp.eq.s32.totalorder %s21, 1
      %p44 = por %p42, %p43
      %p46 = scmp.ne.s32.totalorder %s29, %s45
      %p47 = scmp.eq.s32.totalorder %s21, 0
      %p48 = por %p46, %p47
      %s50 = sadd.s32 %s49, 1
      %p53 = scmp.eq.s32.totalorder %s15, 1
      %p54 = scmp.ne.s32.totalorder %s49, %s51
      %p55 = scmp.eq.s32.totalorder %s15, 0
      %p56 = por %p54, %p55
      %p57 = scmp.ne.s32.totalorder %s49, %s51
      %p58 = scmp.eq.s32.totalorder %s20, 1
      %p59 = por %p57, %p58
      %p60 = scmp.ne.s32.totalorder %s51, %s52
      %p61 = scmp.eq.s32.totalorder %s20, 0
      %p62 = por %p60, %p61
      %p63 = scmp.ne.s32.totalorder %s51, %s52
      %p64 = scmp.eq.s32.totalorder %s21, 1
      %p65 = por %p63, %p64
      %p67 = scmp.ne.s32.totalorder %s52, %s66
      %p68 = scmp.eq.s32.totalorder %s21, 0
      %p69 = por %p67, %p68
      %s71 = sadd.s32 %s70, 1
      %p74 = scmp.eq.s32.totalorder %s15, 1
      %p75 = scmp.ne.s32.totalorder %s70, %s72
      %p76 = scmp.eq.s32.totalorder %s15, 0
      %p77 = por %p75, %p76
      %p78 = scmp.ne.s32.totalorder %s70, %s72
      %p79 = scmp.eq.s32.totalorder %s20, 1
      %p80 = por %p78, %p79
      %p81 = scmp.ne.s32.totalorder %s72, %s73
      %p82 = scmp.eq.s32.totalorder %s20, 0
      %p83 = por %p81, %p82
      %p84 = scmp.ne.s32.totalorder %s72, %s73
      %p85 = scmp.eq.s32.totalorder %s21, 1
      %p86 = por %p84, %p85
      %p88 = scmp.ne.s32.totalorder %s73, %s87
      %p89 = scmp.eq.s32.totalorder %s21, 0
      %p90 = por %p88, %p89
      %s92 = sadd.s32 %s91, 1
      %p95 = scmp.eq.s32.totalorder %s15, 1
      %p96 = scmp.ne.s32.totalorder %s91, %s93
      %p97 = scmp.eq.s32.totalorder %s15, 0
      %p98 = por %p96, %p97
      %p99 = scmp.ne.s32.totalorder %s91, %s93
      %p100 = scmp.eq.s32.totalorder %s20, 1
      %p101 = por %p99, %p100
      %p102 = scmp.ne.s32.totalorder %s93, %s94
      %p103 = scmp.eq.s32.totalorder %s20, 0
      %p104 = por %p102, %p103
      %p105 = scmp.ne.s32.totalorder %s93, %s94
      %p106 = scmp.eq.s32.totalorder %s21, 1
      %p107 = por %p105, %p106
      %p109 = scmp.ne.s32.totalorder %s94, %s108
      %p110 = scmp.eq.s32.totalorder %s21, 0
      %p111 = por %p109, %p110
      %s113 = sadd.s32 %s112, 1
      %p116 = scmp.eq.s32.totalorder %s15, 1
      %p117 = scmp.ne.s32.totalorder %s112, %s114
      %p118 = scmp.eq.s32.totalorder %s15, 0
      %p119 = por %p117, %p118
      %p120 = scmp.ne.s32.totalorder %s112, %s114
      %p121 = scmp.eq.s32.totalorder %s20, 1
      %p122 = por %p120, %p121
      %p123 = scmp.ne.s32.totalorder %s114, %s115
      %p124 = scmp.eq.s32.totalorder %s20, 0
      %p125 = por %p123, %p124
      %p126 = scmp.ne.s32.totalorder %s114, %s115
      %p127 = scmp.eq.s32.totalorder %s21, 1
      %p128 = por %p126, %p127
      %p130 = scmp.ne.s32.totalorder %s115, %s129
      %p131 = scmp.eq.s32.totalorder %s21, 0
      %p132 = por %p130, %p131
      %s134 = sadd.s32 %s133, 1
      %p137 = scmp.eq.s32.totalorder %s15, 1
      %p138 = scmp.ne.s32.totalorder %s133, %s135
      %p139 = scmp.eq.s32.totalorder %s15, 0
      %p140 = por %p138, %p139
      %p141 = scmp.ne.s32.totalorder %s133, %s135
      %p142 = scmp.eq.s32.totalorder %s20, 1
      %p143 = por %p141, %p142
      %p144 = scmp.ne.s32.totalorder %s135, %s136
      %p145 = scmp.eq.s32.totalorder %s20, 0
      %p146 = por %p144, %p145
      %p147 = scmp.ne.s32.totalorder %s135, %s136
      %p148 = scmp.eq.s32.totalorder %s21, 1
      %p149 = por %p147, %p148
      %p151 = scmp.ne.s32.totalorder %s136, %s150
      %p152 = scmp.eq.s32.totalorder %s21, 0
      %p153 = por %p151, %p152
      %s154 = ssub.s32 %s15, %s22
      %p155 = scmp.eq.s32.totalorder %s154, 0
      %s157 = sadd.s32 %s156, 1
      %s158 = scalar_select %p155, %s156, %s157
      %p161 = pneg %p155
      %p162 = scmp.eq.s32.totalorder %s15, 1
      %p163 = por %p161, %p162
      %p164 = scmp.ne.s32.totalorder %s156, %s159
      %p165 = scmp.eq.s32.totalorder %s15, 0
      %p166 = por %p164, %p165
      %p167 = scmp.ne.s32.totalorder %s156, %s159
      %p168 = scmp.eq.s32.totalorder %s20, 1
      %p169 = por %p167, %p168
      %p170 = scmp.ne.s32.totalorder %s159, %s160
      %p171 = scmp.eq.s32.totalorder %s20, 0
      %p172 = por %p170, %p171
      %p173 = scmp.ne.s32.totalorder %s159, %s160
      %p174 = scmp.eq.s32.totalorder %s21, 1
      %p175 = por %p173, %p174
      %p177 = scmp.ne.s32.totalorder %s160, %s176
      %p178 = scmp.eq.s32.totalorder %s21, 0
      %p179 = por %p177, %p178
      %p180 = scmp.le.s32.totalorder 1, %s15
      %p181 = scmp.lt.s32.totalorder %s15, 3
      %p182 = pnand %p180, %p181
      %p183 = pneg %p182
      // Predicated region
      $region9: #{transformer_decoder_forward.11} parent=5 // pred_check
        _
      $region10: #{transformer_decoder_forward.11} parent=5 // pred_check_branch
        %185 = sbr.rel (%p182) target = $region12
      $region11: #{transformer_decoder_forward.11} parent=5 // pred_region
        %s186 = ssub.s32 %s15, 1
        // Predicated region
        $region13: #{transformer_decoder_forward.11} parent=11 // pred_check
          %p187 = pneg %p62
        $region14: #{transformer_decoder_forward.11} parent=11 // pred_check_branch
          %189 = sbr.rel (%p187) target = $region16
        $region15: #{transformer_decoder_forward.11} parent=11 // pred_region
          _
        $region16: #{transformer_decoder_forward.11} parent=11 // pred_fallthru
          _
        // Predicated region
        $region17: #{transformer_decoder_forward.11} parent=11 // pred_check
          %p190 = pneg %p83
        $region18: #{transformer_decoder_forward.11} parent=11 // pred_check_branch
          %192 = sbr.rel (%p190) target = $region20
        $region19: #{transformer_decoder_forward.11} parent=11 // pred_region
          _
        $region20: #{transformer_decoder_forward.11} parent=11 // pred_fallthru
          _
        // Predicated region
        $region21: #{transformer_decoder_forward.11} parent=11 // pred_check
          %p193 = pneg %p104
        $region22: #{transformer_decoder_forward.11} parent=11 // pred_check_branch
          %195 = sbr.rel (%p193) target = $region24
        $region23: #{transformer_decoder_forward.11} parent=11 // pred_region
          _
        $region24: #{transformer_decoder_forward.11} parent=11 // pred_fallthru
          _
        // Predicated region
        $region25: #{transformer_decoder_forward.11} parent=11 // pred_check
          %p196 = pneg %p125
        $region26: #{transformer_decoder_forward.11} parent=11 // pred_check_branch
          %198 = sbr.rel (%p196) target = $region28
        $region27: #{transformer_decoder_forward.11} parent=11 // pred_region
          _
        $region28: #{transformer_decoder_forward.11} parent=11 // pred_fallthru
          _
        // Predicated region
        $region29: #{transformer_decoder_forward.11} parent=11 // pred_check
          %p199 = pneg %p146
        $region30: #{transformer_decoder_forward.11} parent=11 // pred_check_branch
          %201 = sbr.rel (%p199) target = $region32
        $region31: #{transformer_decoder_forward.11} parent=11 // pred_region
          _
        $region32: #{transformer_decoder_forward.11} parent=11 // pred_fallthru
          _
      $region12: #{transformer_decoder_forward.11} parent=5 // pred_fallthru
        _
      %p202 = scmp.lt.s32.totalorder %s15, 2
      // Predicated region
      $region33: #{transformer_decoder_forward.11} parent=5 // pred_check
        %p203 = pneg %p202
      $region34: #{transformer_decoder_forward.11} parent=5 // pred_check_branch
        %205 = sbr.rel (%p203) target = $region36
      $region35: #{transformer_decoder_forward.11} parent=5 // pred_region
        // Predicated region
        $region37: #{transformer_decoder_forward.11} parent=35 // pred_check
          %p206 = pneg %p35
        $region38: #{transformer_decoder_forward.11} parent=35 // pred_check_branch
          %208 = sbr.rel (%p206) target = $region40
        $region39: #{transformer_decoder_forward.11} parent=35 // pred_region
          %p209 = scmp.lt.s32.totalorder %s15, 1
          %s210 = scalar_select %p209, %s15, 1
          %s211 = smul.addr %s210, 8
          %s212 = scalar_lea.vmem %s0, %s211
        $region40: #{transformer_decoder_forward.11} parent=35 // pred_fallthru
          _
      $region36: #{transformer_decoder_forward.11} parent=5 // pred_fallthru
        _
      %p213 = scmp.le.s32.totalorder 1, %s15
      %p214 = scmp.lt.s32.totalorder %s15, 3
      %p215 = pnand %p213, %p214
      %p216 = pneg %p215
      // Predicated region
      $region41: #{transformer_decoder_forward.11} parent=5 // pred_check
        _
      $region42: #{transformer_decoder_forward.11} parent=5 // pred_check_branch
        %218 = sbr.rel (%p215) target = $region44
      $region43: #{transformer_decoder_forward.11} parent=5 // pred_region
        %s219 = ssub.s32 %s15, 1
        %p220 = scmp.lt.s32.totalorder %s20, 1
        %s221 = scalar_select %p220, %s20, 1
        %s222 = smul.addr %s221, 8
        %s223 = scalar_lea.vmem %s0, %s222
        %p224 = pneg %p41
        %p225 = pneg %p38
        %p226 = pneg %p62
        %p227 = pneg %p59
        %p228 = pneg %p83
        %p229 = pneg %p80
        %p230 = pneg %p104
        %p231 = pneg %p101
        %p232 = pneg %p125
        %p233 = pneg %p122
        %p234 = pneg %p146
        %p235 = pneg %p143
        %p236 = pneg %p172
        %p237 = pneg %p169
        %s238 = sand.u32 %s159, 1
        %s239 = scalar_lea.sflag [#allocation3], %s238
        %s240 = sand.u32 %s159, 1
        %s241 = smul.addr %s240, 8
        %s242 = scalar_lea.vmem [#allocation2], %s241
        %p243 = scmp.lt.s32.totalorder %s20, 1
        %s244 = scalar_select %p243, %s20, 1
        %s245 = smul.addr %s244, 8
        %s246 = scalar_lea.vmem %s0, %s245
        %v247 = vld [vmem:[%s246] sm:$0xff]
        %v248 = vld [vmem:[%s1] sm:$0xff]
        %v249 = vld [vmem:[%s1 + $0x8] sm:$0xff]
        %v250 = vld [vmem:[%s1 + $0x10] sm:$0xff]
        %v251 = vld [vmem:[%s1 + $0x18] sm:$0xff]
        %v252 = vld [vmem:[%s1 + $0x20] sm:$0xff]
        %v253 = vld [vmem:[%s1 + $0x28] sm:$0xff]
        %v254 = vld [vmem:[%s1 + $0x30] sm:$0xff]
        %v255 = vld [vmem:[%s1 + $0x38] sm:$0xff]
        %v256 = vld [vmem:[%s1 + $0x40] sm:$0xff]
        %v257 = vld [vmem:[%s1 + $0x48] sm:$0xff]
        %v258 = vld [vmem:[%s1 + $0x50] sm:$0xff]
        %v259 = vld [vmem:[%s1 + $0x58] sm:$0xff]
        %v260 = vld [vmem:[%s1 + $0x60] sm:$0xff]
        %v261 = vld [vmem:[%s1 + $0x68] sm:$0xff]
        %v262 = vld [vmem:[%s1 + $0x70] sm:$0xff]
        %v263 = vld [vmem:[%s1 + $0x78] sm:$0xff]
        %v264 = vld [vmem:[%s1 + $0x80] sm:$0xff]
        %v265 = vld [vmem:[%s1 + $0x88] sm:$0xff]
        %v266 = vld [vmem:[%s1 + $0x90] sm:$0xff]
        %v267 = vld [vmem:[%s1 + $0x98] sm:$0xff]
        %v268 = vld [vmem:[%s1 + $0xa0] sm:$0xff]
        %v269 = vld [vmem:[%s1 + $0xa8] sm:$0xff]
        %v270 = vld [vmem:[%s1 + $0xb0] sm:$0xff]
        %v271 = vld [vmem:[%s1 + $0xb8] sm:$0xff]
        %v272 = vld [vmem:[%s1 + $0xc0] sm:$0xff]
        %v273 = vld [vmem:[%s1 + $0xc8] sm:$0xff]
        %v274 = vld [vmem:[%s1 + $0xd0] sm:$0xff]
        %v275 = vld [vmem:[%s1 + $0xd8] sm:$0xff]
        %v276 = vld [vmem:[%s1 + $0xe0] sm:$0xff]
        %v277 = vld [vmem:[%s1 + $0xe8] sm:$0xff]
        %v278 = vld [vmem:[%s1 + $0xf0] sm:$0xff]
        %v279 = vld [vmem:[%s1 + $0xf8] sm:$0xff]
        %v280 = vld [vmem:[%s2] sm:$0x3]
        %v282 = vlaneseq
        %v283 = vshrl.u32 %v282, 7
        %v284 = vsub.s32 0, %v283
        %v285 = vrot.slane %v280, %v284
        %v286 = vlaneseq
        %v287 = vshrl.u32 %v286, 7
        %v288 = vsub.s32 1, %v287
        %v289 = vrot.slane %v280, %v288
        %292 = vmatprep.subr.mxu0 %v249
        %293 = vmatpush1.msra.mxu0 %v248
        %294 = vmatprep.subr.mxu0 %v251
        %295 = vmatpush1.msra.mxu0 %v250
        %296 = vmatprep.subr.mxu0 %v253
        %297 = vmatpush1.msra.mxu0 %v252
        %298 = vmatprep.subr.mxu0 %v255
        %299 = vmatpush1.msra.mxu0 %v254
        %300 = vmatprep.subr.mxu0 %v257
        %301 = vmatpush1.msra.mxu0 %v256
        %302 = vmatprep.subr.mxu0 %v259
        %303 = vmatpush1.msra.mxu0 %v258
        %304 = vmatprep.subr.mxu0 %v261
        %305 = vmatpush1.msra.mxu0 %v260
        %306 = vmatprep.subr.mxu0 %v263
        %307 = vmatpush1.msra.mxu0 %v262
        %308 = vmatprep.subr.mxu0 %v265
        %309 = vmatpush1.msra.mxu0 %v264
        %310 = vmatprep.subr.mxu0 %v267
        %311 = vmatpush1.msra.mxu0 %v266
        %312 = vmatprep.subr.mxu0 %v269
        %313 = vmatpush1.msra.mxu0 %v268
        %314 = vmatprep.subr.mxu0 %v271
        %315 = vmatpush1.msra.mxu0 %v270
        %316 = vmatprep.subr.mxu0 %v273
        %317 = vmatpush1.msra.mxu0 %v272
        %318 = vmatprep.subr.mxu0 %v275
        %319 = vmatpush1.msra.mxu0 %v274
        %320 = vmatprep.subr.mxu0 %v277
        %321 = vmatpush1.msra.mxu0 %v276
        %322 = vmatprep.subr.mxu0 %v279
        %323 = vmatpush1.msra.mxu0 %v278
        %324 = vmatprep.subr.mxu0 0.0
        %325 = vmatpush1.msra.mxu0 0.0
        %326 = vmatprep.subr.mxu0 0.0
        %327 = vmatpush1.msra.mxu0 0.0
        %328 = vmatprep.subr.mxu0 0.0
        %329 = vmatpush1.msra.mxu0 0.0
        %330 = vmatprep.subr.mxu0 0.0
        %331 = vmatpush1.msra.mxu0 0.0
        %332 = vmatprep.subr.mxu0 0.0
        %333 = vmatpush1.msra.mxu0 0.0
        %334 = vmatprep.subr.mxu0 0.0
        %335 = vmatpush1.msra.mxu0 0.0
        %336 = vmatprep.subr.mxu0 0.0
        %337 = vmatpush1.msra.mxu0 0.0
        %338 = vmatprep.subr.mxu0 0.0
        %339 = vmatpush1.msra.mxu0 0.0
        %340 = vmatprep.subr.mxu0 0.0
        %341 = vmatpush1.msra.mxu0 0.0
        %342 = vmatprep.subr.mxu0 0.0
        %343 = vmatpush1.msra.mxu0 0.0
        %344 = vmatprep.subr.mxu0 0.0
        %345 = vmatpush1.msra.mxu0 0.0
        %346 = vmatprep.subr.mxu0 0.0
        %347 = vmatpush1.msra.mxu0 0.0
        %348 = vmatprep.subr.mxu0 0.0
        %349 = vmatpush1.msra.mxu0 0.0
        %350 = vmatprep.subr.mxu0 0.0
        %351 = vmatpush1.msra.mxu0 0.0
        %352 = vmatprep.subr.mxu0 0.0
        %353 = vmatpush1.msra.mxu0 0.0
        %354 = vmatprep.subr.mxu0 0.0
        %355 = vmatpush1.msra.mxu0 0.0
        %356 = vmatprep.mubr.f32.mxu0 0.0
        %357 = vmatmul.mubr.f32.gmra.mrb[0].mxu0 %v247
        %v358 = vpop.f32.mrb[0].mxu0
        %v359 = vadd.f32 %v285, %v358
        %v360 = vpop.f32.mrb[0].mxu0
        %v361 = vadd.f32 %v289, %v360
        %362 = vdwg.mxu0
        %v363 = vmax.f32 %v359, 0.0
        %v364 = vmax.f32 %v361, 0.0
        %v365 = vld [vmem:[%s3] sm:$0xff]
        %v366 = vld [vmem:[%s3 + $0x8] sm:$0xff]
        %v367 = vld [vmem:[%s3 + $0x10] sm:$0xff]
        %v368 = vld [vmem:[%s3 + $0x18] sm:$0xff]
        %v369 = vld [vmem:[%s3 + $0x20] sm:$0xff]
        %v370 = vld [vmem:[%s3 + $0x28] sm:$0xff]
        %v371 = vld [vmem:[%s3 + $0x30] sm:$0xff]
        %v372 = vld [vmem:[%s3 + $0x38] sm:$0xff]
        %v373 = vld [vmem:[%s3 + $0x40] sm:$0xff]
        %v374 = vld [vmem:[%s3 + $0x48] sm:$0xff]
        %v375 = vld [vmem:[%s3 + $0x50] sm:$0xff]
        %v376 = vld [vmem:[%s3 + $0x58] sm:$0xff]
        %v377 = vld [vmem:[%s3 + $0x60] sm:$0xff]
        %v378 = vld [vmem:[%s3 + $0x68] sm:$0xff]
        %v379 = vld [vmem:[%s3 + $0x70] sm:$0xff]
        %v380 = vld [vmem:[%s3 + $0x78] sm:$0xff]
        %v381 = vld [vmem:[%s3 + $0x80] sm:$0xff]
        %v382 = vld [vmem:[%s3 + $0x88] sm:$0xff]
        %v383 = vld [vmem:[%s3 + $0x90] sm:$0xff]
        %v384 = vld [vmem:[%s3 + $0x98] sm:$0xff]
        %v385 = vld [vmem:[%s3 + $0xa0] sm:$0xff]
        %v386 = vld [vmem:[%s3 + $0xa8] sm:$0xff]
        %v387 = vld [vmem:[%s3 + $0xb0] sm:$0xff]
        %v388 = vld [vmem:[%s3 + $0xb8] sm:$0xff]
        %v389 = vld [vmem:[%s3 + $0xc0] sm:$0xff]
        %v390 = vld [vmem:[%s3 + $0xc8] sm:$0xff]
        %v391 = vld [vmem:[%s3 + $0xd0] sm:$0xff]
        %v392 = vld [vmem:[%s3 + $0xd8] sm:$0xff]
        %v393 = vld [vmem:[%s3 + $0xe0] sm:$0xff]
        %v394 = vld [vmem:[%s3 + $0xe8] sm:$0xff]
        %v395 = vld [vmem:[%s3 + $0xf0] sm:$0xff]
        %v396 = vld [vmem:[%s3 + $0xf8] sm:$0xff]
        %v397 = vld [vmem:[%s4] sm:$0x1]
        %v399 = vlaneseq
        %v400 = vshrl.u32 %v399, 7
        %v401 = vsub.s32 0, %v400
        %v402 = vrot.slane %v397, %v401
        %404 = vmatprep.subr.mxu0 0.0
        %405 = vmatpush1.msra.mxu0 %v365
        %406 = vmatprep.subr.mxu0 0.0
        %407 = vmatpush1.msra.mxu0 %v366
        %408 = vmatprep.subr.mxu0 0.0
        %409 = vmatpush1.msra.mxu0 %v367
        %410 = vmatprep.subr.mxu0 0.0
        %411 = vmatpush1.msra.mxu0 %v368
        %412 = vmatprep.subr.mxu0 0.0
        %413 = vmatpush1.msra.mxu0 %v369
        %414 = vmatprep.subr.mxu0 0.0
        %415 = vmatpush1.msra.mxu0 %v370
        %416 = vmatprep.subr.mxu0 0.0
        %417 = vmatpush1.msra.mxu0 %v371
        %418 = vmatprep.subr.mxu0 0.0
        %419 = vmatpush1.msra.mxu0 %v372
        %420 = vmatprep.subr.mxu0 0.0
        %421 = vmatpush1.msra.mxu0 %v373
        %422 = vmatprep.subr.mxu0 0.0
        %423 = vmatpush1.msra.mxu0 %v374
        %424 = vmatprep.subr.mxu0 0.0
        %425 = vmatpush1.msra.mxu0 %v375
        %426 = vmatprep.subr.mxu0 0.0
        %427 = vmatpush1.msra.mxu0 %v376
        %428 = vmatprep.subr.mxu0 0.0
        %429 = vmatpush1.msra.mxu0 %v377
        %430 = vmatprep.subr.mxu0 0.0
        %431 = vmatpush1.msra.mxu0 %v378
        %432 = vmatprep.subr.mxu0 0.0
        %433 = vmatpush1.msra.mxu0 %v379
        %434 = vmatprep.subr.mxu0 0.0
        %435 = vmatpush1.msra.mxu0 %v380
        %436 = vmatprep.subr.mxu0 0.0
        %437 = vmatpush1.msra.mxu0 %v381
        %438 = vmatprep.subr.mxu0 0.0
        %439 = vmatpush1.msra.mxu0 %v382
        %440 = vmatprep.subr.mxu0 0.0
        %441 = vmatpush1.msra.mxu0 %v383
        %442 = vmatprep.subr.mxu0 0.0
        %443 = vmatpush1.msra.mxu0 %v384
        %444 = vmatprep.subr.mxu0 0.0
        %445 = vmatpush1.msra.mxu0 %v385
        %446 = vmatprep.subr.mxu0 0.0
        %447 = vmatpush1.msra.mxu0 %v386
        %448 = vmatprep.subr.mxu0 0.0
        %449 = vmatpush1.msra.mxu0 %v387
        %450 = vmatprep.subr.mxu0 0.0
        %451 = vmatpush1.msra.mxu0 %v388
        %452 = vmatprep.subr.mxu0 0.0
        %453 = vmatpush1.msra.mxu0 %v389
        %454 = vmatprep.subr.mxu0 0.0
        %455 = vmatpush1.msra.mxu0 %v390
        %456 = vmatprep.subr.mxu0 0.0
        %457 = vmatpush1.msra.mxu0 %v391
        %458 = vmatprep.subr.mxu0 0.0
        %459 = vmatpush1.msra.mxu0 %v392
        %460 = vmatprep.subr.mxu0 0.0
        %461 = vmatpush1.msra.mxu0 %v393
        %462 = vmatprep.subr.mxu0 0.0
        %463 = vmatpush1.msra.mxu0 %v394
        %464 = vmatprep.subr.mxu0 0.0
        %465 = vmatpush1.msra.mxu0 %v395
        %466 = vmatprep.subr.mxu0 0.0
        %467 = vmatpush1.msra.mxu0 %v396
        %468 = vmatprep.mubr.f32.mxu0 %v364
        %469 = vmatmul.mubr.f32.gmra.mrb[0].mxu0 %v363
        %v470 = vpop.f32.mrb[0].mxu0
        %v471 = vadd.f32 %v402, %v470
        %v472 = vpop.f32.mrb[0].mxu0
        %473 = vdwg.mxu0
        %v474 = vadd.f32 %v247, %v471
        %v475 = vld [vmem:[%s5] sm:$0x1]
        %s476 = scalar_lea.vmem %s5, 1
        %v477 = vld [vmem:[%s476] sm:$0x1]
        %478 = vadd.xlane.f32.xlu0 %v474
        %v479 = vpop.xlane.xlu0 %478
        %v480 = vrcp.pop 128.0
        %v481 = vmul.f32 %v479, %v480
        %v482 = vsub.f32 %v474, %v481
        %v483 = vmul.f32 %v482, %v482
        %484 = vadd.xlane.f32.xlu0 %v483
        %v485 = vpop.xlane.xlu0 %484
        %v486 = vmul.f32 %v485, %v480
        %v487 = vadd.f32 %v486, 1e-05
        %v488 = vrsqrt.pop %v487
        %v489 = vmul.f32 %v482, %v488
        %v491 = vlaneseq
        %v492 = vshrl.u32 %v491, 7
        %v493 = vsub.s32 0, %v492
        %v494 = vrot.slane %v475, %v493
        %v496 = vmul.f32 %v489, %v494
        %v498 = vlaneseq
        %v499 = vshrl.u32 %v498, 7
        %v500 = vsub.s32 0, %v499
        %v501 = vrot.slane %v477, %v500
        %v503 = vadd.f32 %v496, %v501
        %504 = vst [vmem:[%s242] sm:$0xff] %v503
        %s505 = sand.u32 %s159, 1
        %s506 = scalar_lea.sflag [#allocation3], %s505
        %s507 = sand.u32 %s159, 1
        %s508 = smul.addr %s507, 8
        %s509 = scalar_lea.vmem [#allocation2], %s508
        // Predicated region
        $region45: #{transformer_decoder_forward.11} parent=43 // pred_check
          %p510 = pneg %p169
        $region46: #{transformer_decoder_forward.11} parent=43 // pred_check_branch
          %512 = sbr.rel (%p510) target = $region48
        $region47: #{transformer_decoder_forward.11} parent=43 // pred_region
          %s514 = ssub.s32 128, 128
          %515 = vsyncadd %s506, %s514
          %s516 = smul.addr %s20, 128
          %s517 = scalar_lea.hbm %s6, %s516
          %s519 = sshll.u32 %s509, 4
          %s520 = int_to_ptr.vmem [resolvable:$true] %s519
          %522 = dma.vmem_to_hbm [thread:$0]  %s520, 128, %s517, %s506
        $region48: #{transformer_decoder_forward.11} parent=43 // pred_fallthru
          _
      $region44: #{transformer_decoder_forward.11} parent=5 // pred_fallthru
        _
      %p523 = scmp.le.s32.totalorder 2, %s15
      // Predicated region
      $region49: #{transformer_decoder_forward.11} parent=5 // pred_check
        %p524 = pneg %p523
      $region50: #{transformer_decoder_forward.11} parent=5 // pred_check_branch
        %526 = sbr.rel (%p524) target = $region52
      $region51: #{transformer_decoder_forward.11} parent=5 // pred_region
        %s527 = ssub.s32 %s15, 2
        // Predicated region
        $region53: #{transformer_decoder_forward.11} parent=51 // pred_check
          %p528 = pneg %p175
        $region54: #{transformer_decoder_forward.11} parent=51 // pred_check_branch
          %530 = sbr.rel (%p528) target = $region56
        $region55: #{transformer_decoder_forward.11} parent=51 // pred_region
          %s531 = sand.u32 %s160, 1
          %s532 = scalar_lea.sflag [#allocation3], %s531
          %s533 = sand.u32 %s160, 1
          %s534 = smul.addr %s533, 8
          %s535 = scalar_lea.vmem [#allocation2], %s534
          %536 = dma.done %s532, 128
        $region56: #{transformer_decoder_forward.11} parent=51 // pred_fallthru
          _
      $region52: #{transformer_decoder_forward.11} parent=5 // pred_fallthru
        _
    $region6: #{transformer_decoder_forward.11} parent=1 // loop_footer
      %s19 = sadd.s32 1, %s15
    $region7: #{transformer_decoder_forward.11} parent=1 // loop_footer_branch
      %14 = sbr.rel target = $region3
    $region8: #{transformer_decoder_forward.11} parent=1 // loop_exit
      _
    %537 = vsyncpa [#allocation3], 1
    %s538 = scalar_lea.sflag [#allocation3], 1
    %539 = vsyncpa %s538, 1

// kernel: transformer_decoder_forward.7
$region0: #{transformer_decoder_forward.7}
  #allocation0 [shape = 'u32[]', space=smem, size = 0x4, offset = 0x4, fixed_abs, tag = 'smem constant byte address 0x4 - core index']
  #allocation1 [shape = 'u32[144,128]{1,0:T(1,128)}', space=vmem, size = 0x12000, scoped, tag = 'internal scratch']
  %s0 = inlined_call_operand.vmem [shape: f32[2,8,128], index: 0, kind: input, shape index: {}, may-alias: {0,1}]
  %s1 = inlined_call_operand.vmem [shape: f32[2,8,128], index: 1, kind: input, shape index: {}, may-alias: {0,1}]
  %s2 = inlined_call_operand.vmem [shape: f32[4,8,8], index: 2, kind: input, shape index: {}]
  %s3 = inlined_call_operand.vmem [shape: f32[4,128,128], index: 3, kind: input, shape index: {}]
  %s4 = inlined_call_operand.vmem [shape: f32[4,1,128], index: 4, kind: input, shape index: {}]
  %s5 = inlined_call_operand.vmem [shape: f32[2,1,128], index: 5, kind: input, shape index: {}]
  %s6 = inlined_call_operand.vmem [shape: f32[2,8,128], index: 6, kind: output, shape index: {}]
  %s7 = sld [smem:[#allocation0]]
  $region57: #{transformer_decoder_forward.7} parent=0
    _
  %s9 = ssub.s32 1, %s7
  %s10 = scalar_select 0, %s9, %s7
  loop: start=0, step=1, limit=4
  $region2: #{transformer_decoder_forward.7} parent=0 // loop_pre_header
    _
  $region3: #{transformer_decoder_forward.7} parent=0 // loop_header
    %s12 = sphi 0, %s16
    %p13 = scmp.ge.s32.totalorder %s12, 4
    %s22 = sphi 0, %s24
    %s25 = sphi 0, %s22
    %s26 = sphi 0, %s25
    %s42 = sphi 0, %s26
    %s48 = sphi 0, %s50
    %s51 = sphi 0, %s48
    %s52 = sphi 0, %s51
    %s68 = sphi 0, %s52
    %s72 = sphi 0, %s72
    %s74 = sphi 0, %s72
    %s75 = sphi 0, %s74
    %s89 = sphi 0, %s75
    %s93 = sphi 0, %s93
    %s95 = sphi 0, %s93
    %s96 = sphi 0, %s95
    %s110 = sphi 0, %s96
    %s114 = sphi 0, %s114
    %s116 = sphi 0, %s114
    %s117 = sphi 0, %s116
    %s131 = sphi 0, %s117
    %s135 = sphi 0, %s135
    %s137 = sphi 0, %s135
    %s138 = sphi 0, %s137
    %s152 = sphi 0, %s138
    %s158 = sphi 0, %s160
    %s161 = sphi 0, %s158
    %s162 = sphi 0, %s161
    %s178 = sphi 0, %s162
  $region4: #{transformer_decoder_forward.7} parent=0 // loop_header_branch
    %15 = sbr.rel (%p13) target = $region8
  $region5: #{transformer_decoder_forward.7} parent=0 // loop_body
    %s17 = ssub.s32 %s12, 1
    %s18 = ssub.s32 %s12, 2
    %s19 = sadd.s32 %s12, 1
    %s20 = ssub.s32 %s12, %s19
    %p21 = scmp.eq.s32.totalorder %s20, 0
    %s23 = sadd.s32 %s22, 1
    %s24 = scalar_select %p21, %s22, %s23
    %p27 = pneg %p21
    %p28 = scmp.eq.s32.totalorder %s12, 1
    %p29 = por %p27, %p28
    %p30 = scmp.ne.s32.totalorder %s22, %s25
    %p31 = scmp.eq.s32.totalorder %s12, 0
    %p32 = por %p30, %p31
    %p33 = scmp.ne.s32.totalorder %s22, %s25
    %p34 = scmp.eq.s32.totalorder %s17, 1
    %p35 = por %p33, %p34
    %p36 = scmp.ne.s32.totalorder %s25, %s26
    %p37 = scmp.eq.s32.totalorder %s17, 0
    %p38 = por %p36, %p37
    %p39 = scmp.ne.s32.totalorder %s25, %s26
    %p40 = scmp.eq.s32.totalorder %s18, 1
    %p41 = por %p39, %p40
    %p43 = scmp.ne.s32.totalorder %s26, %s42
    %p44 = scmp.eq.s32.totalorder %s18, 0
    %p45 = por %p43, %p44
    %s46 = ssub.s32 %s12, %s19
    %p47 = scmp.eq.s32.totalorder %s46, 0
    %s49 = sadd.s32 %s48, 1
    %s50 = scalar_select %p47, %s48, %s49
    %p53 = pneg %p47
    %p54 = scmp.eq.s32.totalorder %s12, 1
    %p55 = por %p53, %p54
    %p56 = scmp.ne.s32.totalorder %s48, %s51
    %p57 = scmp.eq.s32.totalorder %s12, 0
    %p58 = por %p56, %p57
    %p59 = scmp.ne.s32.totalorder %s48, %s51
    %p60 = scmp.eq.s32.totalorder %s17, 1
    %p61 = por %p59, %p60
    %p62 = scmp.ne.s32.totalorder %s51, %s52
    %p63 = scmp.eq.s32.totalorder %s17, 0
    %p64 = por %p62, %p63
    %p65 = scmp.ne.s32.totalorder %s51, %s52
    %p66 = scmp.eq.s32.totalorder %s18, 1
    %p67 = por %p65, %p66
    %p69 = scmp.ne.s32.totalorder %s52, %s68
    %p70 = scmp.eq.s32.totalorder %s18, 0
    %p71 = por %p69, %p70
    %s73 = sadd.s32 %s72, 1
    %p76 = scmp.eq.s32.totalorder %s12, 1
    %p77 = scmp.ne.s32.totalorder %s72, %s74
    %p78 = scmp.eq.s32.totalorder %s12, 0
    %p79 = por %p77, %p78
    %p80 = scmp.ne.s32.totalorder %s72, %s74
    %p81 = scmp.eq.s32.totalorder %s17, 1
    %p82 = por %p80, %p81
    %p83 = scmp.ne.s32.totalorder %s74, %s75
    %p84 = scmp.eq.s32.totalorder %s17, 0
    %p85 = por %p83, %p84
    %p86 = scmp.ne.s32.totalorder %s74, %s75
    %p87 = scmp.eq.s32.totalorder %s18, 1
    %p88 = por %p86, %p87
    %p90 = scmp.ne.s32.totalorder %s75, %s89
    %p91 = scmp.eq.s32.totalorder %s18, 0
    %p92 = por %p90, %p91
    %s94 = sadd.s32 %s93, 1
    %p97 = scmp.eq.s32.totalorder %s12, 1
    %p98 = scmp.ne.s32.totalorder %s93, %s95
    %p99 = scmp.eq.s32.totalorder %s12, 0
    %p100 = por %p98, %p99
    %p101 = scmp.ne.s32.totalorder %s93, %s95
    %p102 = scmp.eq.s32.totalorder %s17, 1
    %p103 = por %p101, %p102
    %p104 = scmp.ne.s32.totalorder %s95, %s96
    %p105 = scmp.eq.s32.totalorder %s17, 0
    %p106 = por %p104, %p105
    %p107 = scmp.ne.s32.totalorder %s95, %s96
    %p108 = scmp.eq.s32.totalorder %s18, 1
    %p109 = por %p107, %p108
    %p111 = scmp.ne.s32.totalorder %s96, %s110
    %p112 = scmp.eq.s32.totalorder %s18, 0
    %p113 = por %p111, %p112
    %s115 = sadd.s32 %s114, 1
    %p118 = scmp.eq.s32.totalorder %s12, 1
    %p119 = scmp.ne.s32.totalorder %s114, %s116
    %p120 = scmp.eq.s32.totalorder %s12, 0
    %p121 = por %p119, %p120
    %p122 = scmp.ne.s32.totalorder %s114, %s116
    %p123 = scmp.eq.s32.totalorder %s17, 1
    %p124 = por %p122, %p123
    %p125 = scmp.ne.s32.totalorder %s116, %s117
    %p126 = scmp.eq.s32.totalorder %s17, 0
    %p127 = por %p125, %p126
    %p128 = scmp.ne.s32.totalorder %s116, %s117
    %p129 = scmp.eq.s32.totalorder %s18, 1
    %p130 = por %p128, %p129
    %p132 = scmp.ne.s32.totalorder %s117, %s131
    %p133 = scmp.eq.s32.totalorder %s18, 0
    %p134 = por %p132, %p133
    %s136 = sadd.s32 %s135, 1
    %p139 = scmp.eq.s32.totalorder %s12, 1
    %p140 = scmp.ne.s32.totalorder %s135, %s137
    %p141 = scmp.eq.s32.totalorder %s12, 0
    %p142 = por %p140, %p141
    %p143 = scmp.ne.s32.totalorder %s135, %s137
    %p144 = scmp.eq.s32.totalorder %s17, 1
    %p145 = por %p143, %p144
    %p146 = scmp.ne.s32.totalorder %s137, %s138
    %p147 = scmp.eq.s32.totalorder %s17, 0
    %p148 = por %p146, %p147
    %p149 = scmp.ne.s32.totalorder %s137, %s138
    %p150 = scmp.eq.s32.totalorder %s18, 1
    %p151 = por %p149, %p150
    %p153 = scmp.ne.s32.totalorder %s138, %s152
    %p154 = scmp.eq.s32.totalorder %s18, 0
    %p155 = por %p153, %p154
    %s156 = ssub.s32 %s12, %s19
    %p157 = scmp.eq.s32.totalorder %s156, 0
    %s159 = sadd.s32 %s158, 1
    %s160 = scalar_select %p157, %s158, %s159
    %p163 = pneg %p157
    %p164 = scmp.eq.s32.totalorder %s12, 1
    %p165 = por %p163, %p164
    %p166 = scmp.ne.s32.totalorder %s158, %s161
    %p167 = scmp.eq.s32.totalorder %s12, 0
    %p168 = por %p166, %p167
    %p169 = scmp.ne.s32.totalorder %s158, %s161
    %p170 = scmp.eq.s32.totalorder %s17, 1
    %p171 = por %p169, %p170
    %p172 = scmp.ne.s32.totalorder %s161, %s162
    %p173 = scmp.eq.s32.totalorder %s17, 0
    %p174 = por %p172, %p173
    %p175 = scmp.ne.s32.totalorder %s161, %s162
    %p176 = scmp.eq.s32.totalorder %s18, 1
    %p177 = por %p175, %p176
    %p179 = scmp.ne.s32.totalorder %s162, %s178
    %p180 = scmp.eq.s32.totalorder %s18, 0
    %p181 = por %p179, %p180
    %p182 = scmp.le.s32.totalorder 1, %s12
    %p183 = scmp.lt.s32.totalorder %s12, 3
    %p184 = pnand %p182, %p183
    %p185 = pneg %p184
    // Predicated region
    $region9: #{transformer_decoder_forward.7} parent=5 // pred_check
      _
    $region10: #{transformer_decoder_forward.7} parent=5 // pred_check_branch
      %187 = sbr.rel (%p184) target = $region12
    $region11: #{transformer_decoder_forward.7} parent=5 // pred_region
      %s188 = ssub.s32 %s12, 1
      // Predicated region
      $region13: #{transformer_decoder_forward.7} parent=11 // pred_check
        %p189 = pneg %p85
      $region14: #{transformer_decoder_forward.7} parent=11 // pred_check_branch
        %191 = sbr.rel (%p189) target = $region16
      $region15: #{transformer_decoder_forward.7} parent=11 // pred_region
        _
      $region16: #{transformer_decoder_forward.7} parent=11 // pred_fallthru
        _
      // Predicated region
      $region17: #{transformer_decoder_forward.7} parent=11 // pred_check
        %p192 = pneg %p106
      $region18: #{transformer_decoder_forward.7} parent=11 // pred_check_branch
        %194 = sbr.rel (%p192) target = $region20
      $region19: #{transformer_decoder_forward.7} parent=11 // pred_region
        _
      $region20: #{transformer_decoder_forward.7} parent=11 // pred_fallthru
        _
      // Predicated region
      $region21: #{transformer_decoder_forward.7} parent=11 // pred_check
        %p195 = pneg %p127
      $region22: #{transformer_decoder_forward.7} parent=11 // pred_check_branch
        %197 = sbr.rel (%p195) target = $region24
      $region23: #{transformer_decoder_forward.7} parent=11 // pred_region
        _
      $region24: #{transformer_decoder_forward.7} parent=11 // pred_fallthru
        _
      // Predicated region
      $region25: #{transformer_decoder_forward.7} parent=11 // pred_check
        %p198 = pneg %p148
      $region26: #{transformer_decoder_forward.7} parent=11 // pred_check_branch
        %200 = sbr.rel (%p198) target = $region28
      $region27: #{transformer_decoder_forward.7} parent=11 // pred_region
        _
      $region28: #{transformer_decoder_forward.7} parent=11 // pred_fallthru
        _
    $region12: #{transformer_decoder_forward.7} parent=5 // pred_fallthru
      _
    %p201 = scmp.lt.s32.totalorder %s12, 2
    // Predicated region
    $region29: #{transformer_decoder_forward.7} parent=5 // pred_check
      %p202 = pneg %p201
    $region30: #{transformer_decoder_forward.7} parent=5 // pred_check_branch
      %204 = sbr.rel (%p202) target = $region32
    $region31: #{transformer_decoder_forward.7} parent=5 // pred_region
      // Predicated region
      $region33: #{transformer_decoder_forward.7} parent=31 // pred_check
        %p205 = pneg %p32
      $region34: #{transformer_decoder_forward.7} parent=31 // pred_check_branch
        %207 = sbr.rel (%p205) target = $region36
      $region35: #{transformer_decoder_forward.7} parent=31 // pred_region
        %p208 = scmp.lt.s32.totalorder %s12, 1
        %s209 = scalar_select %p208, %s12, 1
        %s210 = smul.addr %s209, 8
        %s211 = scalar_lea.vmem %s0, %s210
      $region36: #{transformer_decoder_forward.7} parent=31 // pred_fallthru
        _
      // Predicated region
      $region37: #{transformer_decoder_forward.7} parent=31 // pred_check
        %p212 = pneg %p58
      $region38: #{transformer_decoder_forward.7} parent=31 // pred_check_branch
        %214 = sbr.rel (%p212) target = $region40
      $region39: #{transformer_decoder_forward.7} parent=31 // pred_region
        %p215 = scmp.lt.s32.totalorder %s12, 1
        %s216 = scalar_select %p215, %s12, 1
        %s217 = smul.addr %s216, 8
        %s218 = scalar_lea.vmem %s1, %s217
      $region40: #{transformer_decoder_forward.7} parent=31 // pred_fallthru
        _
    $region32: #{transformer_decoder_forward.7} parent=5 // pred_fallthru
      _
    %p219 = scmp.le.s32.totalorder 1, %s12
    %p220 = scmp.lt.s32.totalorder %s12, 3
    %p221 = pnand %p219, %p220
    %p222 = pneg %p221
    // Predicated region
    $region41: #{transformer_decoder_forward.7} parent=5 // pred_check
      _
    $region42: #{transformer_decoder_forward.7} parent=5 // pred_check_branch
      %224 = sbr.rel (%p221) target = $region44
    $region43: #{transformer_decoder_forward.7} parent=5 // pred_region
      %s225 = ssub.s32 %s12, 1
      %p226 = scmp.lt.s32.totalorder %s17, 1
      %s227 = scalar_select %p226, %s17, 1
      %s228 = smul.addr %s227, 8
      %s229 = scalar_lea.vmem %s0, %s228
      %p230 = pneg %p38
      %p231 = pneg %p35
      %p232 = scmp.lt.s32.totalorder %s17, 1
      %s233 = scalar_select %p232, %s17, 1
      %s234 = smul.addr %s233, 8
      %s235 = scalar_lea.vmem %s1, %s234
      %p236 = pneg %p64
      %p237 = pneg %p61
      %p238 = pneg %p85
      %p239 = pneg %p82
      %p240 = pneg %p106
      %p241 = pneg %p103
      %p242 = pneg %p127
      %p243 = pneg %p124
      %p244 = pneg %p148
      %p245 = pneg %p145
      %p246 = pneg %p174
      %p247 = pneg %p171
      %p248 = scmp.lt.s32.totalorder %s17, 1
      %s249 = scalar_select %p248, %s17, 1
      %s250 = smul.addr %s249, 8
      %s251 = scalar_lea.vmem %s6, %s250
      %p252 = scmp.lt.s32.totalorder %s17, 1
      %s253 = scalar_select %p252, %s17, 1
      %s254 = smul.addr %s253, 8
      %s255 = scalar_lea.vmem %s0, %s254
      %p256 = scmp.lt.s32.totalorder %s17, 1
      %s257 = scalar_select %p256, %s17, 1
      %s258 = smul.addr %s257, 8
      %s259 = scalar_lea.vmem %s1, %s258
      %p260 = scmp.lt.s32.totalorder %s17, 1
      %s261 = scalar_select %p260, %s17, 1
      %s262 = smul.addr %s261, 8
      %s263 = scalar_lea.vmem %s6, %s262
      %v264 = vld [vmem:[%s255] sm:$0xff]
      %v265 = vld [vmem:[%s259] sm:$0xff]
      %v266 = vld [vmem:[%s3] sm:$0xff]
      %v267 = vld [vmem:[%s3 + $0x8] sm:$0xff]
      %v268 = vld [vmem:[%s3 + $0x10] sm:$0xff]
      %v269 = vld [vmem:[%s3 + $0x18] sm:$0xff]
      %v270 = vld [vmem:[%s3 + $0x20] sm:$0xff]
      %v271 = vld [vmem:[%s3 + $0x28] sm:$0xff]
      %v272 = vld [vmem:[%s3 + $0x30] sm:$0xff]
      %v273 = vld [vmem:[%s3 + $0x38] sm:$0xff]
      %v274 = vld [vmem:[%s3 + $0x40] sm:$0xff]
      %v275 = vld [vmem:[%s3 + $0x48] sm:$0xff]
      %v276 = vld [vmem:[%s3 + $0x50] sm:$0xff]
      %v277 = vld [vmem:[%s3 + $0x58] sm:$0xff]
      %v278 = vld [vmem:[%s3 + $0x60] sm:$0xff]
      %v279 = vld [vmem:[%s3 + $0x68] sm:$0xff]
      %v280 = vld [vmem:[%s3 + $0x70] sm:$0xff]
      %v281 = vld [vmem:[%s3 + $0x78] sm:$0xff]
      %v282 = vld [vmem:[%s4] sm:$0x1]
      %v284 = vlaneseq
      %v285 = vshrl.u32 %v284, 7
      %v286 = vsub.s32 0, %v285
      %v287 = vrot.slane %v282, %v286
      %289 = vmatprep.subr.mxu0 0.0
      %290 = vmatpush1.msra.mxu0 %v266
      %291 = vmatprep.subr.mxu0 0.0
      %292 = vmatpush1.msra.mxu0 %v267
      %293 = vmatprep.subr.mxu0 0.0
      %294 = vmatpush1.msra.mxu0 %v268
      %295 = vmatprep.subr.mxu0 0.0
      %296 = vmatpush1.msra.mxu0 %v269
      %297 = vmatprep.subr.mxu0 0.0
      %298 = vmatpush1.msra.mxu0 %v270
      %299 = vmatprep.subr.mxu0 0.0
      %300 = vmatpush1.msra.mxu0 %v271
      %301 = vmatprep.subr.mxu0 0.0
      %302 = vmatpush1.msra.mxu0 %v272
      %303 = vmatprep.subr.mxu0 0.0
      %304 = vmatpush1.msra.mxu0 %v273
      %305 = vmatprep.subr.mxu0 0.0
      %306 = vmatpush1.msra.mxu0 %v274
      %307 = vmatprep.subr.mxu0 0.0
      %308 = vmatpush1.msra.mxu0 %v275
      %309 = vmatprep.subr.mxu0 0.0
      %310 = vmatpush1.msra.mxu0 %v276
      %311 = vmatprep.subr.mxu0 0.0
      %312 = vmatpush1.msra.mxu0 %v277
      %313 = vmatprep.subr.mxu0 0.0
      %314 = vmatpush1.msra.mxu0 %v278
      %315 = vmatprep.subr.mxu0 0.0
      %316 = vmatpush1.msra.mxu0 %v279
      %317 = vmatprep.subr.mxu0 0.0
      %318 = vmatpush1.msra.mxu0 %v280
      %319 = vmatprep.subr.mxu0 0.0
      %320 = vmatpush1.msra.mxu0 %v281
      %321 = vmatprep.subr.mxu0 0.0
      %322 = vmatpush1.msra.mxu0 0.0
      %323 = vmatprep.subr.mxu0 0.0
      %324 = vmatpush1.msra.mxu0 0.0
      %325 = vmatprep.subr.mxu0 0.0
      %326 = vmatpush1.msra.mxu0 0.0
      %327 = vmatprep.subr.mxu0 0.0
      %328 = vmatpush1.msra.mxu0 0.0
      %329 = vmatprep.subr.mxu0 0.0
      %330 = vmatpush1.msra.mxu0 0.0
      %331 = vmatprep.subr.mxu0 0.0
      %332 = vmatpush1.msra.mxu0 0.0
      %333 = vmatprep.subr.mxu0 0.0
      %334 = vmatpush1.msra.mxu0 0.0
      %335 = vmatprep.subr.mxu0 0.0
      %336 = vmatpush1.msra.mxu0 0.0
      %337 = vmatprep.subr.mxu0 0.0
      %338 = vmatpush1.msra.mxu0 0.0
      %339 = vmatprep.subr.mxu0 0.0
      %340 = vmatpush1.msra.mxu0 0.0
      %341 = vmatprep.subr.mxu0 0.0
      %342 = vmatpush1.msra.mxu0 0.0
      %343 = vmatprep.subr.mxu0 0.0
      %344 = vmatpush1.msra.mxu0 0.0
      %345 = vmatprep.subr.mxu0 0.0
      %346 = vmatpush1.msra.mxu0 0.0
      %347 = vmatprep.subr.mxu0 0.0
      %348 = vmatpush1.msra.mxu0 0.0
      %349 = vmatprep.subr.mxu0 0.0
      %350 = vmatpush1.msra.mxu0 0.0
      %351 = vmatprep.subr.mxu0 0.0
      %352 = vmatpush1.msra.mxu0 0.0
      %353 = vmatprep.mubr.f32.mxu0 0.0
      %354 = vmatmul.mubr.f32.gmra.mrb[0].mxu0 %v264
      %v355 = vpop.f32.mrb[0].mxu0
      %v356 = vadd.f32 %v287, %v355
      %v357 = vpop.f32.mrb[0].mxu0
      %358 = vdwg.mxu0
      %s359 = scalar_lea.vmem %s3, 128
      %v360 = vld [vmem:[%s359] sm:$0xff]
      %v361 = vld [vmem:[%s359 + $0x8] sm:$0xff]
      %v362 = vld [vmem:[%s359 + $0x10] sm:$0xff]
      %v363 = vld [vmem:[%s359 + $0x18] sm:$0xff]
      %v364 = vld [vmem:[%s359 + $0x20] sm:$0xff]
      %v365 = vld [vmem:[%s359 + $0x28] sm:$0xff]
      %v366 = vld [vmem:[%s359 + $0x30] sm:$0xff]
      %v367 = vld [vmem:[%s359 + $0x38] sm:$0xff]
      %v368 = vld [vmem:[%s359 + $0x40] sm:$0xff]
      %v369 = vld [vmem:[%s359 + $0x48] sm:$0xff]
      %v370 = vld [vmem:[%s359 + $0x50] sm:$0xff]
      %v371 = vld [vmem:[%s359 + $0x58] sm:$0xff]
      %v372 = vld [vmem:[%s359 + $0x60] sm:$0xff]
      %v373 = vld [vmem:[%s359 + $0x68] sm:$0xff]
      %v374 = vld [vmem:[%s359 + $0x70] sm:$0xff]
      %v375 = vld [vmem:[%s359 + $0x78] sm:$0xff]
      %s376 = scalar_lea.vmem %s4, 1
      %v377 = vld [vmem:[%s376] sm:$0x1]
      %v379 = vlaneseq
      %v380 = vshrl.u32 %v379, 7
      %v381 = vsub.s32 0, %v380
      %v382 = vrot.slane %v377, %v381
      %384 = vmatprep.subr.mxu0 0.0
      %385 = vmatpush1.msra.mxu0 %v360
      %386 = vmatprep.subr.mxu0 0.0
      %387 = vmatpush1.msra.mxu0 %v361
      %388 = vmatprep.subr.mxu0 0.0
      %389 = vmatpush1.msra.mxu0 %v362
      %390 = vmatprep.subr.mxu0 0.0
      %391 = vmatpush1.msra.mxu0 %v363
      %392 = vmatprep.subr.mxu0 0.0
      %393 = vmatpush1.msra.mxu0 %v364
      %394 = vmatprep.subr.mxu0 0.0
      %395 = vmatpush1.msra.mxu0 %v365
      %396 = vmatprep.subr.mxu0 0.0
      %397 = vmatpush1.msra.mxu0 %v366
      %398 = vmatprep.subr.mxu0 0.0
      %399 = vmatpush1.msra.mxu0 %v367
      %400 = vmatprep.subr.mxu0 0.0
      %401 = vmatpush1.msra.mxu0 %v368
      %402 = vmatprep.subr.mxu0 0.0
      %403 = vmatpush1.msra.mxu0 %v369
      %404 = vmatprep.subr.mxu0 0.0
      %405 = vmatpush1.msra.mxu0 %v370
      %406 = vmatprep.subr.mxu0 0.0
      %407 = vmatpush1.msra.mxu0 %v371
      %408 = vmatprep.subr.mxu0 0.0
      %409 = vmatpush1.msra.mxu0 %v372
      %410 = vmatprep.subr.mxu0 0.0
      %411 = vmatpush1.msra.mxu0 %v373
      %412 = vmatprep.subr.mxu0 0.0
      %413 = vmatpush1.msra.mxu0 %v374
      %414 = vmatprep.subr.mxu0 0.0
      %415 = vmatpush1.msra.mxu0 %v375
      %416 = vmatprep.subr.mxu0 0.0
      %417 = vmatpush1.msra.mxu0 0.0
      %418 = vmatprep.subr.mxu0 0.0
      %419 = vmatpush1.msra.mxu0 0.0
      %420 = vmatprep.subr.mxu0 0.0
      %421 = vmatpush1.msra.mxu0 0.0
      %422 = vmatprep.subr.mxu0 0.0
      %423 = vmatpush1.msra.mxu0 0.0
      %424 = vmatprep.subr.mxu0 0.0
      %425 = vmatpush1.msra.mxu0 0.0
      %426 = vmatprep.subr.mxu0 0.0
      %427 = vmatpush1.msra.mxu0 0.0
      %428 = vmatprep.subr.mxu0 0.0
      %429 = vmatpush1.msra.mxu0 0.0
      %430 = vmatprep.subr.mxu0 0.0
      %431 = vmatpush1.msra.mxu0 0.0
      %432 = vmatprep.subr.mxu0 0.0
      %433 = vmatpush1.msra.mxu0 0.0
      %434 = vmatprep.subr.mxu0 0.0
      %435 = vmatpush1.msra.mxu0 0.0
      %436 = vmatprep.subr.mxu0 0.0
      %437 = vmatpush1.msra.mxu0 0.0
      %438 = vmatprep.subr.mxu0 0.0
      %439 = vmatpush1.msra.mxu0 0.0
      %440 = vmatprep.subr.mxu0 0.0
      %441 = vmatpush1.msra.mxu0 0.0
      %442 = vmatprep.subr.mxu0 0.0
      %443 = vmatpush1.msra.mxu0 0.0
      %444 = vmatprep.subr.mxu0 0.0
      %445 = vmatpush1.msra.mxu0 0.0
      %446 = vmatprep.subr.mxu0 0.0
      %447 = vmatpush1.msra.mxu0 0.0
      %448 = vmatprep.mubr.f32.mxu0 0.0
      %449 = vmatmul.mubr.f32.gmra.mrb[0].mxu0 %v265
      %v450 = vpop.f32.mrb[0].mxu0
      %v451 = vadd.f32 %v382, %v450
      %v452 = vpop.f32.mrb[0].mxu0
      %453 = vdwg.mxu0
      %s454 = scalar_lea.vmem %s3, 256
      %v455 = vld [vmem:[%s454] sm:$0xff]
      %v456 = vld [vmem:[%s454 + $0x8] sm:$0xff]
      %v457 = vld [vmem:[%s454 + $0x10] sm:$0xff]
      %v458 = vld [vmem:[%s454 + $0x18] sm:$0xff]
      %v459 = vld [vmem:[%s454 + $0x20] sm:$0xff]
      %v460 = vld [vmem:[%s454 + $0x28] sm:$0xff]
      %v461 = vld [vmem:[%s454 + $0x30] sm:$0xff]
      %v462 = vld [vmem:[%s454 + $0x38] sm:$0xff]
      %v463 = vld [vmem:[%s454 + $0x40] sm:$0xff]
      %v464 = vld [vmem:[%s454 + $0x48] sm:$0xff]
      %v465 = vld [vmem:[%s454 + $0x50] sm:$0xff]
      %v466 = vld [vmem:[%s454 + $0x58] sm:$0xff]
      %v467 = vld [vmem:[%s454 + $0x60] sm:$0xff]
      %v468 = vld [vmem:[%s454 + $0x68] sm:$0xff]
      %v469 = vld [vmem:[%s454 + $0x70] sm:$0xff]
      %v470 = vld [vmem:[%s454 + $0x78] sm:$0xff]
      %s471 = scalar_lea.vmem %s4, 2
      %v472 = vld [vmem:[%s471] sm:$0x1]
      %v474 = vlaneseq
      %v475 = vshrl.u32 %v474, 7
      %v476 = vsub.s32 0, %v475
      %v477 = vrot.slane %v472, %v476
      %479 = vmatprep.subr.mxu0 0.0
      %480 = vmatpush1.msra.mxu0 %v455
      %481 = vmatprep.subr.mxu0 0.0
      %482 = vmatpush1.msra.mxu0 %v456
      %483 = vmatprep.subr.mxu0 0.0
      %484 = vmatpush1.msra.mxu0 %v457
      %485 = vmatprep.subr.mxu0 0.0
      %486 = vmatpush1.msra.mxu0 %v458
      %487 = vmatprep.subr.mxu0 0.0
      %488 = vmatpush1.msra.mxu0 %v459
      %489 = vmatprep.subr.mxu0 0.0
      %490 = vmatpush1.msra.mxu0 %v460
      %491 = vmatprep.subr.mxu0 0.0
      %492 = vmatpush1.msra.mxu0 %v461
      %493 = vmatprep.subr.mxu0 0.0
      %494 = vmatpush1.msra.mxu0 %v462
      %495 = vmatprep.subr.mxu0 0.0
      %496 = vmatpush1.msra.mxu0 %v463
      %497 = vmatprep.subr.mxu0 0.0
      %498 = vmatpush1.msra.mxu0 %v464
      %499 = vmatprep.subr.mxu0 0.0
      %500 = vmatpush1.msra.mxu0 %v465
      %501 = vmatprep.subr.mxu0 0.0
      %502 = vmatpush1.msra.mxu0 %v466
      %503 = vmatprep.subr.mxu0 0.0
      %504 = vmatpush1.msra.mxu0 %v467
      %505 = vmatprep.subr.mxu0 0.0
      %506 = vmatpush1.msra.mxu0 %v468
      %507 = vmatprep.subr.mxu0 0.0
      %508 = vmatpush1.msra.mxu0 %v469
      %509 = vmatprep.subr.mxu0 0.0
      %510 = vmatpush1.msra.mxu0 %v470
      %511 = vmatprep.subr.mxu0 0.0
      %512 = vmatpush1.msra.mxu0 0.0
      %513 = vmatprep.subr.mxu0 0.0
      %514 = vmatpush1.msra.mxu0 0.0
      %515 = vmatprep.subr.mxu0 0.0
      %516 = vmatpush1.msra.mxu0 0.0
      %517 = vmatprep.subr.mxu0 0.0
      %518 = vmatpush1.msra.mxu0 0.0
      %519 = vmatprep.subr.mxu0 0.0
      %520 = vmatpush1.msra.mxu0 0.0
      %521 = vmatprep.subr.mxu0 0.0
      %522 = vmatpush1.msra.mxu0 0.0
      %523 = vmatprep.subr.mxu0 0.0
      %524 = vmatpush1.msra.mxu0 0.0
      %525 = vmatprep.subr.mxu0 0.0
      %526 = vmatpush1.msra.mxu0 0.0
      %527 = vmatprep.subr.mxu0 0.0
      %528 = vmatpush1.msra.mxu0 0.0
      %529 = vmatprep.subr.mxu0 0.0
      %530 = vmatpush1.msra.mxu0 0.0
      %531 = vmatprep.subr.mxu0 0.0
      %532 = vmatpush1.msra.mxu0 0.0
      %533 = vmatprep.subr.mxu0 0.0
      %534 = vmatpush1.msra.mxu0 0.0
      %535 = vmatprep.subr.mxu0 0.0
      %536 = vmatpush1.msra.mxu0 0.0
      %537 = vmatprep.subr.mxu0 0.0
      %538 = vmatpush1.msra.mxu0 0.0
      %539 = vmatprep.subr.mxu0 0.0
      %540 = vmatpush1.msra.mxu0 0.0
      %541 = vmatprep.subr.mxu0 0.0
      %542 = vmatpush1.msra.mxu0 0.0
      %543 = vmatprep.mubr.f32.mxu0 0.0
      %544 = vmatmul.mubr.f32.gmra.mrb[0].mxu0 %v265
      %v545 = vpop.f32.mrb[0].mxu0
      %v546 = vadd.f32 %v477, %v545
      %v547 = vpop.f32.mrb[0].mxu0
      %548 = vdwg.mxu0
      %vm549 = vcmask 261120
      %v551 = vsel %vm549, %v356, 0
      %v554 = vsel %vm549, %v451, 0
      %556 = vmatprep.subr.mxu0 0.0
      %557 = vmatpush1.xpose.msra.mxu0 %v554
      %558 = vmatprep.subr.mxu0 0.0
      %559 = vmatpush1.xpose.msra.mxu0 0.0
      %560 = vmatprep.subr.mxu0 0.0
      %561 = vmatpush1.xpose.msra.mxu0 0.0
      %562 = vmatprep.subr.mxu0 0.0
      %563 = vmatpush1.xpose.msra.mxu0 0.0
      %564 = vmatprep.subr.mxu0 0.0
      %565 = vmatpush1.xpose.msra.mxu0 0.0
      %566 = vmatprep.subr.mxu0 0.0
      %567 = vmatpush1.xpose.msra.mxu0 0.0
      %568 = vmatprep.subr.mxu0 0.0
      %569 = vmatpush1.xpose.msra.mxu0 0.0
      %570 = vmatprep.subr.mxu0 0.0
      %571 = vmatpush1.xpose.msra.mxu0 0.0
      %572 = vmatprep.subr.mxu0 0.0
      %573 = vmatpush1.xpose.msra.mxu0 0.0
      %574 = vmatprep.subr.mxu0 0.0
      %575 = vmatpush1.xpose.msra.mxu0 0.0
      %576 = vmatprep.subr.mxu0 0.0
      %577 = vmatpush1.xpose.msra.mxu0 0.0
      %578 = vmatprep.subr.mxu0 0.0
      %579 = vmatpush1.xpose.msra.mxu0 0.0
      %580 = vmatprep.subr.mxu0 0.0
      %581 = vmatpush1.xpose.msra.mxu0 0.0
      %582 = vmatprep.subr.mxu0 0.0
      %583 = vmatpush1.xpose.msra.mxu0 0.0
      %584 = vmatprep.subr.mxu0 0.0
      %585 = vmatpush1.xpose.msra.mxu0 0.0
      %586 = vmatprep.subr.mxu0 0.0
      %587 = vmatpush1.xpose.msra.mxu0 0.0
      %588 = vmatprep.subr.mxu0 0.0
      %589 = vmatpush1.xpose.msra.mxu0 0.0
      %590 = vmatprep.subr.mxu0 0.0
      %591 = vmatpush1.xpose.msra.mxu0 0.0
      %592 = vmatprep.subr.mxu0 0.0
      %593 = vmatpush1.xpose.msra.mxu0 0.0
      %594 = vmatprep.subr.mxu0 0.0
      %595 = vmatpush1.xpose.msra.mxu0 0.0
      %596 = vmatprep.subr.mxu0 0.0
      %597 = vmatpush1.xpose.msra.mxu0 0.0
      %598 = vmatprep.subr.mxu0 0.0
      %599 = vmatpush1.xpose.msra.mxu0 0.0
      %600 = vmatprep.subr.mxu0 0.0
      %601 = vmatpush1.xpose.msra.mxu0 0.0
      %602 = vmatprep.subr.mxu0 0.0
      %603 = vmatpush1.xpose.msra.mxu0 0.0
      %604 = vmatprep.subr.mxu0 0.0
      %605 = vmatpush1.xpose.msra.mxu0 0.0
      %606 = vmatprep.subr.mxu0 0.0
      %607 = vmatpush1.xpose.msra.mxu0 0.0
      %608 = vmatprep.subr.mxu0 0.0
      %609 = vmatpush1.xpose.msra.mxu0 0.0
      %610 = vmatprep.subr.mxu0 0.0
      %611 = vmatpush1.xpose.msra.mxu0 0.0
      %612 = vmatprep.subr.mxu0 0.0
      %613 = vmatpush1.xpose.msra.mxu0 0.0
      %614 = vmatprep.subr.mxu0 0.0
      %615 = vmatpush1.xpose.msra.mxu0 0.0
      %616 = vmatprep.subr.mxu0 0.0
      %617 = vmatpush1.xpose.msra.mxu0 0.0
      %618 = vmatprep.subr.mxu0 0.0
      %619 = vmatpush1.xpose.msra.mxu0 0.0
      %620 = vmatprep.mubr.f32.mxu0 0.0
      %621 = vmatmul.mubr.f32.gmra.mrb[0].mxu0 %v551
      %v622 = vpop.f32.mrb[0].mxu0
      %v623 = vadd.f32 0.0, %v622
      %v624 = vpop.f32.mrb[0].mxu0
      %625 = vdwg.mxu0
      %v626 = vmul.f32 %v623, 0.17677669
      %v627 = vld [vmem:[%s2] sm:$0xff]
      %v628 = vadd.f32 %v626, %v627
      %vm629 = vcmask 64512
      %v630 = vsel %vm629, %v628, -inf
      %631 = vmax.xlane.f32.xlu0 %v630
      %v632 = vpop.xlane.xlu0 %631
      %v633 = vsub.f32 %v628, %v632
      %v634 = vmul.f32 %v633, 1.442695
      %v635 = vpow.pop %v634
      %v636 = vsel %vm629, %v635, 0.0
      %637 = vadd.xlane.f32.xlu0 %v636
      %v638 = vpop.xlane.xlu0 %637
      %v639 = vrcp.pop %v638
      %v640 = vmul.f32 %v635, %v639
      %v642 = vsel %vm629, %v640, 0
      %644 = vmatprep.subr.mxu0 0.0
      %645 = vmatpush1.msra.mxu0 %v546
      %646 = vmatprep.subr.mxu0 0.0
      %647 = vmatpush1.msra.mxu0 0.0
      %648 = vmatprep.subr.mxu0 0.0
      %649 = vmatpush1.msra.mxu0 0.0
      %650 = vmatprep.subr.mxu0 0.0
      %651 = vmatpush1.msra.mxu0 0.0
      %652 = vmatprep.subr.mxu0 0.0
      %653 = vmatpush1.msra.mxu0 0.0
      %654 = vmatprep.subr.mxu0 0.0
      %655 = vmatpush1.msra.mxu0 0.0
      %656 = vmatprep.subr.mxu0 0.0
      %657 = vmatpush1.msra.mxu0 0.0
      %658 = vmatprep.subr.mxu0 0.0
      %659 = vmatpush1.msra.mxu0 0.0
      %660 = vmatprep.subr.mxu0 0.0
      %661 = vmatpush1.msra.mxu0 0.0
      %662 = vmatprep.subr.mxu0 0.0
      %663 = vmatpush1.msra.mxu0 0.0
      %664 = vmatprep.subr.mxu0 0.0
      %665 = vmatpush1.msra.mxu0 0.0
      %666 = vmatprep.subr.mxu0 0.0
      %667 = vmatpush1.msra.mxu0 0.0
      %668 = vmatprep.subr.mxu0 0.0
      %669 = vmatpush1.msra.mxu0 0.0
      %670 = vmatprep.subr.mxu0 0.0
      %671 = vmatpush1.msra.mxu0 0.0
      %672 = vmatprep.subr.mxu0 0.0
      %673 = vmatpush1.msra.mxu0 0.0
      %674 = vmatprep.subr.mxu0 0.0
      %675 = vmatpush1.msra.mxu0 0.0
      %676 = vmatprep.subr.mxu0 0.0
      %677 = vmatpush1.msra.mxu0 0.0
      %678 = vmatprep.subr.mxu0 0.0
      %679 = vmatpush1.msra.mxu0 0.0
      %680 = vmatprep.subr.mxu0 0.0
      %681 = vmatpush1.msra.mxu0 0.0
      %682 = vmatprep.subr.mxu0 0.0
      %683 = vmatpush1.msra.mxu0 0.0
      %684 = vmatprep.subr.mxu0 0.0
      %685 = vmatpush1.msra.mxu0 0.0
      %686 = vmatprep.subr.mxu0 0.0
      %687 = vmatpush1.msra.mxu0 0.0
      %688 = vmatprep.subr.mxu0 0.0
      %689 = vmatpush1.msra.mxu0 0.0
      %690 = vmatprep.subr.mxu0 0.0
      %691 = vmatpush1.msra.mxu0 0.0
      %692 = vmatprep.subr.mxu0 0.0
      %693 = vmatpush1.msra.mxu0 0.0
      %694 = vmatprep.subr.mxu0 0.0
      %695 = vmatpush1.msra.mxu0 0.0
      %696 = vmatprep.subr.mxu0 0.0
      %697 = vmatpush1.msra.mxu0 0.0
      %698 = vmatprep.subr.mxu0 0.0
      %699 = vmatpush1.msra.mxu0 0.0
      %700 = vmatprep.subr.mxu0 0.0
      %701 = vmatpush1.msra.mxu0 0.0
      %702 = vmatprep.subr.mxu0 0.0
      %703 = vmatpush1.msra.mxu0 0.0
      %704 = vmatprep.subr.mxu0 0.0
      %705 = vmatpush1.msra.mxu0 0.0
      %706 = vmatprep.subr.mxu0 0.0
      %707 = vmatpush1.msra.mxu0 0.0
      %708 = vmatprep.mubr.f32.mxu0 0.0
      %709 = vmatmul.mubr.f32.gmra.mrb[0].mxu0 %v642
      %v710 = vpop.f32.mrb[0].mxu0
      %v711 = vadd.f32 0.0, %v710
      %v712 = vpop.f32.mrb[0].mxu0
      %713 = vdwg.mxu0
      %714 = vrot.lane.b32.xlu0 %v356, 96
      %v715 = vpop.permute.xlu0 %714
      %716 = vrot.lane.b32.xlu0 %v451, 96
      %v717 = vpop.permute.xlu0 %716
      %v718 = vsel %vm549, %v715, 0
      %v720 = vsel %vm549, %v717, 0
      %722 = vmatprep.subr.mxu0 0.0
      %723 = vmatpush1.xpose.msra.mxu0 %v720
      %724 = vmatprep.subr.mxu0 0.0
      %725 = vmatpush1.xpose.msra.mxu0 0.0
      %726 = vmatprep.subr.mxu0 0.0
      %727 = vmatpush1.xpose.msra.mxu0 0.0
      %728 = vmatprep.subr.mxu0 0.0
      %729 = vmatpush1.xpose.msra.mxu0 0.0
      %730 = vmatprep.subr.mxu0 0.0
      %731 = vmatpush1.xpose.msra.mxu0 0.0
      %732 = vmatprep.subr.mxu0 0.0
      %733 = vmatpush1.xpose.msra.mxu0 0.0
      %734 = vmatprep.subr.mxu0 0.0
      %735 = vmatpush1.xpose.msra.mxu0 0.0
      %736 = vmatprep.subr.mxu0 0.0
      %737 = vmatpush1.xpose.msra.mxu0 0.0
      %738 = vmatprep.subr.mxu0 0.0
      %739 = vmatpush1.xpose.msra.mxu0 0.0
      %740 = vmatprep.subr.mxu0 0.0
      %741 = vmatpush1.xpose.msra.mxu0 0.0
      %742 = vmatprep.subr.mxu0 0.0
      %743 = vmatpush1.xpose.msra.mxu0 0.0
      %744 = vmatprep.subr.mxu0 0.0
      %745 = vmatpush1.xpose.msra.mxu0 0.0
      %746 = vmatprep.subr.mxu0 0.0
      %747 = vmatpush1.xpose.msra.mxu0 0.0
      %748 = vmatprep.subr.mxu0 0.0
      %749 = vmatpush1.xpose.msra.mxu0 0.0
      %750 = vmatprep.subr.mxu0 0.0
      %751 = vmatpush1.xpose.msra.mxu0 0.0
      %752 = vmatprep.subr.mxu0 0.0
      %753 = vmatpush1.xpose.msra.mxu0 0.0
      %754 = vmatprep.subr.mxu0 0.0
      %755 = vmatpush1.xpose.msra.mxu0 0.0
      %756 = vmatprep.subr.mxu0 0.0
      %757 = vmatpush1.xpose.msra.mxu0 0.0
      %758 = vmatprep.subr.mxu0 0.0
      %759 = vmatpush1.xpose.msra.mxu0 0.0
      %760 = vmatprep.subr.mxu0 0.0
      %761 = vmatpush1.xpose.msra.mxu0 0.0
      %762 = vmatprep.subr.mxu0 0.0
      %763 = vmatpush1.xpose.msra.mxu0 0.0
      %764 = vmatprep.subr.mxu0 0.0
      %765 = vmatpush1.xpose.msra.mxu0 0.0
      %766 = vmatprep.subr.mxu0 0.0
      %767 = vmatpush1.xpose.msra.mxu0 0.0
      %768 = vmatprep.subr.mxu0 0.0
      %769 = vmatpush1.xpose.msra.mxu0 0.0
      %770 = vmatprep.subr.mxu0 0.0
      %771 = vmatpush1.xpose.msra.mxu0 0.0
      %772 = vmatprep.subr.mxu0 0.0
      %773 = vmatpush1.xpose.msra.mxu0 0.0
      %774 = vmatprep.subr.mxu0 0.0
      %775 = vmatpush1.xpose.msra.mxu0 0.0
      %776 = vmatprep.subr.mxu0 0.0
      %777 = vmatpush1.xpose.msra.mxu0 0.0
      %778 = vmatprep.subr.mxu0 0.0
      %779 = vmatpush1.xpose.msra.mxu0 0.0
      %780 = vmatprep.subr.mxu0 0.0
      %781 = vmatpush1.xpose.msra.mxu0 0.0
      %782 = vmatprep.subr.mxu0 0.0
      %783 = vmatpush1.xpose.msra.mxu0 0.0
      %784 = vmatprep.subr.mxu0 0.0
      %785 = vmatpush1.xpose.msra.mxu0 0.0
      %786 = vmatprep.mubr.f32.mxu0 0.0
      %787 = vmatmul.mubr.f32.gmra.mrb[0].mxu0 %v718
      %v788 = vpop.f32.mrb[0].mxu0
      %v789 = vadd.f32 0.0, %v788
      %v790 = vpop.f32.mrb[0].mxu0
      %791 = vdwg.mxu0
      %v792 = vmul.f32 %v789, 0.17677669
      %s793 = scalar_lea.vmem %s2, 8
      %v794 = vld [vmem:[%s793] sm:$0xff]
      %v795 = vadd.f32 %v792, %v794
      %v796 = vsel %vm629, %v795, -inf
      %797 = vmax.xlane.f32.xlu0 %v796
      %v798 = vpop.xlane.xlu0 %797
      %v799 = vsub.f32 %v795, %v798
      %v800 = vmul.f32 %v799, 1.442695
      %v801 = vpow.pop %v800
      %v802 = vsel %vm629, %v801, 0.0
      %803 = vadd.xlane.f32.xlu0 %v802
      %v804 = vpop.xlane.xlu0 %803
      %v805 = vrcp.pop %v804
      %v806 = vmul.f32 %v801, %v805
      %808 = vrot.lane.b32.xlu0 %v546, 96
      %v809 = vpop.permute.xlu0 %808
      %v812 = vsel %vm629, %v806, 0
      %814 = vmatprep.subr.mxu0 0.0
      %815 = vmatpush1.msra.mxu0 %v809
      %816 = vmatprep.subr.mxu0 0.0
      %817 = vmatpush1.msra.mxu0 0.0
      %818 = vmatprep.subr.mxu0 0.0
      %819 = vmatpush1.msra.mxu0 0.0
      %820 = vmatprep.subr.mxu0 0.0
      %821 = vmatpush1.msra.mxu0 0.0
      %822 = vmatprep.subr.mxu0 0.0
      %823 = vmatpush1.msra.mxu0 0.0
      %824 = vmatprep.subr.mxu0 0.0
      %825 = vmatpush1.msra.mxu0 0.0
      %826 = vmatprep.subr.mxu0 0.0
      %827 = vmatpush1.msra.mxu0 0.0
      %828 = vmatprep.subr.mxu0 0.0
      %829 = vmatpush1.msra.mxu0 0.0
      %830 = vmatprep.subr.mxu0 0.0
      %831 = vmatpush1.msra.mxu0 0.0
      %832 = vmatprep.subr.mxu0 0.0
      %833 = vmatpush1.msra.mxu0 0.0
      %834 = vmatprep.subr.mxu0 0.0
      %835 = vmatpush1.msra.mxu0 0.0
      %836 = vmatprep.subr.mxu0 0.0
      %837 = vmatpush1.msra.mxu0 0.0
      %838 = vmatprep.subr.mxu0 0.0
      %839 = vmatpush1.msra.mxu0 0.0
      %840 = vmatprep.subr.mxu0 0.0
      %841 = vmatpush1.msra.mxu0 0.0
      %842 = vmatprep.subr.mxu0 0.0
      %843 = vmatpush1.msra.mxu0 0.0
      %844 = vmatprep.subr.mxu0 0.0
      %845 = vmatpush1.msra.mxu0 0.0
      %846 = vmatprep.subr.mxu0 0.0
      %847 = vmatpush1.msra.mxu0 0.0
      %848 = vmatprep.subr.mxu0 0.0
      %849 = vmatpush1.msra.mxu0 0.0
      %850 = vmatprep.subr.mxu0 0.0
      %851 = vmatpush1.msra.mxu0 0.0
      %852 = vmatprep.subr.mxu0 0.0
      %853 = vmatpush1.msra.mxu0 0.0
      %854 = vmatprep.subr.mxu0 0.0
      %855 = vmatpush1.msra.mxu0 0.0
      %856 = vmatprep.subr.mxu0 0.0
      %857 = vmatpush1.msra.mxu0 0.0
      %858 = vmatprep.subr.mxu0 0.0
      %859 = vmatpush1.msra.mxu0 0.0
      %860 = vmatprep.subr.mxu0 0.0
      %861 = vmatpush1.msra.mxu0 0.0
      %862 = vmatprep.subr.mxu0 0.0
      %863 = vmatpush1.msra.mxu0 0.0
      %864 = vmatprep.subr.mxu0 0.0
      %865 = vmatpush1.msra.mxu0 0.0
      %866 = vmatprep.subr.mxu0 0.0
      %867 = vmatpush1.msra.mxu0 0.0
      %868 = vmatprep.subr.mxu0 0.0
      %869 = vmatpush1.msra.mxu0 0.0
      %870 = vmatprep.subr.mxu0 0.0
      %871 = vmatpush1.msra.mxu0 0.0
      %872 = vmatprep.subr.mxu0 0.0
      %873 = vmatpush1.msra.mxu0 0.0
      %874 = vmatprep.subr.mxu0 0.0
      %875 = vmatpush1.msra.mxu0 0.0
      %876 = vmatprep.subr.mxu0 0.0
      %877 = vmatpush1.msra.mxu0 0.0
      %878 = vmatprep.mubr.f32.mxu0 0.0
      %879 = vmatmul.mubr.f32.gmra.mrb[0].mxu0 %v812
      %v880 = vpop.f32.mrb[0].mxu0
      %v881 = vadd.f32 0.0, %v880
      %v882 = vpop.f32.mrb[0].mxu0
      %883 = vdwg.mxu0
      %884 = vrot.lane.b32.xlu0 %v356, 64
      %v885 = vpop.permute.xlu0 %884
      %886 = vrot.lane.b32.xlu0 %v451, 64
      %v887 = vpop.permute.xlu0 %886
      %v888 = vsel %vm549, %v885, 0
      %v890 = vsel %vm549, %v887, 0
      %892 = vmatprep.subr.mxu0 0.0
      %893 = vmatpush1.xpose.msra.mxu0 %v890
      %894 = vmatprep.subr.mxu0 0.0
      %895 = vmatpush1.xpose.msra.mxu0 0.0
      %896 = vmatprep.subr.mxu0 0.0
      %897 = vmatpush1.xpose.msra.mxu0 0.0
      %898 = vmatprep.subr.mxu0 0.0
      %899 = vmatpush1.xpose.msra.mxu0 0.0
      %900 = vmatprep.subr.mxu0 0.0
      %901 = vmatpush1.xpose.msra.mxu0 0.0
      %902 = vmatprep.subr.mxu0 0.0
      %903 = vmatpush1.xpose.msra.mxu0 0.0
      %904 = vmatprep.subr.mxu0 0.0
      %905 = vmatpush1.xpose.msra.mxu0 0.0
      %906 = vmatprep.subr.mxu0 0.0
      %907 = vmatpush1.xpose.msra.mxu0 0.0
      %908 = vmatprep.subr.mxu0 0.0
      %909 = vmatpush1.xpose.msra.mxu0 0.0
      %910 = vmatprep.subr.mxu0 0.0
      %911 = vmatpush1.xpose.msra.mxu0 0.0
      %912 = vmatprep.subr.mxu0 0.0
      %913 = vmatpush1.xpose.msra.mxu0 0.0
      %914 = vmatprep.subr.mxu0 0.0
      %915 = vmatpush1.xpose.msra.mxu0 0.0
      %916 = vmatprep.subr.mxu0 0.0
      %917 = vmatpush1.xpose.msra.mxu0 0.0
      %918 = vmatprep.subr.mxu0 0.0
      %919 = vmatpush1.xpose.msra.mxu0 0.0
      %920 = vmatprep.subr.mxu0 0.0
      %921 = vmatpush1.xpose.msra.mxu0 0.0
      %922 = vmatprep.subr.mxu0 0.0
      %923 = vmatpush1.xpose.msra.mxu0 0.0
      %924 = vmatprep.subr.mxu0 0.0
      %925 = vmatpush1.xpose.msra.mxu0 0.0
      %926 = vmatprep.subr.mxu0 0.0
      %927 = vmatpush1.xpose.msra.mxu0 0.0
      %928 = vmatprep.subr.mxu0 0.0
      %929 = vmatpush1.xpose.msra.mxu0 0.0
      %930 = vmatprep.subr.mxu0 0.0
      %931 = vmatpush1.xpose.msra.mxu0 0.0
      %932 = vmatprep.subr.mxu0 0.0
      %933 = vmatpush1.xpose.msra.mxu0 0.0
      %934 = vmatprep.subr.mxu0 0.0
      %935 = vmatpush1.xpose.msra.mxu0 0.0
      %936 = vmatprep.subr.mxu0 0.0
      %937 = vmatpush1.xpose.msra.mxu0 0.0
      %938 = vmatprep.subr.mxu0 0.0
      %939 = vmatpush1.xpose.msra.mxu0 0.0
      %940 = vmatprep.subr.mxu0 0.0
      %941 = vmatpush1.xpose.msra.mxu0 0.0
      %942 = vmatprep.subr.mxu0 0.0
      %943 = vmatpush1.xpose.msra.mxu0 0.0
      %944 = vmatprep.subr.mxu0 0.0
      %945 = vmatpush1.xpose.msra.mxu0 0.0
      %946 = vmatprep.subr.mxu0 0.0
      %947 = vmatpush1.xpose.msra.mxu0 0.0
      %948 = vmatprep.subr.mxu0 0.0
      %949 = vmatpush1.xpose.msra.mxu0 0.0
      %950 = vmatprep.subr.mxu0 0.0
      %951 = vmatpush1.xpose.msra.mxu0 0.0
      %952 = vmatprep.subr.mxu0 0.0
      %953 = vmatpush1.xpose.msra.mxu0 0.0
      %954 = vmatprep.subr.mxu0 0.0
      %955 = vmatpush1.xpose.msra.mxu0 0.0
      %956 = vmatprep.mubr.f32.mxu0 0.0
      %957 = vmatmul.mubr.f32.gmra.mrb[0].mxu0 %v888
      %v958 = vpop.f32.mrb[0].mxu0
      %v959 = vadd.f32 0.0, %v958
      %v960 = vpop.f32.mrb[0].mxu0
      %961 = vdwg.mxu0
      %v962 = vmul.f32 %v959, 0.17677669
      %s963 = scalar_lea.vmem %s2, 16
      %v964 = vld [vmem:[%s963] sm:$0xff]
      %v965 = vadd.f32 %v962, %v964
      %v966 = vsel %vm629, %v965, -inf
      %967 = vmax.xlane.f32.xlu0 %v966
      %v968 = vpop.xlane.xlu0 %967
      %v969 = vsub.f32 %v965, %v968
      %v970 = vmul.f32 %v969, 1.442695
      %v971 = vpow.pop %v970
      %v972 = vsel %vm629, %v971, 0.0
      %973 = vadd.xlane.f32.xlu0 %v972
      %v974 = vpop.xlane.xlu0 %973
      %v975 = vrcp.pop %v974
      %v976 = vmul.f32 %v971, %v975
      %977 = vrot.lane.b32.xlu0 %v546, 64
      %v978 = vpop.permute.xlu0 %977
      %v981 = vsel %vm629, %v976, 0
      %983 = vmatprep.subr.mxu0 0.0
      %984 = vmatpush1.msra.mxu0 %v978
      %985 = vmatprep.subr.mxu0 0.0
      %986 = vmatpush1.msra.mxu0 0.0
      %987 = vmatprep.subr.mxu0 0.0
      %988 = vmatpush1.msra.mxu0 0.0
      %989 = vmatprep.subr.mxu0 0.0
      %990 = vmatpush1.msra.mxu0 0.0
      %991 = vmatprep.subr.mxu0 0.0
      %992 = vmatpush1.msra.mxu0 0.0
      %993 = vmatprep.subr.mxu0 0.0
      %994 = vmatpush1.msra.mxu0 0.0
      %995 = vmatprep.subr.mxu0 0.0
      %996 = vmatpush1.msra.mxu0 0.0
      %997 = vmatprep.subr.mxu0 0.0
      %998 = vmatpush1.msra.mxu0 0.0
      %999 = vmatprep.subr.mxu0 0.0
      %1000 = vmatpush1.msra.mxu0 0.0
      %1001 = vmatprep.subr.mxu0 0.0
      %1002 = vmatpush1.msra.mxu0 0.0
      %1003 = vmatprep.subr.mxu0 0.0
      %1004 = vmatpush1.msra.mxu0 0.0
      %1005 = vmatprep.subr.mxu0 0.0
      %1006 = vmatpush1.msra.mxu0 0.0
      %1007 = vmatprep.subr.mxu0 0.0
      %1008 = vmatpush1.msra.mxu0 0.0
      %1009 = vmatprep.subr.mxu0 0.0
      %1010 = vmatpush1.msra.mxu0 0.0
      %1011 = vmatprep.subr.mxu0 0.0
      %1012 = vmatpush1.msra.mxu0 0.0
      %1013 = vmatprep.subr.mxu0 0.0
      %1014 = vmatpush1.msra.mxu0 0.0
      %1015 = vmatprep.subr.mxu0 0.0
      %1016 = vmatpush1.msra.mxu0 0.0
      %1017 = vmatprep.subr.mxu0 0.0
      %1018 = vmatpush1.msra.mxu0 0.0
      %1019 = vmatprep.subr.mxu0 0.0
      %1020 = vmatpush1.msra.mxu0 0.0
      %1021 = vmatprep.subr.mxu0 0.0
      %1022 = vmatpush1.msra.mxu0 0.0
      %1023 = vmatprep.subr.mxu0 0.0
      %1024 = vmatpush1.msra.mxu0 0.0
      %1025 = vmatprep.subr.mxu0 0.0
      %1026 = vmatpush1.msra.mxu0 0.0
      %1027 = vmatprep.subr.mxu0 0.0
      %1028 = vmatpush1.msra.mxu0 0.0
      %1029 = vmatprep.subr.mxu0 0.0
      %1030 = vmatpush1.msra.mxu0 0.0
      %1031 = vmatprep.subr.mxu0 0.0
      %1032 = vmatpush1.msra.mxu0 0.0
      %1033 = vmatprep.subr.mxu0 0.0
      %1034 = vmatpush1.msra.mxu0 0.0
      %1035 = vmatprep.subr.mxu0 0.0
      %1036 = vmatpush1.msra.mxu0 0.0
      %1037 = vmatprep.subr.mxu0 0.0
      %1038 = vmatpush1.msra.mxu0 0.0
      %1039 = vmatprep.subr.mxu0 0.0
      %1040 = vmatpush1.msra.mxu0 0.0
      %1041 = vmatprep.subr.mxu0 0.0
      %1042 = vmatpush1.msra.mxu0 0.0
      %1043 = vmatprep.subr.mxu0 0.0
      %1044 = vmatpush1.msra.mxu0 0.0
      %1045 = vmatprep.subr.mxu0 0.0
      %1046 = vmatpush1.msra.mxu0 0.0
      %1047 = vmatprep.mubr.f32.mxu0 0.0
      %1048 = vmatmul.mubr.f32.gmra.mrb[0].mxu0 %v981
      %v1049 = vpop.f32.mrb[0].mxu0
      %v1050 = vadd.f32 0.0, %v1049
      %v1051 = vpop.f32.mrb[0].mxu0
      %1052 = vdwg.mxu0
      %1053 = vrot.lane.b32.xlu0 %v356, 32
      %v1054 = vpop.permute.xlu0 %1053
      %1055 = vrot.lane.b32.xlu0 %v451, 32
      %v1056 = vpop.permute.xlu0 %1055
      %v1057 = vsel %vm549, %v1054, 0
      %v1059 = vsel %vm549, %v1056, 0
      %1061 = vmatprep.subr.mxu0 0.0
      %1062 = vmatpush1.xpose.msra.mxu0 %v1059
      %1063 = vmatprep.subr.mxu0 0.0
      %1064 = vmatpush1.xpose.msra.mxu0 0.0
      %1065 = vmatprep.subr.mxu0 0.0
      %1066 = vmatpush1.xpose.msra.mxu0 0.0
      %1067 = vmatprep.subr.mxu0 0.0
      %1068 = vmatpush1.xpose.msra.mxu0 0.0
      %1069 = vmatprep.subr.mxu0 0.0
      %1070 = vmatpush1.xpose.msra.mxu0 0.0
      %1071 = vmatprep.subr.mxu0 0.0
      %1072 = vmatpush1.xpose.msra.mxu0 0.0
      %1073 = vmatprep.subr.mxu0 0.0
      %1074 = vmatpush1.xpose.msra.mxu0 0.0
      %1075 = vmatprep.subr.mxu0 0.0
      %1076 = vmatpush1.xpose.msra.mxu0 0.0
      %1077 = vmatprep.subr.mxu0 0.0
      %1078 = vmatpush1.xpose.msra.mxu0 0.0
      %1079 = vmatprep.subr.mxu0 0.0
      %1080 = vmatpush1.xpose.msra.mxu0 0.0
      %1081 = vmatprep.subr.mxu0 0.0
      %1082 = vmatpush1.xpose.msra.mxu0 0.0
      %1083 = vmatprep.subr.mxu0 0.0
      %1084 = vmatpush1.xpose.msra.mxu0 0.0
      %1085 = vmatprep.subr.mxu0 0.0
      %1086 = vmatpush1.xpose.msra.mxu0 0.0
      %1087 = vmatprep.subr.mxu0 0.0
      %1088 = vmatpush1.xpose.msra.mxu0 0.0
      %1089 = vmatprep.subr.mxu0 0.0
      %1090 = vmatpush1.xpose.msra.mxu0 0.0
      %1091 = vmatprep.subr.mxu0 0.0
      %1092 = vmatpush1.xpose.msra.mxu0 0.0
      %1093 = vmatprep.subr.mxu0 0.0
      %1094 = vmatpush1.xpose.msra.mxu0 0.0
      %1095 = vmatprep.subr.mxu0 0.0
      %1096 = vmatpush1.xpose.msra.mxu0 0.0
      %1097 = vmatprep.subr.mxu0 0.0
      %1098 = vmatpush1.xpose.msra.mxu0 0.0
      %1099 = vmatprep.subr.mxu0 0.0
      %1100 = vmatpush1.xpose.msra.mxu0 0.0
      %1101 = vmatprep.subr.mxu0 0.0
      %1102 = vmatpush1.xpose.msra.mxu0 0.0
      %1103 = vmatprep.subr.mxu0 0.0
      %1104 = vmatpush1.xpose.msra.mxu0 0.0
      %1105 = vmatprep.subr.mxu0 0.0
      %1106 = vmatpush1.xpose.msra.mxu0 0.0
      %1107 = vmatprep.subr.mxu0 0.0
      %1108 = vmatpush1.xpose.msra.mxu0 0.0
      %1109 = vmatprep.subr.mxu0 0.0
      %1110 = vmatpush1.xpose.msra.mxu0 0.0
      %1111 = vmatprep.subr.mxu0 0.0
      %1112 = vmatpush1.xpose.msra.mxu0 0.0
      %1113 = vmatprep.subr.mxu0 0.0
      %1114 = vmatpush1.xpose.msra.mxu0 0.0
      %1115 = vmatprep.subr.mxu0 0.0
      %1116 = vmatpush1.xpose.msra.mxu0 0.0
      %1117 = vmatprep.subr.mxu0 0.0
      %1118 = vmatpush1.xpose.msra.mxu0 0.0
      %1119 = vmatprep.subr.mxu0 0.0
      %1120 = vmatpush1.xpose.msra.mxu0 0.0
      %1121 = vmatprep.subr.mxu0 0.0
      %1122 = vmatpush1.xpose.msra.mxu0 0.0
      %1123 = vmatprep.subr.mxu0 0.0
      %1124 = vmatpush1.xpose.msra.mxu0 0.0
      %1125 = vmatprep.mubr.f32.mxu0 0.0
      %1126 = vmatmul.mubr.f32.gmra.mrb[0].mxu0 %v1057
      %v1127 = vpop.f32.mrb[0].mxu0
      %v1128 = vadd.f32 0.0, %v1127
      %v1129 = vpop.f32.mrb[0].mxu0
      %1130 = vdwg.mxu0
      %v1131 = vmul.f32 %v1128, 0.17677669
      %s1132 = scalar_lea.vmem %s2, 24
      %v1133 = vld [vmem:[%s1132] sm:$0xff]
      %v1134 = vadd.f32 %v1131, %v1133
      %v1135 = vsel %vm629, %v1134, -inf
      %1136 = vmax.xlane.f32.xlu0 %v1135
      %v1137 = vpop.xlane.xlu0 %1136
      %v1138 = vsub.f32 %v1134, %v1137
      %v1139 = vmul.f32 %v1138, 1.442695
      %v1140 = vpow.pop %v1139
      %v1141 = vsel %vm629, %v1140, 0.0
      %1142 = vadd.xlane.f32.xlu0 %v1141
      %v1143 = vpop.xlane.xlu0 %1142
      %v1144 = vrcp.pop %v1143
      %v1145 = vmul.f32 %v1140, %v1144
      %1146 = vrot.lane.b32.xlu0 %v546, 32
      %v1147 = vpop.permute.xlu0 %1146
      %v1150 = vsel %vm629, %v1145, 0
      %1152 = vmatprep.subr.mxu0 0.0
      %1153 = vmatpush1.msra.mxu0 %v1147
      %1154 = vmatprep.subr.mxu0 0.0
      %1155 = vmatpush1.msra.mxu0 0.0
      %1156 = vmatprep.subr.mxu0 0.0
      %1157 = vmatpush1.msra.mxu0 0.0
      %1158 = vmatprep.subr.mxu0 0.0
      %1159 = vmatpush1.msra.mxu0 0.0
      %1160 = vmatprep.subr.mxu0 0.0
      %1161 = vmatpush1.msra.mxu0 0.0
      %1162 = vmatprep.subr.mxu0 0.0
      %1163 = vmatpush1.msra.mxu0 0.0
      %1164 = vmatprep.subr.mxu0 0.0
      %1165 = vmatpush1.msra.mxu0 0.0
      %1166 = vmatprep.subr.mxu0 0.0
      %1167 = vmatpush1.msra.mxu0 0.0
      %1168 = vmatprep.subr.mxu0 0.0
      %1169 = vmatpush1.msra.mxu0 0.0
      %1170 = vmatprep.subr.mxu0 0.0
      %1171 = vmatpush1.msra.mxu0 0.0
      %1172 = vmatprep.subr.mxu0 0.0
      %1173 = vmatpush1.msra.mxu0 0.0
      %1174 = vmatprep.subr.mxu0 0.0
      %1175 = vmatpush1.msra.mxu0 0.0
      %1176 = vmatprep.subr.mxu0 0.0
      %1177 = vmatpush1.msra.mxu0 0.0
      %1178 = vmatprep.subr.mxu0 0.0
      %1179 = vmatpush1.msra.mxu0 0.0
      %1180 = vmatprep.subr.mxu0 0.0
      %1181 = vmatpush1.msra.mxu0 0.0
      %1182 = vmatprep.subr.mxu0 0.0
      %1183 = vmatpush1.msra.mxu0 0.0
      %1184 = vmatprep.subr.mxu0 0.0
      %1185 = vmatpush1.msra.mxu0 0.0
      %1186 = vmatprep.subr.mxu0 0.0
      %1187 = vmatpush1.msra.mxu0 0.0
      %1188 = vmatprep.subr.mxu0 0.0
      %1189 = vmatpush1.msra.mxu0 0.0
      %1190 = vmatprep.subr.mxu0 0.0
      %1191 = vmatpush1.msra.mxu0 0.0
      %1192 = vmatprep.subr.mxu0 0.0
      %1193 = vmatpush1.msra.mxu0 0.0
      %1194 = vmatprep.subr.mxu0 0.0
      %1195 = vmatpush1.msra.mxu0 0.0
      %1196 = vmatprep.subr.mxu0 0.0
      %1197 = vmatpush1.msra.mxu0 0.0
      %1198 = vmatprep.subr.mxu0 0.0
      %1199 = vmatpush1.msra.mxu0 0.0
      %1200 = vmatprep.subr.mxu0 0.0
      %1201 = vmatpush1.msra.mxu0 0.0
      %1202 = vmatprep.subr.mxu0 0.0
      %1203 = vmatpush1.msra.mxu0 0.0
      %1204 = vmatprep.subr.mxu0 0.0
      %1205 = vmatpush1.msra.mxu0 0.0
      %1206 = vmatprep.subr.mxu0 0.0
      %1207 = vmatpush1.msra.mxu0 0.0
      %1208 = vmatprep.subr.mxu0 0.0
      %1209 = vmatpush1.msra.mxu0 0.0
      %1210 = vmatprep.subr.mxu0 0.0
      %1211 = vmatpush1.msra.mxu0 0.0
      %1212 = vmatprep.subr.mxu0 0.0
      %1213 = vmatpush1.msra.mxu0 0.0
      %1214 = vmatprep.subr.mxu0 0.0
      %1215 = vmatpush1.msra.mxu0 0.0
      %1216 = vmatprep.mubr.f32.mxu0 0.0
      %1217 = vmatmul.mubr.f32.gmra.mrb[0].mxu0 %v1150
      %v1218 = vpop.f32.mrb[0].mxu0
      %v1219 = vadd.f32 0.0, %v1218
      %v1220 = vpop.f32.mrb[0].mxu0
      %1221 = vdwg.mxu0
      %1223 = vrot.lane.b32.xlu0 %v881, 32
      %v1224 = vpop.permute.xlu0 %1223
      %1227 = vrot.lane.b32.xlu0 %v1050, 64
      %v1228 = vpop.permute.xlu0 %1227
      %1231 = vrot.lane.b32.xlu0 %v1219, 96
      %v1232 = vpop.permute.xlu0 %1231
      %v1234 = vsel %vm549, %v711, %v1224
      %vm1235 = vcmask 523264
      %v1236 = vsel %vm1235, %v1234, %v1228
      %vm1237 = vcmask 785408
      %v1238 = vsel %vm1237, %v1236, %v1232
      %s1239 = scalar_lea.vmem %s3, 384
      %v1240 = vld [vmem:[%s1239] sm:$0xff]
      %v1241 = vld [vmem:[%s1239 + $0x8] sm:$0xff]
      %v1242 = vld [vmem:[%s1239 + $0x10] sm:$0xff]
      %v1243 = vld [vmem:[%s1239 + $0x18] sm:$0xff]
      %v1244 = vld [vmem:[%s1239 + $0x20] sm:$0xff]
      %v1245 = vld [vmem:[%s1239 + $0x28] sm:$0xff]
      %v1246 = vld [vmem:[%s1239 + $0x30] sm:$0xff]
      %v1247 = vld [vmem:[%s1239 + $0x38] sm:$0xff]
      %v1248 = vld [vmem:[%s1239 + $0x40] sm:$0xff]
      %v1249 = vld [vmem:[%s1239 + $0x48] sm:$0xff]
      %v1250 = vld [vmem:[%s1239 + $0x50] sm:$0xff]
      %v1251 = vld [vmem:[%s1239 + $0x58] sm:$0xff]
      %v1252 = vld [vmem:[%s1239 + $0x60] sm:$0xff]
      %v1253 = vld [vmem:[%s1239 + $0x68] sm:$0xff]
      %v1254 = vld [vmem:[%s1239 + $0x70] sm:$0xff]
      %v1255 = vld [vmem:[%s1239 + $0x78] sm:$0xff]
      %s1256 = scalar_lea.vmem %s4, 3
      %v1257 = vld [vmem:[%s1256] sm:$0x1]
      %v1259 = vlaneseq
      %v1260 = vshrl.u32 %v1259, 7
      %v1261 = vsub.s32 0, %v1260
      %v1262 = vrot.slane %v1257, %v1261
      %1264 = vmatprep.subr.mxu0 0.0
      %1265 = vmatpush1.msra.mxu0 %v1240
      %1266 = vmatprep.subr.mxu0 0.0
      %1267 = vmatpush1.msra.mxu0 %v1241
      %1268 = vmatprep.subr.mxu0 0.0
      %1269 = vmatpush1.msra.mxu0 %v1242
      %1270 = vmatprep.subr.mxu0 0.0
      %1271 = vmatpush1.msra.mxu0 %v1243
      %1272 = vmatprep.subr.mxu0 0.0
      %1273 = vmatpush1.msra.mxu0 %v1244
      %1274 = vmatprep.subr.mxu0 0.0
      %1275 = vmatpush1.msra.mxu0 %v1245
      %1276 = vmatprep.subr.mxu0 0.0
      %1277 = vmatpush1.msra.mxu0 %v1246
      %1278 = vmatprep.subr.mxu0 0.0
      %1279 = vmatpush1.msra.mxu0 %v1247
      %1280 = vmatprep.subr.mxu0 0.0
      %1281 = vmatpush1.msra.mxu0 %v1248
      %1282 = vmatprep.subr.mxu0 0.0
      %1283 = vmatpush1.msra.mxu0 %v1249
      %1284 = vmatprep.subr.mxu0 0.0
      %1285 = vmatpush1.msra.mxu0 %v1250
      %1286 = vmatprep.subr.mxu0 0.0
      %1287 = vmatpush1.msra.mxu0 %v1251
      %1288 = vmatprep.subr.mxu0 0.0
      %1289 = vmatpush1.msra.mxu0 %v1252
      %1290 = vmatprep.subr.mxu0 0.0
      %1291 = vmatpush1.msra.mxu0 %v1253
      %1292 = vmatprep.subr.mxu0 0.0
      %1293 = vmatpush1.msra.mxu0 %v1254
      %1294 = vmatprep.subr.mxu0 0.0
      %1295 = vmatpush1.msra.mxu0 %v1255
      %1296 = vmatprep.subr.mxu0 0.0
      %1297 = vmatpush1.msra.mxu0 0.0
      %1298 = vmatprep.subr.mxu0 0.0
      %1299 = vmatpush1.msra.mxu0 0.0
      %1300 = vmatprep.subr.mxu0 0.0
      %1301 = vmatpush1.msra.mxu0 0.0
      %1302 = vmatprep.subr.mxu0 0.0
      %1303 = vmatpush1.msra.mxu0 0.0
      %1304 = vmatprep.subr.mxu0 0.0
      %1305 = vmatpush1.msra.mxu0 0.0
      %1306 = vmatprep.subr.mxu0 0.0
      %1307 = vmatpush1.msra.mxu0 0.0
      %1308 = vmatprep.subr.mxu0 0.0
      %1309 = vmatpush1.msra.mxu0 0.0
      %1310 = vmatprep.subr.mxu0 0.0
      %1311 = vmatpush1.msra.mxu0 0.0
      %1312 = vmatprep.subr.mxu0 0.0
      %1313 = vmatpush1.msra.mxu0 0.0
      %1314 = vmatprep.subr.mxu0 0.0
      %1315 = vmatpush1.msra.mxu0 0.0
      %1316 = vmatprep.subr.mxu0 0.0
      %1317 = vmatpush1.msra.mxu0 0.0
      %1318 = vmatprep.subr.mxu0 0.0
      %1319 = vmatpush1.msra.mxu0 0.0
      %1320 = vmatprep.subr.mxu0 0.0
      %1321 = vmatpush1.msra.mxu0 0.0
      %1322 = vmatprep.subr.mxu0 0.0
      %1323 = vmatpush1.msra.mxu0 0.0
      %1324 = vmatprep.subr.mxu0 0.0
      %1325 = vmatpush1.msra.mxu0 0.0
      %1326 = vmatprep.subr.mxu0 0.0
      %1327 = vmatpush1.msra.mxu0 0.0
      %1328 = vmatprep.mubr.f32.mxu0 0.0
      %1329 = vmatmul.mubr.f32.gmra.mrb[0].mxu0 %v1238
      %v1330 = vpop.f32.mrb[0].mxu0
      %v1331 = vadd.f32 %v1262, %v1330
      %v1332 = vpop.f32.mrb[0].mxu0
      %1333 = vdwg.mxu0
      %v1334 = vadd.f32 %v264, %v1331
      %v1335 = vld [vmem:[%s5] sm:$0x1]
      %s1336 = scalar_lea.vmem %s5, 1
      %v1337 = vld [vmem:[%s1336] sm:$0x1]
      %1338 = vadd.xlane.f32.xlu0 %v1334
      %v1339 = vpop.xlane.xlu0 %1338
      %v1340 = vrcp.pop 128.0
      %v1341 = vmul.f32 %v1339, %v1340
      %v1342 = vsub.f32 %v1334, %v1341
      %v1343 = vmul.f32 %v1342, %v1342
      %1344 = vadd.xlane.f32.xlu0 %v1343
      %v1345 = vpop.xlane.xlu0 %1344
      %v1346 = vmul.f32 %v1345, %v1340
      %v1347 = vadd.f32 %v1346, 1e-05
      %v1348 = vrsqrt.pop %v1347
      %v1349 = vmul.f32 %v1342, %v1348
      %v1351 = vlaneseq
      %v1352 = vshrl.u32 %v1351, 7
      %v1353 = vsub.s32 0, %v1352
      %v1354 = vrot.slane %v1335, %v1353
      %v1356 = vmul.f32 %v1349, %v1354
      %v1358 = vlaneseq
      %v1359 = vshrl.u32 %v1358, 7
      %v1360 = vsub.s32 0, %v1359
      %v1361 = vrot.slane %v1337, %v1360
      %v1363 = vadd.f32 %v1356, %v1361
      %1364 = vst [vmem:[%s263] sm:$0xff] %v1363
      %p1365 = scmp.lt.s32.totalorder %s17, 1
      %s1366 = scalar_select %p1365, %s17, 1
      %s1367 = smul.addr %s1366, 8
      %s1368 = scalar_lea.vmem %s6, %s1367
      // Predicated region
      $region45: #{transformer_decoder_forward.7} parent=43 // pred_check
        %p1369 = pneg %p171
      $region46: #{transformer_decoder_forward.7} parent=43 // pred_check_branch
        %1371 = sbr.rel (%p1369) target = $region48
      $region47: #{transformer_decoder_forward.7} parent=43 // pred_region
        _
      $region48: #{transformer_decoder_forward.7} parent=43 // pred_fallthru
        _
    $region44: #{transformer_decoder_forward.7} parent=5 // pred_fallthru
      _
    %p1372 = scmp.le.s32.totalorder 2, %s12
    // Predicated region
    $region49: #{transformer_decoder_forward.7} parent=5 // pred_check
      %p1373 = pneg %p1372
    $region50: #{transformer_decoder_forward.7} parent=5 // pred_check_branch
      %1375 = sbr.rel (%p1373) target = $region52
    $region51: #{transformer_decoder_forward.7} parent=5 // pred_region
      %s1376 = ssub.s32 %s12, 2
      // Predicated region
      $region53: #{transformer_decoder_forward.7} parent=51 // pred_check
        %p1377 = pneg %p177
      $region54: #{transformer_decoder_forward.7} parent=51 // pred_check_branch
        %1379 = sbr.rel (%p1377) target = $region56
      $region55: #{transformer_decoder_forward.7} parent=51 // pred_region
        %p1380 = scmp.lt.s32.totalorder %s18, 1
        %s1381 = scalar_select %p1380, %s18, 1
        %s1382 = smul.addr %s1381, 8
        %s1383 = scalar_lea.vmem %s6, %s1382
      $region56: #{transformer_decoder_forward.7} parent=51 // pred_fallthru
        _
    $region52: #{transformer_decoder_forward.7} parent=5 // pred_fallthru
      _
  $region6: #{transformer_decoder_forward.7} parent=0 // loop_footer
    %s16 = sadd.s32 1, %s12
  $region7: #{transformer_decoder_forward.7} parent=0 // loop_footer_branch
    %11 = sbr.rel target = $region3
  $region8: #{transformer_decoder_forward.7} parent=0 // loop_exit
    _

// kernel: transformer_decoder_forward.6
$region0: #{transformer_decoder_forward.6}
  #allocation0 [shape = 'u32[]', space=smem, size = 0x4, offset = 0x4, fixed_abs, tag = 'smem constant byte address 0x4 - core index']
  #allocation1 [shape = 'u32[144,128]{1,0:T(1,128)}', space=vmem, size = 0x12000, scoped, tag = 'internal scratch']
  %s0 = inlined_call_operand.hbm [shape: f32[2,8,128], index: 0, kind: input, shape index: {}, may-alias: {0,2}]
  %s1 = inlined_call_operand.vmem [shape: f32[1,8,128], index: 1, kind: input, shape index: {}]
  %s2 = inlined_call_operand.hbm [shape: f32[2,8,128], index: 2, kind: input, shape index: {}, may-alias: {0,2}]
  %s3 = inlined_call_operand.vmem [shape: f32[4,8,8], index: 3, kind: input, shape index: {}]
  %s4 = inlined_call_operand.hbm [shape: f32[4,128,128], index: 4, kind: input, shape index: {}]
  %s5 = inlined_call_operand.vmem [shape: f32[4,1,128], index: 5, kind: input, shape index: {}]
  %s6 = inlined_call_operand.vmem [shape: f32[2,1,128], index: 6, kind: input, shape index: {}]
  %s7 = inlined_call_operand.vmem [shape: f32[2,8,128], index: 7, kind: output, shape index: {}]
  %s8 = sld [smem:[#allocation0]]
  $region73: #{transformer_decoder_forward.6} parent=0
    _
  %s10 = ssub.s32 1, %s8
  %s11 = scalar_select 0, %s10, %s8
  $region1: #{transformer_decoder_forward.6} parent=0
    #allocation2 [shape = 'u8[8192]{0}', space=vmem, size = 0x2000, scoped, tag = 'input window, operand 0']
    #allocation3 [shape = 's32[2]{0}', space=sflag, size = 0x8, scoped, tag = 'scoped memory for transformer_decoder_forward.6']
    #allocation4 [shape = 'u8[8192]{0}', space=vmem, size = 0x2000, scoped, tag = 'input window, operand 2']
    #allocation5 [shape = 's32[2]{0}', space=sflag, size = 0x8, scoped, tag = 'scoped memory for transformer_decoder_forward.6']
    #allocation6 [shape = 'u8[262144]{0}', space=vmem, size = 0x40000, scoped, tag = 'input window, operand 4, single buffered']
    %12 = vsyncpa [#allocation3], 0
    %s13 = scalar_lea.sflag [#allocation3], 1
    %14 = vsyncpa %s13, 0
    %15 = vsyncpa [#allocation5], 0
    %s16 = scalar_lea.sflag [#allocation5], 1
    %17 = vsyncpa %s16, 0
    loop: start=0, step=1, limit=4
    $region2: #{transformer_decoder_forward.6} parent=1 // loop_pre_header
      _
    $region3: #{transformer_decoder_forward.6} parent=1 // loop_header
      %s19 = sphi 0, %s23
      %p20 = scmp.ge.s32.totalorder %s19, 4
      %s29 = sphi 0, %s31
      %s32 = sphi 0, %s29
      %s33 = sphi 0, %s32
      %s49 = sphi 0, %s33
      %s53 = sphi 0, %s53
      %s55 = sphi 0, %s53
      %s56 = sphi 0, %s55
      %s70 = sphi 0, %s56
      %s76 = sphi 0, %s78
      %s79 = sphi 0, %s76
      %s80 = sphi 0, %s79
      %s96 = sphi 0, %s80
      %s100 = sphi 0, %s100
      %s102 = sphi 0, %s100
      %s103 = sphi 0, %s102
      %s117 = sphi 0, %s103
      %s121 = sphi 0, %s121
      %s123 = sphi 0, %s121
      %s124 = sphi 0, %s123
      %s138 = sphi 0, %s124
      %s142 = sphi 0, %s142
      %s144 = sphi 0, %s142
      %s145 = sphi 0, %s144
      %s159 = sphi 0, %s145
      %s163 = sphi 0, %s163
      %s165 = sphi 0, %s163
      %s166 = sphi 0, %s165
      %s180 = sphi 0, %s166
      %s186 = sphi 0, %s188
      %s189 = sphi 0, %s186
      %s190 = sphi 0, %s189
      %s206 = sphi 0, %s190
    $region4: #{transformer_decoder_forward.6} parent=1 // loop_header_branch
      %22 = sbr.rel (%p20) target = $region8
    $region5: #{transformer_decoder_forward.6} parent=1 // loop_body
      %s24 = ssub.s32 %s19, 1
      %s25 = ssub.s32 %s19, 2
      %s26 = sadd.s32 %s19, 1
      %s27 = ssub.s32 %s19, %s26
      %p28 = scmp.eq.s32.totalorder %s27, 0
      %s30 = sadd.s32 %s29, 1
      %s31 = scalar_select %p28, %s29, %s30
      %p34 = pneg %p28
      %p35 = scmp.eq.s32.totalorder %s19, 1
      %p36 = por %p34, %p35
      %p37 = scmp.ne.s32.totalorder %s29, %s32
      %p38 = scmp.eq.s32.totalorder %s19, 0
      %p39 = por %p37, %p38
      %p40 = scmp.ne.s32.totalorder %s29, %s32
      %p41 = scmp.eq.s32.totalorder %s24, 1
      %p42 = por %p40, %p41
      %p43 = scmp.ne.s32.totalorder %s32, %s33
      %p44 = scmp.eq.s32.totalorder %s24, 0
      %p45 = por %p43, %p44
      %p46 = scmp.ne.s32.totalorder %s32, %s33
      %p47 = scmp.eq.s32.totalorder %s25, 1
      %p48 = por %p46, %p47
      %p50 = scmp.ne.s32.totalorder %s33, %s49
      %p51 = scmp.eq.s32.totalorder %s25, 0
      %p52 = por %p50, %p51
      %s54 = sadd.s32 %s53, 1
      %p57 = scmp.eq.s32.totalorder %s19, 1
      %p58 = scmp.ne.s32.totalorder %s53, %s55
      %p59 = scmp.eq.s32.totalorder %s19, 0
      %p60 = por %p58, %p59
      %p61 = scmp.ne.s32.totalorder %s53, %s55
      %p62 = scmp.eq.s32.totalorder %s24, 1
      %p63 = por %p61, %p62
      %p64 = scmp.ne.s32.totalorder %s55, %s56
      %p65 = scmp.eq.s32.totalorder %s24, 0
      %p66 = por %p64, %p65
      %p67 = scmp.ne.s32.totalorder %s55, %s56
      %p68 = scmp.eq.s32.totalorder %s25, 1
      %p69 = por %p67, %p68
      %p71 = scmp.ne.s32.totalorder %s56, %s70
      %p72 = scmp.eq.s32.totalorder %s25, 0
      %p73 = por %p71, %p72
      %s74 = ssub.s32 %s19, %s26
      %p75 = scmp.eq.s32.totalorder %s74, 0
      %s77 = sadd.s32 %s76, 1
      %s78 = scalar_select %p75, %s76, %s77
      %p81 = pneg %p75
      %p82 = scmp.eq.s32.totalorder %s19, 1
      %p83 = por %p81, %p82
      %p84 = scmp.ne.s32.totalorder %s76, %s79
      %p85 = scmp.eq.s32.totalorder %s19, 0
      %p86 = por %p84, %p85
      %p87 = scmp.ne.s32.totalorder %s76, %s79
      %p88 = scmp.eq.s32.totalorder %s24, 1
      %p89 = por %p87, %p88
      %p90 = scmp.ne.s32.totalorder %s79, %s80
      %p91 = scmp.eq.s32.totalorder %s24, 0
      %p92 = por %p90, %p91
      %p93 = scmp.ne.s32.totalorder %s79, %s80
      %p94 = scmp.eq.s32.totalorder %s25, 1
      %p95 = por %p93, %p94
      %p97 = scmp.ne.s32.totalorder %s80, %s96
      %p98 = scmp.eq.s32.totalorder %s25, 0
      %p99 = por %p97, %p98
      %s101 = sadd.s32 %s100, 1
      %p104 = scmp.eq.s32.totalorder %s19, 1
      %p105 = scmp.ne.s32.totalorder %s100, %s102
      %p106 = scmp.eq.s32.totalorder %s19, 0
      %p107 = por %p105, %p106
      %p108 = scmp.ne.s32.totalorder %s100, %s102
      %p109 = scmp.eq.s32.totalorder %s24, 1
      %p110 = por %p108, %p109
      %p111 = scmp.ne.s32.totalorder %s102, %s103
      %p112 = scmp.eq.s32.totalorder %s24, 0
      %p113 = por %p111, %p112
      %p114 = scmp.ne.s32.totalorder %s102, %s103
      %p115 = scmp.eq.s32.totalorder %s25, 1
      %p116 = por %p114, %p115
      %p118 = scmp.ne.s32.totalorder %s103, %s117
      %p119 = scmp.eq.s32.totalorder %s25, 0
      %p120 = por %p118, %p119
      %s122 = sadd.s32 %s121, 1
      %p125 = scmp.eq.s32.totalorder %s19, 1
      %p126 = scmp.ne.s32.totalorder %s121, %s123
      %p127 = scmp.eq.s32.totalorder %s19, 0
      %p128 = por %p126, %p127
      %p129 = scmp.ne.s32.totalorder %s121, %s123
      %p130 = scmp.eq.s32.totalorder %s24, 1
      %p131 = por %p129, %p130
      %p132 = scmp.ne.s32.totalorder %s123, %s124
      %p133 = scmp.eq.s32.totalorder %s24, 0
      %p134 = por %p132, %p133
      %p135 = scmp.ne.s32.totalorder %s123, %s124
      %p136 = scmp.eq.s32.totalorder %s25, 1
      %p137 = por %p135, %p136
      %p139 = scmp.ne.s32.totalorder %s124, %s138
      %p140 = scmp.eq.s32.totalorder %s25, 0
      %p141 = por %p139, %p140
      %s143 = sadd.s32 %s142, 1
      %p146 = scmp.eq.s32.totalorder %s19, 1
      %p147 = scmp.ne.s32.totalorder %s142, %s144
      %p148 = scmp.eq.s32.totalorder %s19, 0
      %p149 = por %p147, %p148
      %p150 = scmp.ne.s32.totalorder %s142, %s144
      %p151 = scmp.eq.s32.totalorder %s24, 1
      %p152 = por %p150, %p151
      %p153 = scmp.ne.s32.totalorder %s144, %s145
      %p154 = scmp.eq.s32.totalorder %s24, 0
      %p155 = por %p153, %p154
      %p156 = scmp.ne.s32.totalorder %s144, %s145
      %p157 = scmp.eq.s32.totalorder %s25, 1
      %p158 = por %p156, %p157
      %p160 = scmp.ne.s32.totalorder %s145, %s159
      %p161 = scmp.eq.s32.totalorder %s25, 0
      %p162 = por %p160, %p161
      %s164 = sadd.s32 %s163, 1
      %p167 = scmp.eq.s32.totalorder %s19, 1
      %p168 = scmp.ne.s32.totalorder %s163, %s165
      %p169 = scmp.eq.s32.totalorder %s19, 0
      %p170 = por %p168, %p169
      %p171 = scmp.ne.s32.totalorder %s163, %s165
      %p172 = scmp.eq.s32.totalorder %s24, 1
      %p173 = por %p171, %p172
      %p174 = scmp.ne.s32.totalorder %s165, %s166
      %p175 = scmp.eq.s32.totalorder %s24, 0
      %p176 = por %p174, %p175
      %p177 = scmp.ne.s32.totalorder %s165, %s166
      %p178 = scmp.eq.s32.totalorder %s25, 1
      %p179 = por %p177, %p178
      %p181 = scmp.ne.s32.totalorder %s166, %s180
      %p182 = scmp.eq.s32.totalorder %s25, 0
      %p183 = por %p181, %p182
      %s184 = ssub.s32 %s19, %s26
      %p185 = scmp.eq.s32.totalorder %s184, 0
      %s187 = sadd.s32 %s186, 1
      %s188 = scalar_select %p185, %s186, %s187
      %p191 = pneg %p185
      %p192 = scmp.eq.s32.totalorder %s19, 1
      %p193 = por %p191, %p192
      %p194 = scmp.ne.s32.totalorder %s186, %s189
      %p195 = scmp.eq.s32.totalorder %s19, 0
      %p196 = por %p194, %p195
      %p197 = scmp.ne.s32.totalorder %s186, %s189
      %p198 = scmp.eq.s32.totalorder %s24, 1
      %p199 = por %p197, %p198
      %p200 = scmp.ne.s32.totalorder %s189, %s190
      %p201 = scmp.eq.s32.totalorder %s24, 0
      %p202 = por %p200, %p201
      %p203 = scmp.ne.s32.totalorder %s189, %s190
      %p204 = scmp.eq.s32.totalorder %s25, 1
      %p205 = por %p203, %p204
      %p207 = scmp.ne.s32.totalorder %s190, %s206
      %p208 = scmp.eq.s32.totalorder %s25, 0
      %p209 = por %p207, %p208
      %p210 = scmp.le.s32.totalorder 1, %s19
      %p211 = scmp.lt.s32.totalorder %s19, 3
      %p212 = pnand %p210, %p211
      %p213 = pneg %p212
      // Predicated region
      $region9: #{transformer_decoder_forward.6} parent=5 // pred_check
        _
      $region10: #{transformer_decoder_forward.6} parent=5 // pred_check_branch
        %215 = sbr.rel (%p212) target = $region12
      $region11: #{transformer_decoder_forward.6} parent=5 // pred_region
        %s216 = ssub.s32 %s19, 1
        // Predicated region
        $region13: #{transformer_decoder_forward.6} parent=11 // pred_check
          %p217 = pneg %p66
        $region14: #{transformer_decoder_forward.6} parent=11 // pred_check_branch
          %219 = sbr.rel (%p217) target = $region16
        $region15: #{transformer_decoder_forward.6} parent=11 // pred_region
          _
        $region16: #{transformer_decoder_forward.6} parent=11 // pred_fallthru
          _
        // Predicated region
        $region17: #{transformer_decoder_forward.6} parent=11 // pred_check
          %p220 = pneg %p113
        $region18: #{transformer_decoder_forward.6} parent=11 // pred_check_branch
          %222 = sbr.rel (%p220) target = $region20
        $region19: #{transformer_decoder_forward.6} parent=11 // pred_region
          _
        $region20: #{transformer_decoder_forward.6} parent=11 // pred_fallthru
          _
        // Predicated region
        $region21: #{transformer_decoder_forward.6} parent=11 // pred_check
          %p223 = pneg %p134
        $region22: #{transformer_decoder_forward.6} parent=11 // pred_check_branch
          %225 = sbr.rel (%p223) target = $region24
        $region23: #{transformer_decoder_forward.6} parent=11 // pred_region
          %s227 = ssub.s32 8192, 8192
          %228 = vsyncadd [#allocation5], %s227
          %s229 = sshll.u32 [#allocation6], 4
          %s230 = int_to_ptr.vmem [resolvable:$true] %s229
          %235 = dma.hbm_to_vmem [thread:$0]  %s4, 8192, %s230, [#allocation5], 128, 128, 8
        $region24: #{transformer_decoder_forward.6} parent=11 // pred_fallthru
          _
        // Predicated region
        $region25: #{transformer_decoder_forward.6} parent=11 // pred_check
          %p236 = pneg %p155
        $region26: #{transformer_decoder_forward.6} parent=11 // pred_check_branch
          %238 = sbr.rel (%p236) target = $region28
        $region27: #{transformer_decoder_forward.6} parent=11 // pred_region
          _
        $region28: #{transformer_decoder_forward.6} parent=11 // pred_fallthru
          _
        // Predicated region
        $region29: #{transformer_decoder_forward.6} parent=11 // pred_check
          %p239 = pneg %p176
        $region30: #{transformer_decoder_forward.6} parent=11 // pred_check_branch
          %241 = sbr.rel (%p239) target = $region32
        $region31: #{transformer_decoder_forward.6} parent=11 // pred_region
          _
        $region32: #{transformer_decoder_forward.6} parent=11 // pred_fallthru
          _
      $region12: #{transformer_decoder_forward.6} parent=5 // pred_fallthru
        _
      %p242 = scmp.lt.s32.totalorder %s19, 2
      // Predicated region
      $region33: #{transformer_decoder_forward.6} parent=5 // pred_check
        %p243 = pneg %p242
      $region34: #{transformer_decoder_forward.6} parent=5 // pred_check_branch
        %245 = sbr.rel (%p243) target = $region36
      $region35: #{transformer_decoder_forward.6} parent=5 // pred_region
        // Predicated region
        $region37: #{transformer_decoder_forward.6} parent=35 // pred_check
          %p246 = pneg %p39
        $region38: #{transformer_decoder_forward.6} parent=35 // pred_check_branch
          %248 = sbr.rel (%p246) target = $region40
        $region39: #{transformer_decoder_forward.6} parent=35 // pred_region
          %s249 = sand.u32 %s29, 1
          %s250 = scalar_lea.sflag [#allocation3], %s249
          %s251 = sand.u32 %s29, 1
          %s252 = smul.addr %s251, 8
          %s253 = scalar_lea.vmem [#allocation2], %s252
          %s255 = ssub.s32 128, 128
          %256 = vsyncadd %s250, %s255
          %s257 = smul.addr %s19, 128
          %s258 = scalar_lea.hbm %s0, %s257
          %s260 = sshll.u32 %s253, 4
          %s261 = int_to_ptr.vmem [resolvable:$true] %s260
          %263 = dma.hbm_to_vmem [thread:$0]  %s258, 128, %s261, %s250
        $region40: #{transformer_decoder_forward.6} parent=35 // pred_fallthru
          _
        // Predicated region
        $region41: #{transformer_decoder_forward.6} parent=35 // pred_check
          %p264 = pneg %p86
        $region42: #{transformer_decoder_forward.6} parent=35 // pred_check_branch
          %266 = sbr.rel (%p264) target = $region44
        $region43: #{transformer_decoder_forward.6} parent=35 // pred_region
          %s267 = sand.u32 %s19, 1
          %s268 = scalar_lea.sflag [#allocation5], %s267
          %s269 = sand.u32 %s76, 1
          %s270 = smul.addr %s269, 8
          %s271 = scalar_lea.vmem [#allocation4], %s270
          %s273 = ssub.s32 128, 128
          %274 = vsyncadd %s268, %s273
          %s275 = smul.addr %s19, 128
          %s276 = scalar_lea.hbm %s2, %s275
          %s278 = sshll.u32 %s271, 4
          %s279 = int_to_ptr.vmem [resolvable:$true] %s278
          %281 = dma.hbm_to_vmem [thread:$0]  %s276, 128, %s279, %s268
        $region44: #{transformer_decoder_forward.6} parent=35 // pred_fallthru
          _
      $region36: #{transformer_decoder_forward.6} parent=5 // pred_fallthru
        _
      %p282 = scmp.le.s32.totalorder 1, %s19
      %p283 = scmp.lt.s32.totalorder %s19, 3
      %p284 = pnand %p282, %p283
      %p285 = pneg %p284
      // Predicated region
      $region45: #{transformer_decoder_forward.6} parent=5 // pred_check
        _
      $region46: #{transformer_decoder_forward.6} parent=5 // pred_check_branch
        %287 = sbr.rel (%p284) target = $region48
      $region47: #{transformer_decoder_forward.6} parent=5 // pred_region
        %s288 = ssub.s32 %s19, 1
        %s289 = sand.u32 %s32, 1
        %s290 = scalar_lea.sflag [#allocation3], %s289
        %s291 = sand.u32 %s32, 1
        %s292 = smul.addr %s291, 8
        %s293 = scalar_lea.vmem [#allocation2], %s292
        // Predicated region
        $region49: #{transformer_decoder_forward.6} parent=47 // pred_check
          %p294 = pneg %p45
        $region50: #{transformer_decoder_forward.6} parent=47 // pred_check_branch
          %296 = sbr.rel (%p294) target = $region52
        $region51: #{transformer_decoder_forward.6} parent=47 // pred_region
          %297 = dma.done %s290, 128
        $region52: #{transformer_decoder_forward.6} parent=47 // pred_fallthru
          _
        %s298 = sand.u32 %s24, 1
        %s299 = scalar_lea.sflag [#allocation5], %s298
        %s300 = sand.u32 %s79, 1
        %s301 = smul.addr %s300, 8
        %s302 = scalar_lea.vmem [#allocation4], %s301
        // Predicated region
        $region53: #{transformer_decoder_forward.6} parent=47 // pred_check
          %p303 = pneg %p92
        $region54: #{transformer_decoder_forward.6} parent=47 // pred_check_branch
          %305 = sbr.rel (%p303) target = $region56
        $region55: #{transformer_decoder_forward.6} parent=47 // pred_region
          %306 = dma.done %s299, 128
        $region56: #{transformer_decoder_forward.6} parent=47 // pred_fallthru
          _
        // Predicated region
        $region57: #{transformer_decoder_forward.6} parent=47 // pred_check
          %p307 = pneg %p134
        $region58: #{transformer_decoder_forward.6} parent=47 // pred_check_branch
          %309 = sbr.rel (%p307) target = $region60
        $region59: #{transformer_decoder_forward.6} parent=47 // pred_region
          %310 = dma.done [#allocation5], 8192
        $region60: #{transformer_decoder_forward.6} parent=47 // pred_fallthru
          _
        %s311 = sand.u32 %s32, 1
        %s312 = scalar_lea.sflag [#allocation3], %s311
        %s313 = sand.u32 %s32, 1
        %s314 = smul.addr %s313, 8
        %s315 = scalar_lea.vmem [#allocation2], %s314
        %p316 = pneg %p45
        %p317 = pneg %p42
        %p318 = pneg %p66
        %p319 = pneg %p63
        %s320 = sand.u32 %s24, 1
        %s321 = scalar_lea.sflag [#allocation5], %s320
        %s322 = sand.u32 %s79, 1
        %s323 = smul.addr %s322, 8
        %s324 = scalar_lea.vmem [#allocation4], %s323
        %p325 = pneg %p92
        %p326 = pneg %p89
        %p327 = pneg %p113
        %p328 = pneg %p110
        %p329 = pneg %p134
        %p330 = pneg %p131
        %p331 = pneg %p155
        %p332 = pneg %p152
        %p333 = pneg %p176
        %p334 = pneg %p173
        %p335 = pneg %p202
        %p336 = pneg %p199
        %p337 = scmp.lt.s32.totalorder %s24, 1
        %s338 = scalar_select %p337, %s24, 1
        %s339 = smul.addr %s338, 8
        %s340 = scalar_lea.vmem %s7, %s339
        %p341 = scmp.lt.s32.totalorder %s24, 1
        %s342 = scalar_select %p341, %s24, 1
        %s343 = smul.addr %s342, 8
        %s344 = scalar_lea.vmem %s7, %s343
        %v345 = vld [vmem:[%s293] sm:$0xff]
        %v346 = vld [vmem:[%s1] sm:$0xff]
        %v347 = vadd.f32 %v345, %v346
        %v348 = vld [vmem:[%s302] sm:$0xff]
        %v349 = vld [vmem:[#allocation6] sm:$0xff]
        %v350 = vld [vmem:[#allocation6 + $0x8] sm:$0xff]
        %v351 = vld [vmem:[#allocation6 + $0x10] sm:$0xff]
        %v352 = vld [vmem:[#allocation6 + $0x18] sm:$0xff]
        %v353 = vld [vmem:[#allocation6 + $0x20] sm:$0xff]
        %v354 = vld [vmem:[#allocation6 + $0x28] sm:$0xff]
        %v355 = vld [vmem:[#allocation6 + $0x30] sm:$0xff]
        %v356 = vld [vmem:[#allocation6 + $0x38] sm:$0xff]
        %v357 = vld [vmem:[#allocation6 + $0x40] sm:$0xff]
        %v358 = vld [vmem:[#allocation6 + $0x48] sm:$0xff]
        %v359 = vld [vmem:[#allocation6 + $0x50] sm:$0xff]
        %v360 = vld [vmem:[#allocation6 + $0x58] sm:$0xff]
        %v361 = vld [vmem:[#allocation6 + $0x60] sm:$0xff]
        %v362 = vld [vmem:[#allocation6 + $0x68] sm:$0xff]
        %v363 = vld [vmem:[#allocation6 + $0x70] sm:$0xff]
        %v364 = vld [vmem:[#allocation6 + $0x78] sm:$0xff]
        %v365 = vld [vmem:[%s5] sm:$0x1]
        %v367 = vlaneseq
        %v368 = vshrl.u32 %v367, 7
        %v369 = vsub.s32 0, %v368
        %v370 = vrot.slane %v365, %v369
        %372 = vmatprep.subr.mxu0 0.0
        %373 = vmatpush1.msra.mxu0 %v349
        %374 = vmatprep.subr.mxu0 0.0
        %375 = vmatpush1.msra.mxu0 %v350
        %376 = vmatprep.subr.mxu0 0.0
        %377 = vmatpush1.msra.mxu0 %v351
        %378 = vmatprep.subr.mxu0 0.0
        %379 = vmatpush1.msra.mxu0 %v352
        %380 = vmatprep.subr.mxu0 0.0
        %381 = vmatpush1.msra.mxu0 %v353
        %382 = vmatprep.subr.mxu0 0.0
        %383 = vmatpush1.msra.mxu0 %v354
        %384 = vmatprep.subr.mxu0 0.0
        %385 = vmatpush1.msra.mxu0 %v355
        %386 = vmatprep.subr.mxu0 0.0
        %387 = vmatpush1.msra.mxu0 %v356
        %388 = vmatprep.subr.mxu0 0.0
        %389 = vmatpush1.msra.mxu0 %v357
        %390 = vmatprep.subr.mxu0 0.0
        %391 = vmatpush1.msra.mxu0 %v358
        %392 = vmatprep.subr.mxu0 0.0
        %393 = vmatpush1.msra.mxu0 %v359
        %394 = vmatprep.subr.mxu0 0.0
        %395 = vmatpush1.msra.mxu0 %v360
        %396 = vmatprep.subr.mxu0 0.0
        %397 = vmatpush1.msra.mxu0 %v361
        %398 = vmatprep.subr.mxu0 0.0
        %399 = vmatpush1.msra.mxu0 %v362
        %400 = vmatprep.subr.mxu0 0.0
        %401 = vmatpush1.msra.mxu0 %v363
        %402 = vmatprep.subr.mxu0 0.0
        %403 = vmatpush1.msra.mxu0 %v364
        %404 = vmatprep.subr.mxu0 0.0
        %405 = vmatpush1.msra.mxu0 0.0
        %406 = vmatprep.subr.mxu0 0.0
        %407 = vmatpush1.msra.mxu0 0.0
        %408 = vmatprep.subr.mxu0 0.0
        %409 = vmatpush1.msra.mxu0 0.0
        %410 = vmatprep.subr.mxu0 0.0
        %411 = vmatpush1.msra.mxu0 0.0
        %412 = vmatprep.subr.mxu0 0.0
        %413 = vmatpush1.msra.mxu0 0.0
        %414 = vmatprep.subr.mxu0 0.0
        %415 = vmatpush1.msra.mxu0 0.0
        %416 = vmatprep.subr.mxu0 0.0
        %417 = vmatpush1.msra.mxu0 0.0
        %418 = vmatprep.subr.mxu0 0.0
        %419 = vmatpush1.msra.mxu0 0.0
        %420 = vmatprep.subr.mxu0 0.0
        %421 = vmatpush1.msra.mxu0 0.0
        %422 = vmatprep.subr.mxu0 0.0
        %423 = vmatpush1.msra.mxu0 0.0
        %424 = vmatprep.subr.mxu0 0.0
        %425 = vmatpush1.msra.mxu0 0.0
        %426 = vmatprep.subr.mxu0 0.0
        %427 = vmatpush1.msra.mxu0 0.0
        %428 = vmatprep.subr.mxu0 0.0
        %429 = vmatpush1.msra.mxu0 0.0
        %430 = vmatprep.subr.mxu0 0.0
        %431 = vmatpush1.msra.mxu0 0.0
        %432 = vmatprep.subr.mxu0 0.0
        %433 = vmatpush1.msra.mxu0 0.0
        %434 = vmatprep.subr.mxu0 0.0
        %435 = vmatpush1.msra.mxu0 0.0
        %436 = vmatprep.mubr.f32.mxu0 0.0
        %437 = vmatmul.mubr.f32.gmra.mrb[0].mxu0 %v347
        %v438 = vpop.f32.mrb[0].mxu0
        %v439 = vadd.f32 %v370, %v438
        %v440 = vpop.f32.mrb[0].mxu0
        %441 = vdwg.mxu0
        %s442 = scalar_lea.vmem [#allocation6], 128
        %v443 = vld [vmem:[%s442] sm:$0xff]
        %v444 = vld [vmem:[%s442 + $0x8] sm:$0xff]
        %v445 = vld [vmem:[%s442 + $0x10] sm:$0xff]
        %v446 = vld [vmem:[%s442 + $0x18] sm:$0xff]
        %v447 = vld [vmem:[%s442 + $0x20] sm:$0xff]
        %v448 = vld [vmem:[%s442 + $0x28] sm:$0xff]
        %v449 = vld [vmem:[%s442 + $0x30] sm:$0xff]
        %v450 = vld [vmem:[%s442 + $0x38] sm:$0xff]
        %v451 = vld [vmem:[%s442 + $0x40] sm:$0xff]
        %v452 = vld [vmem:[%s442 + $0x48] sm:$0xff]
        %v453 = vld [vmem:[%s442 + $0x50] sm:$0xff]
        %v454 = vld [vmem:[%s442 + $0x58] sm:$0xff]
        %v455 = vld [vmem:[%s442 + $0x60] sm:$0xff]
        %v456 = vld [vmem:[%s442 + $0x68] sm:$0xff]
        %v457 = vld [vmem:[%s442 + $0x70] sm:$0xff]
        %v458 = vld [vmem:[%s442 + $0x78] sm:$0xff]
        %s459 = scalar_lea.vmem %s5, 1
        %v460 = vld [vmem:[%s459] sm:$0x1]
        %v462 = vlaneseq
        %v463 = vshrl.u32 %v462, 7
        %v464 = vsub.s32 0, %v463
        %v465 = vrot.slane %v460, %v464
        %467 = vmatprep.subr.mxu0 0.0
        %468 = vmatpush1.msra.mxu0 %v443
        %469 = vmatprep.subr.mxu0 0.0
        %470 = vmatpush1.msra.mxu0 %v444
        %471 = vmatprep.subr.mxu0 0.0
        %472 = vmatpush1.msra.mxu0 %v445
        %473 = vmatprep.subr.mxu0 0.0
        %474 = vmatpush1.msra.mxu0 %v446
        %475 = vmatprep.subr.mxu0 0.0
        %476 = vmatpush1.msra.mxu0 %v447
        %477 = vmatprep.subr.mxu0 0.0
        %478 = vmatpush1.msra.mxu0 %v448
        %479 = vmatprep.subr.mxu0 0.0
        %480 = vmatpush1.msra.mxu0 %v449
        %481 = vmatprep.subr.mxu0 0.0
        %482 = vmatpush1.msra.mxu0 %v450
        %483 = vmatprep.subr.mxu0 0.0
        %484 = vmatpush1.msra.mxu0 %v451
        %485 = vmatprep.subr.mxu0 0.0
        %486 = vmatpush1.msra.mxu0 %v452
        %487 = vmatprep.subr.mxu0 0.0
        %488 = vmatpush1.msra.mxu0 %v453
        %489 = vmatprep.subr.mxu0 0.0
        %490 = vmatpush1.msra.mxu0 %v454
        %491 = vmatprep.subr.mxu0 0.0
        %492 = vmatpush1.msra.mxu0 %v455
        %493 = vmatprep.subr.mxu0 0.0
        %494 = vmatpush1.msra.mxu0 %v456
        %495 = vmatprep.subr.mxu0 0.0
        %496 = vmatpush1.msra.mxu0 %v457
        %497 = vmatprep.subr.mxu0 0.0
        %498 = vmatpush1.msra.mxu0 %v458
        %499 = vmatprep.subr.mxu0 0.0
        %500 = vmatpush1.msra.mxu0 0.0
        %501 = vmatprep.subr.mxu0 0.0
        %502 = vmatpush1.msra.mxu0 0.0
        %503 = vmatprep.subr.mxu0 0.0
        %504 = vmatpush1.msra.mxu0 0.0
        %505 = vmatprep.subr.mxu0 0.0
        %506 = vmatpush1.msra.mxu0 0.0
        %507 = vmatprep.subr.mxu0 0.0
        %508 = vmatpush1.msra.mxu0 0.0
        %509 = vmatprep.subr.mxu0 0.0
        %510 = vmatpush1.msra.mxu0 0.0
        %511 = vmatprep.subr.mxu0 0.0
        %512 = vmatpush1.msra.mxu0 0.0
        %513 = vmatprep.subr.mxu0 0.0
        %514 = vmatpush1.msra.mxu0 0.0
        %515 = vmatprep.subr.mxu0 0.0
        %516 = vmatpush1.msra.mxu0 0.0
        %517 = vmatprep.subr.mxu0 0.0
        %518 = vmatpush1.msra.mxu0 0.0
        %519 = vmatprep.subr.mxu0 0.0
        %520 = vmatpush1.msra.mxu0 0.0
        %521 = vmatprep.subr.mxu0 0.0
        %522 = vmatpush1.msra.mxu0 0.0
        %523 = vmatprep.subr.mxu0 0.0
        %524 = vmatpush1.msra.mxu0 0.0
        %525 = vmatprep.subr.mxu0 0.0
        %526 = vmatpush1.msra.mxu0 0.0
        %527 = vmatprep.subr.mxu0 0.0
        %528 = vmatpush1.msra.mxu0 0.0
        %529 = vmatprep.subr.mxu0 0.0
        %530 = vmatpush1.msra.mxu0 0.0
        %531 = vmatprep.mubr.f32.mxu0 0.0
        %532 = vmatmul.mubr.f32.gmra.mrb[0].mxu0 %v348
        %v533 = vpop.f32.mrb[0].mxu0
        %v534 = vadd.f32 %v465, %v533
        %v535 = vpop.f32.mrb[0].mxu0
        %536 = vdwg.mxu0
        %s537 = scalar_lea.vmem [#allocation6], 256
        %v538 = vld [vmem:[%s537] sm:$0xff]
        %v539 = vld [vmem:[%s537 + $0x8] sm:$0xff]
        %v540 = vld [vmem:[%s537 + $0x10] sm:$0xff]
        %v541 = vld [vmem:[%s537 + $0x18] sm:$0xff]
        %v542 = vld [vmem:[%s537 + $0x20] sm:$0xff]
        %v543 = vld [vmem:[%s537 + $0x28] sm:$0xff]
        %v544 = vld [vmem:[%s537 + $0x30] sm:$0xff]
        %v545 = vld [vmem:[%s537 + $0x38] sm:$0xff]
        %v546 = vld [vmem:[%s537 + $0x40] sm:$0xff]
        %v547 = vld [vmem:[%s537 + $0x48] sm:$0xff]
        %v548 = vld [vmem:[%s537 + $0x50] sm:$0xff]
        %v549 = vld [vmem:[%s537 + $0x58] sm:$0xff]
        %v550 = vld [vmem:[%s537 + $0x60] sm:$0xff]
        %v551 = vld [vmem:[%s537 + $0x68] sm:$0xff]
        %v552 = vld [vmem:[%s537 + $0x70] sm:$0xff]
        %v553 = vld [vmem:[%s537 + $0x78] sm:$0xff]
        %s554 = scalar_lea.vmem %s5, 2
        %v555 = vld [vmem:[%s554] sm:$0x1]
        %v557 = vlaneseq
        %v558 = vshrl.u32 %v557, 7
        %v559 = vsub.s32 0, %v558
        %v560 = vrot.slane %v555, %v559
        %562 = vmatprep.subr.mxu0 0.0
        %563 = vmatpush1.msra.mxu0 %v538
        %564 = vmatprep.subr.mxu0 0.0
        %565 = vmatpush1.msra.mxu0 %v539
        %566 = vmatprep.subr.mxu0 0.0
        %567 = vmatpush1.msra.mxu0 %v540
        %568 = vmatprep.subr.mxu0 0.0
        %569 = vmatpush1.msra.mxu0 %v541
        %570 = vmatprep.subr.mxu0 0.0
        %571 = vmatpush1.msra.mxu0 %v542
        %572 = vmatprep.subr.mxu0 0.0
        %573 = vmatpush1.msra.mxu0 %v543
        %574 = vmatprep.subr.mxu0 0.0
        %575 = vmatpush1.msra.mxu0 %v544
        %576 = vmatprep.subr.mxu0 0.0
        %577 = vmatpush1.msra.mxu0 %v545
        %578 = vmatprep.subr.mxu0 0.0
        %579 = vmatpush1.msra.mxu0 %v546
        %580 = vmatprep.subr.mxu0 0.0
        %581 = vmatpush1.msra.mxu0 %v547
        %582 = vmatprep.subr.mxu0 0.0
        %583 = vmatpush1.msra.mxu0 %v548
        %584 = vmatprep.subr.mxu0 0.0
        %585 = vmatpush1.msra.mxu0 %v549
        %586 = vmatprep.subr.mxu0 0.0
        %587 = vmatpush1.msra.mxu0 %v550
        %588 = vmatprep.subr.mxu0 0.0
        %589 = vmatpush1.msra.mxu0 %v551
        %590 = vmatprep.subr.mxu0 0.0
        %591 = vmatpush1.msra.mxu0 %v552
        %592 = vmatprep.subr.mxu0 0.0
        %593 = vmatpush1.msra.mxu0 %v553
        %594 = vmatprep.subr.mxu0 0.0
        %595 = vmatpush1.msra.mxu0 0.0
        %596 = vmatprep.subr.mxu0 0.0
        %597 = vmatpush1.msra.mxu0 0.0
        %598 = vmatprep.subr.mxu0 0.0
        %599 = vmatpush1.msra.mxu0 0.0
        %600 = vmatprep.subr.mxu0 0.0
        %601 = vmatpush1.msra.mxu0 0.0
        %602 = vmatprep.subr.mxu0 0.0
        %603 = vmatpush1.msra.mxu0 0.0
        %604 = vmatprep.subr.mxu0 0.0
        %605 = vmatpush1.msra.mxu0 0.0
        %606 = vmatprep.subr.mxu0 0.0
        %607 = vmatpush1.msra.mxu0 0.0
        %608 = vmatprep.subr.mxu0 0.0
        %609 = vmatpush1.msra.mxu0 0.0
        %610 = vmatprep.subr.mxu0 0.0
        %611 = vmatpush1.msra.mxu0 0.0
        %612 = vmatprep.subr.mxu0 0.0
        %613 = vmatpush1.msra.mxu0 0.0
        %614 = vmatprep.subr.mxu0 0.0
        %615 = vmatpush1.msra.mxu0 0.0
        %616 = vmatprep.subr.mxu0 0.0
        %617 = vmatpush1.msra.mxu0 0.0
        %618 = vmatprep.subr.mxu0 0.0
        %619 = vmatpush1.msra.mxu0 0.0
        %620 = vmatprep.subr.mxu0 0.0
        %621 = vmatpush1.msra.mxu0 0.0
        %622 = vmatprep.subr.mxu0 0.0
        %623 = vmatpush1.msra.mxu0 0.0
        %624 = vmatprep.subr.mxu0 0.0
        %625 = vmatpush1.msra.mxu0 0.0
        %626 = vmatprep.mubr.f32.mxu0 0.0
        %627 = vmatmul.mubr.f32.gmra.mrb[0].mxu0 %v348
        %v628 = vpop.f32.mrb[0].mxu0
        %v629 = vadd.f32 %v560, %v628
        %v630 = vpop.f32.mrb[0].mxu0
        %631 = vdwg.mxu0
        %vm632 = vcmask 261120
        %v634 = vsel %vm632, %v439, 0
        %v637 = vsel %vm632, %v534, 0
        %639 = vmatprep.subr.mxu0 0.0
        %640 = vmatpush1.xpose.msra.mxu0 %v637
        %641 = vmatprep.subr.mxu0 0.0
        %642 = vmatpush1.xpose.msra.mxu0 0.0
        %643 = vmatprep.subr.mxu0 0.0
        %644 = vmatpush1.xpose.msra.mxu0 0.0
        %645 = vmatprep.subr.mxu0 0.0
        %646 = vmatpush1.xpose.msra.mxu0 0.0
        %647 = vmatprep.subr.mxu0 0.0
        %648 = vmatpush1.xpose.msra.mxu0 0.0
        %649 = vmatprep.subr.mxu0 0.0
        %650 = vmatpush1.xpose.msra.mxu0 0.0
        %651 = vmatprep.subr.mxu0 0.0
        %652 = vmatpush1.xpose.msra.mxu0 0.0
        %653 = vmatprep.subr.mxu0 0.0
        %654 = vmatpush1.xpose.msra.mxu0 0.0
        %655 = vmatprep.subr.mxu0 0.0
        %656 = vmatpush1.xpose.msra.mxu0 0.0
        %657 = vmatprep.subr.mxu0 0.0
        %658 = vmatpush1.xpose.msra.mxu0 0.0
        %659 = vmatprep.subr.mxu0 0.0
        %660 = vmatpush1.xpose.msra.mxu0 0.0
        %661 = vmatprep.subr.mxu0 0.0
        %662 = vmatpush1.xpose.msra.mxu0 0.0
        %663 = vmatprep.subr.mxu0 0.0
        %664 = vmatpush1.xpose.msra.mxu0 0.0
        %665 = vmatprep.subr.mxu0 0.0
        %666 = vmatpush1.xpose.msra.mxu0 0.0
        %667 = vmatprep.subr.mxu0 0.0
        %668 = vmatpush1.xpose.msra.mxu0 0.0
        %669 = vmatprep.subr.mxu0 0.0
        %670 = vmatpush1.xpose.msra.mxu0 0.0
        %671 = vmatprep.subr.mxu0 0.0
        %672 = vmatpush1.xpose.msra.mxu0 0.0
        %673 = vmatprep.subr.mxu0 0.0
        %674 = vmatpush1.xpose.msra.mxu0 0.0
        %675 = vmatprep.subr.mxu0 0.0
        %676 = vmatpush1.xpose.msra.mxu0 0.0
        %677 = vmatprep.subr.mxu0 0.0
        %678 = vmatpush1.xpose.msra.mxu0 0.0
        %679 = vmatprep.subr.mxu0 0.0
        %680 = vmatpush1.xpose.msra.mxu0 0.0
        %681 = vmatprep.subr.mxu0 0.0
        %682 = vmatpush1.xpose.msra.mxu0 0.0
        %683 = vmatprep.subr.mxu0 0.0
        %684 = vmatpush1.xpose.msra.mxu0 0.0
        %685 = vmatprep.subr.mxu0 0.0
        %686 = vmatpush1.xpose.msra.mxu0 0.0
        %687 = vmatprep.subr.mxu0 0.0
        %688 = vmatpush1.xpose.msra.mxu0 0.0
        %689 = vmatprep.subr.mxu0 0.0
        %690 = vmatpush1.xpose.msra.mxu0 0.0
        %691 = vmatprep.subr.mxu0 0.0
        %692 = vmatpush1.xpose.msra.mxu0 0.0
        %693 = vmatprep.subr.mxu0 0.0
        %694 = vmatpush1.xpose.msra.mxu0 0.0
        %695 = vmatprep.subr.mxu0 0.0
        %696 = vmatpush1.xpose.msra.mxu0 0.0
        %697 = vmatprep.subr.mxu0 0.0
        %698 = vmatpush1.xpose.msra.mxu0 0.0
        %699 = vmatprep.subr.mxu0 0.0
        %700 = vmatpush1.xpose.msra.mxu0 0.0
        %701 = vmatprep.subr.mxu0 0.0
        %702 = vmatpush1.xpose.msra.mxu0 0.0
        %703 = vmatprep.mubr.f32.mxu0 0.0
        %704 = vmatmul.mubr.f32.gmra.mrb[0].mxu0 %v634
        %v705 = vpop.f32.mrb[0].mxu0
        %v706 = vadd.f32 0.0, %v705
        %v707 = vpop.f32.mrb[0].mxu0
        %708 = vdwg.mxu0
        %v709 = vmul.f32 %v706, 0.17677669
        %v710 = vld [vmem:[%s3] sm:$0xff]
        %v711 = vadd.f32 %v709, %v710
        %vm712 = vcmask 64512
        %v713 = vsel %vm712, %v711, -inf
        %714 = vmax.xlane.f32.xlu0 %v713
        %v715 = vpop.xlane.xlu0 %714
        %v716 = vsub.f32 %v711, %v715
        %v717 = vmul.f32 %v716, 1.442695
        %v718 = vpow.pop %v717
        %v719 = vsel %vm712, %v718, 0.0
        %720 = vadd.xlane.f32.xlu0 %v719
        %v721 = vpop.xlane.xlu0 %720
        %v722 = vrcp.pop %v721
        %v723 = vmul.f32 %v718, %v722
        %v725 = vsel %vm712, %v723, 0
        %727 = vmatprep.subr.mxu0 0.0
        %728 = vmatpush1.msra.mxu0 %v629
        %729 = vmatprep.subr.mxu0 0.0
        %730 = vmatpush1.msra.mxu0 0.0
        %731 = vmatprep.subr.mxu0 0.0
        %732 = vmatpush1.msra.mxu0 0.0
        %733 = vmatprep.subr.mxu0 0.0
        %734 = vmatpush1.msra.mxu0 0.0
        %735 = vmatprep.subr.mxu0 0.0
        %736 = vmatpush1.msra.mxu0 0.0
        %737 = vmatprep.subr.mxu0 0.0
        %738 = vmatpush1.msra.mxu0 0.0
        %739 = vmatprep.subr.mxu0 0.0
        %740 = vmatpush1.msra.mxu0 0.0
        %741 = vmatprep.subr.mxu0 0.0
        %742 = vmatpush1.msra.mxu0 0.0
        %743 = vmatprep.subr.mxu0 0.0
        %744 = vmatpush1.msra.mxu0 0.0
        %745 = vmatprep.subr.mxu0 0.0
        %746 = vmatpush1.msra.mxu0 0.0
        %747 = vmatprep.subr.mxu0 0.0
        %748 = vmatpush1.msra.mxu0 0.0
        %749 = vmatprep.subr.mxu0 0.0
        %750 = vmatpush1.msra.mxu0 0.0
        %751 = vmatprep.subr.mxu0 0.0
        %752 = vmatpush1.msra.mxu0 0.0
        %753 = vmatprep.subr.mxu0 0.0
        %754 = vmatpush1.msra.mxu0 0.0
        %755 = vmatprep.subr.mxu0 0.0
        %756 = vmatpush1.msra.mxu0 0.0
        %757 = vmatprep.subr.mxu0 0.0
        %758 = vmatpush1.msra.mxu0 0.0
        %759 = vmatprep.subr.mxu0 0.0
        %760 = vmatpush1.msra.mxu0 0.0
        %761 = vmatprep.subr.mxu0 0.0
        %762 = vmatpush1.msra.mxu0 0.0
        %763 = vmatprep.subr.mxu0 0.0
        %764 = vmatpush1.msra.mxu0 0.0
        %765 = vmatprep.subr.mxu0 0.0
        %766 = vmatpush1.msra.mxu0 0.0
        %767 = vmatprep.subr.mxu0 0.0
        %768 = vmatpush1.msra.mxu0 0.0
        %769 = vmatprep.subr.mxu0 0.0
        %770 = vmatpush1.msra.mxu0 0.0
        %771 = vmatprep.subr.mxu0 0.0
        %772 = vmatpush1.msra.mxu0 0.0
        %773 = vmatprep.subr.mxu0 0.0
        %774 = vmatpush1.msra.mxu0 0.0
        %775 = vmatprep.subr.mxu0 0.0
        %776 = vmatpush1.msra.mxu0 0.0
        %777 = vmatprep.subr.mxu0 0.0
        %778 = vmatpush1.msra.mxu0 0.0
        %779 = vmatprep.subr.mxu0 0.0
        %780 = vmatpush1.msra.mxu0 0.0
        %781 = vmatprep.subr.mxu0 0.0
        %782 = vmatpush1.msra.mxu0 0.0
        %783 = vmatprep.subr.mxu0 0.0
        %784 = vmatpush1.msra.mxu0 0.0
        %785 = vmatprep.subr.mxu0 0.0
        %786 = vmatpush1.msra.mxu0 0.0
        %787 = vmatprep.subr.mxu0 0.0
        %788 = vmatpush1.msra.mxu0 0.0
        %789 = vmatprep.subr.mxu0 0.0
        %790 = vmatpush1.msra.mxu0 0.0
        %791 = vmatprep.mubr.f32.mxu0 0.0
        %792 = vmatmul.mubr.f32.gmra.mrb[0].mxu0 %v725
        %v793 = vpop.f32.mrb[0].mxu0
        %v794 = vadd.f32 0.0, %v793
        %v795 = vpop.f32.mrb[0].mxu0
        %796 = vdwg.mxu0
        %797 = vrot.lane.b32.xlu0 %v439, 96
        %v798 = vpop.permute.xlu0 %797
        %799 = vrot.lane.b32.xlu0 %v534, 96
        %v800 = vpop.permute.xlu0 %799
        %v801 = vsel %vm632, %v798, 0
        %v803 = vsel %vm632, %v800, 0
        %805 = vmatprep.subr.mxu0 0.0
        %806 = vmatpush1.xpose.msra.mxu0 %v803
        %807 = vmatprep.subr.mxu0 0.0
        %808 = vmatpush1.xpose.msra.mxu0 0.0
        %809 = vmatprep.subr.mxu0 0.0
        %810 = vmatpush1.xpose.msra.mxu0 0.0
        %811 = vmatprep.subr.mxu0 0.0
        %812 = vmatpush1.xpose.msra.mxu0 0.0
        %813 = vmatprep.subr.mxu0 0.0
        %814 = vmatpush1.xpose.msra.mxu0 0.0
        %815 = vmatprep.subr.mxu0 0.0
        %816 = vmatpush1.xpose.msra.mxu0 0.0
        %817 = vmatprep.subr.mxu0 0.0
        %818 = vmatpush1.xpose.msra.mxu0 0.0
        %819 = vmatprep.subr.mxu0 0.0
        %820 = vmatpush1.xpose.msra.mxu0 0.0
        %821 = vmatprep.subr.mxu0 0.0
        %822 = vmatpush1.xpose.msra.mxu0 0.0
        %823 = vmatprep.subr.mxu0 0.0
        %824 = vmatpush1.xpose.msra.mxu0 0.0
        %825 = vmatprep.subr.mxu0 0.0
        %826 = vmatpush1.xpose.msra.mxu0 0.0
        %827 = vmatprep.subr.mxu0 0.0
        %828 = vmatpush1.xpose.msra.mxu0 0.0
        %829 = vmatprep.subr.mxu0 0.0
        %830 = vmatpush1.xpose.msra.mxu0 0.0
        %831 = vmatprep.subr.mxu0 0.0
        %832 = vmatpush1.xpose.msra.mxu0 0.0
        %833 = vmatprep.subr.mxu0 0.0
        %834 = vmatpush1.xpose.msra.mxu0 0.0
        %835 = vmatprep.subr.mxu0 0.0
        %836 = vmatpush1.xpose.msra.mxu0 0.0
        %837 = vmatprep.subr.mxu0 0.0
        %838 = vmatpush1.xpose.msra.mxu0 0.0
        %839 = vmatprep.subr.mxu0 0.0
        %840 = vmatpush1.xpose.msra.mxu0 0.0
        %841 = vmatprep.subr.mxu0 0.0
        %842 = vmatpush1.xpose.msra.mxu0 0.0
        %843 = vmatprep.subr.mxu0 0.0
        %844 = vmatpush1.xpose.msra.mxu0 0.0
        %845 = vmatprep.subr.mxu0 0.0
        %846 = vmatpush1.xpose.msra.mxu0 0.0
        %847 = vmatprep.subr.mxu0 0.0
        %848 = vmatpush1.xpose.msra.mxu0 0.0
        %849 = vmatprep.subr.mxu0 0.0
        %850 = vmatpush1.xpose.msra.mxu0 0.0
        %851 = vmatprep.subr.mxu0 0.0
        %852 = vmatpush1.xpose.msra.mxu0 0.0
        %853 = vmatprep.subr.mxu0 0.0
        %854 = vmatpush1.xpose.msra.mxu0 0.0
        %855 = vmatprep.subr.mxu0 0.0
        %856 = vmatpush1.xpose.msra.mxu0 0.0
        %857 = vmatprep.subr.mxu0 0.0
        %858 = vmatpush1.xpose.msra.mxu0 0.0
        %859 = vmatprep.subr.mxu0 0.0
        %860 = vmatpush1.xpose.msra.mxu0 0.0
        %861 = vmatprep.subr.mxu0 0.0
        %862 = vmatpush1.xpose.msra.mxu0 0.0
        %863 = vmatprep.subr.mxu0 0.0
        %864 = vmatpush1.xpose.msra.mxu0 0.0
        %865 = vmatprep.subr.mxu0 0.0
        %866 = vmatpush1.xpose.msra.mxu0 0.0
        %867 = vmatprep.subr.mxu0 0.0
        %868 = vmatpush1.xpose.msra.mxu0 0.0
        %869 = vmatprep.mubr.f32.mxu0 0.0
        %870 = vmatmul.mubr.f32.gmra.mrb[0].mxu0 %v801
        %v871 = vpop.f32.mrb[0].mxu0
        %v872 = vadd.f32 0.0, %v871
        %v873 = vpop.f32.mrb[0].mxu0
        %874 = vdwg.mxu0
        %v875 = vmul.f32 %v872, 0.17677669
        %s876 = scalar_lea.vmem %s3, 8
        %v877 = vld [vmem:[%s876] sm:$0xff]
        %v878 = vadd.f32 %v875, %v877
        %v879 = vsel %vm712, %v878, -inf
        %880 = vmax.xlane.f32.xlu0 %v879
        %v881 = vpop.xlane.xlu0 %880
        %v882 = vsub.f32 %v878, %v881
        %v883 = vmul.f32 %v882, 1.442695
        %v884 = vpow.pop %v883
        %v885 = vsel %vm712, %v884, 0.0
        %886 = vadd.xlane.f32.xlu0 %v885
        %v887 = vpop.xlane.xlu0 %886
        %v888 = vrcp.pop %v887
        %v889 = vmul.f32 %v884, %v888
        %891 = vrot.lane.b32.xlu0 %v629, 96
        %v892 = vpop.permute.xlu0 %891
        %v895 = vsel %vm712, %v889, 0
        %897 = vmatprep.subr.mxu0 0.0
        %898 = vmatpush1.msra.mxu0 %v892
        %899 = vmatprep.subr.mxu0 0.0
        %900 = vmatpush1.msra.mxu0 0.0
        %901 = vmatprep.subr.mxu0 0.0
        %902 = vmatpush1.msra.mxu0 0.0
        %903 = vmatprep.subr.mxu0 0.0
        %904 = vmatpush1.msra.mxu0 0.0
        %905 = vmatprep.subr.mxu0 0.0
        %906 = vmatpush1.msra.mxu0 0.0
        %907 = vmatprep.subr.mxu0 0.0
        %908 = vmatpush1.msra.mxu0 0.0
        %909 = vmatprep.subr.mxu0 0.0
        %910 = vmatpush1.msra.mxu0 0.0
        %911 = vmatprep.subr.mxu0 0.0
        %912 = vmatpush1.msra.mxu0 0.0
        %913 = vmatprep.subr.mxu0 0.0
        %914 = vmatpush1.msra.mxu0 0.0
        %915 = vmatprep.subr.mxu0 0.0
        %916 = vmatpush1.msra.mxu0 0.0
        %917 = vmatprep.subr.mxu0 0.0
        %918 = vmatpush1.msra.mxu0 0.0
        %919 = vmatprep.subr.mxu0 0.0
        %920 = vmatpush1.msra.mxu0 0.0
        %921 = vmatprep.subr.mxu0 0.0
        %922 = vmatpush1.msra.mxu0 0.0
        %923 = vmatprep.subr.mxu0 0.0
        %924 = vmatpush1.msra.mxu0 0.0
        %925 = vmatprep.subr.mxu0 0.0
        %926 = vmatpush1.msra.mxu0 0.0
        %927 = vmatprep.subr.mxu0 0.0
        %928 = vmatpush1.msra.mxu0 0.0
        %929 = vmatprep.subr.mxu0 0.0
        %930 = vmatpush1.msra.mxu0 0.0
        %931 = vmatprep.subr.mxu0 0.0
        %932 = vmatpush1.msra.mxu0 0.0
        %933 = vmatprep.subr.mxu0 0.0
        %934 = vmatpush1.msra.mxu0 0.0
        %935 = vmatprep.subr.mxu0 0.0
        %936 = vmatpush1.msra.mxu0 0.0
        %937 = vmatprep.subr.mxu0 0.0
        %938 = vmatpush1.msra.mxu0 0.0
        %939 = vmatprep.subr.mxu0 0.0
        %940 = vmatpush1.msra.mxu0 0.0
        %941 = vmatprep.subr.mxu0 0.0
        %942 = vmatpush1.msra.mxu0 0.0
        %943 = vmatprep.subr.mxu0 0.0
        %944 = vmatpush1.msra.mxu0 0.0
        %945 = vmatprep.subr.mxu0 0.0
        %946 = vmatpush1.msra.mxu0 0.0
        %947 = vmatprep.subr.mxu0 0.0
        %948 = vmatpush1.msra.mxu0 0.0
        %949 = vmatprep.subr.mxu0 0.0
        %950 = vmatpush1.msra.mxu0 0.0
        %951 = vmatprep.subr.mxu0 0.0
        %952 = vmatpush1.msra.mxu0 0.0
        %953 = vmatprep.subr.mxu0 0.0
        %954 = vmatpush1.msra.mxu0 0.0
        %955 = vmatprep.subr.mxu0 0.0
        %956 = vmatpush1.msra.mxu0 0.0
        %957 = vmatprep.subr.mxu0 0.0
        %958 = vmatpush1.msra.mxu0 0.0
        %959 = vmatprep.subr.mxu0 0.0
        %960 = vmatpush1.msra.mxu0 0.0
        %961 = vmatprep.mubr.f32.mxu0 0.0
        %962 = vmatmul.mubr.f32.gmra.mrb[0].mxu0 %v895
        %v963 = vpop.f32.mrb[0].mxu0
        %v964 = vadd.f32 0.0, %v963
        %v965 = vpop.f32.mrb[0].mxu0
        %966 = vdwg.mxu0
        %967 = vrot.lane.b32.xlu0 %v439, 64
        %v968 = vpop.permute.xlu0 %967
        %969 = vrot.lane.b32.xlu0 %v534, 64
        %v970 = vpop.permute.xlu0 %969
        %v971 = vsel %vm632, %v968, 0
        %v973 = vsel %vm632, %v970, 0
        %975 = vmatprep.subr.mxu0 0.0
        %976 = vmatpush1.xpose.msra.mxu0 %v973
        %977 = vmatprep.subr.mxu0 0.0
        %978 = vmatpush1.xpose.msra.mxu0 0.0
        %979 = vmatprep.subr.mxu0 0.0
        %980 = vmatpush1.xpose.msra.mxu0 0.0
        %981 = vmatprep.subr.mxu0 0.0
        %982 = vmatpush1.xpose.msra.mxu0 0.0
        %983 = vmatprep.subr.mxu0 0.0
        %984 = vmatpush1.xpose.msra.mxu0 0.0
        %985 = vmatprep.subr.mxu0 0.0
        %986 = vmatpush1.xpose.msra.mxu0 0.0
        %987 = vmatprep.subr.mxu0 0.0
        %988 = vmatpush1.xpose.msra.mxu0 0.0
        %989 = vmatprep.subr.mxu0 0.0
        %990 = vmatpush1.xpose.msra.mxu0 0.0
        %991 = vmatprep.subr.mxu0 0.0
        %992 = vmatpush1.xpose.msra.mxu0 0.0
        %993 = vmatprep.subr.mxu0 0.0
        %994 = vmatpush1.xpose.msra.mxu0 0.0
        %995 = vmatprep.subr.mxu0 0.0
        %996 = vmatpush1.xpose.msra.mxu0 0.0
        %997 = vmatprep.subr.mxu0 0.0
        %998 = vmatpush1.xpose.msra.mxu0 0.0
        %999 = vmatprep.subr.mxu0 0.0
        %1000 = vmatpush1.xpose.msra.mxu0 0.0
        %1001 = vmatprep.subr.mxu0 0.0
        %1002 = vmatpush1.xpose.msra.mxu0 0.0
        %1003 = vmatprep.subr.mxu0 0.0
        %1004 = vmatpush1.xpose.msra.mxu0 0.0
        %1005 = vmatprep.subr.mxu0 0.0
        %1006 = vmatpush1.xpose.msra.mxu0 0.0
        %1007 = vmatprep.subr.mxu0 0.0
        %1008 = vmatpush1.xpose.msra.mxu0 0.0
        %1009 = vmatprep.subr.mxu0 0.0
        %1010 = vmatpush1.xpose.msra.mxu0 0.0
        %1011 = vmatprep.subr.mxu0 0.0
        %1012 = vmatpush1.xpose.msra.mxu0 0.0
        %1013 = vmatprep.subr.mxu0 0.0
        %1014 = vmatpush1.xpose.msra.mxu0 0.0
        %1015 = vmatprep.subr.mxu0 0.0
        %1016 = vmatpush1.xpose.msra.mxu0 0.0
        %1017 = vmatprep.subr.mxu0 0.0
        %1018 = vmatpush1.xpose.msra.mxu0 0.0
        %1019 = vmatprep.subr.mxu0 0.0
        %1020 = vmatpush1.xpose.msra.mxu0 0.0
        %1021 = vmatprep.subr.mxu0 0.0
        %1022 = vmatpush1.xpose.msra.mxu0 0.0
        %1023 = vmatprep.subr.mxu0 0.0
        %1024 = vmatpush1.xpose.msra.mxu0 0.0
        %1025 = vmatprep.subr.mxu0 0.0
        %1026 = vmatpush1.xpose.msra.mxu0 0.0
        %1027 = vmatprep.subr.mxu0 0.0
        %1028 = vmatpush1.xpose.msra.mxu0 0.0
        %1029 = vmatprep.subr.mxu0 0.0
        %1030 = vmatpush1.xpose.msra.mxu0 0.0
        %1031 = vmatprep.subr.mxu0 0.0
        %1032 = vmatpush1.xpose.msra.mxu0 0.0
        %1033 = vmatprep.subr.mxu0 0.0
        %1034 = vmatpush1.xpose.msra.mxu0 0.0
        %1035 = vmatprep.subr.mxu0 0.0
        %1036 = vmatpush1.xpose.msra.mxu0 0.0
        %1037 = vmatprep.subr.mxu0 0.0
        %1038 = vmatpush1.xpose.msra.mxu0 0.0
        %1039 = vmatprep.mubr.f32.mxu0 0.0
        %1040 = vmatmul.mubr.f32.gmra.mrb[0].mxu0 %v971
        %v1041 = vpop.f32.mrb[0].mxu0
        %v1042 = vadd.f32 0.0, %v1041
        %v1043 = vpop.f32.mrb[0].mxu0
        %1044 = vdwg.mxu0
        %v1045 = vmul.f32 %v1042, 0.17677669
        %s1046 = scalar_lea.vmem %s3, 16
        %v1047 = vld [vmem:[%s1046] sm:$0xff]
        %v1048 = vadd.f32 %v1045, %v1047
        %v1049 = vsel %vm712, %v1048, -inf
        %1050 = vmax.xlane.f32.xlu0 %v1049
        %v1051 = vpop.xlane.xlu0 %1050
        %v1052 = vsub.f32 %v1048, %v1051
        %v1053 = vmul.f32 %v1052, 1.442695
        %v1054 = vpow.pop %v1053
        %v1055 = vsel %vm712, %v1054, 0.0
        %1056 = vadd.xlane.f32.xlu0 %v1055
        %v1057 = vpop.xlane.xlu0 %1056
        %v1058 = vrcp.pop %v1057
        %v1059 = vmul.f32 %v1054, %v1058
        %1060 = vrot.lane.b32.xlu0 %v629, 64
        %v1061 = vpop.permute.xlu0 %1060
        %v1064 = vsel %vm712, %v1059, 0
        %1066 = vmatprep.subr.mxu0 0.0
        %1067 = vmatpush1.msra.mxu0 %v1061
        %1068 = vmatprep.subr.mxu0 0.0
        %1069 = vmatpush1.msra.mxu0 0.0
        %1070 = vmatprep.subr.mxu0 0.0
        %1071 = vmatpush1.msra.mxu0 0.0
        %1072 = vmatprep.subr.mxu0 0.0
        %1073 = vmatpush1.msra.mxu0 0.0
        %1074 = vmatprep.subr.mxu0 0.0
        %1075 = vmatpush1.msra.mxu0 0.0
        %1076 = vmatprep.subr.mxu0 0.0
        %1077 = vmatpush1.msra.mxu0 0.0
        %1078 = vmatprep.subr.mxu0 0.0
        %1079 = vmatpush1.msra.mxu0 0.0
        %1080 = vmatprep.subr.mxu0 0.0
        %1081 = vmatpush1.msra.mxu0 0.0
        %1082 = vmatprep.subr.mxu0 0.0
        %1083 = vmatpush1.msra.mxu0 0.0
        %1084 = vmatprep.subr.mxu0 0.0
        %1085 = vmatpush1.msra.mxu0 0.0
        %1086 = vmatprep.subr.mxu0 0.0
        %1087 = vmatpush1.msra.mxu0 0.0
        %1088 = vmatprep.subr.mxu0 0.0
        %1089 = vmatpush1.msra.mxu0 0.0
        %1090 = vmatprep.subr.mxu0 0.0
        %1091 = vmatpush1.msra.mxu0 0.0
        %1092 = vmatprep.subr.mxu0 0.0
        %1093 = vmatpush1.msra.mxu0 0.0
        %1094 = vmatprep.subr.mxu0 0.0
        %1095 = vmatpush1.msra.mxu0 0.0
        %1096 = vmatprep.subr.mxu0 0.0
        %1097 = vmatpush1.msra.mxu0 0.0
        %1098 = vmatprep.subr.mxu0 0.0
        %1099 = vmatpush1.msra.mxu0 0.0
        %1100 = vmatprep.subr.mxu0 0.0
        %1101 = vmatpush1.msra.mxu0 0.0
        %1102 = vmatprep.subr.mxu0 0.0
        %1103 = vmatpush1.msra.mxu0 0.0
        %1104 = vmatprep.subr.mxu0 0.0
        %1105 = vmatpush1.msra.mxu0 0.0
        %1106 = vmatprep.subr.mxu0 0.0
        %1107 = vmatpush1.msra.mxu0 0.0
        %1108 = vmatprep.subr.mxu0 0.0
        %1109 = vmatpush1.msra.mxu0 0.0
        %1110 = vmatprep.subr.mxu0 0.0
        %1111 = vmatpush1.msra.mxu0 0.0
        %1112 = vmatprep.subr.mxu0 0.0
        %1113 = vmatpush1.msra.mxu0 0.0
        %1114 = vmatprep.subr.mxu0 0.0
        %1115 = vmatpush1.msra.mxu0 0.0
        %1116 = vmatprep.subr.mxu0 0.0
        %1117 = vmatpush1.msra.mxu0 0.0
        %1118 = vmatprep.subr.mxu0 0.0
        %1119 = vmatpush1.msra.mxu0 0.0
        %1120 = vmatprep.subr.mxu0 0.0
        %1121 = vmatpush1.msra.mxu0 0.0
        %1122 = vmatprep.subr.mxu0 0.0
        %1123 = vmatpush1.msra.mxu0 0.0
        %1124 = vmatprep.subr.mxu0 0.0
        %1125 = vmatpush1.msra.mxu0 0.0
        %1126 = vmatprep.subr.mxu0 0.0
        %1127 = vmatpush1.msra.mxu0 0.0
        %1128 = vmatprep.subr.mxu0 0.0
        %1129 = vmatpush1.msra.mxu0 0.0
        %1130 = vmatprep.mubr.f32.mxu0 0.0
        %1131 = vmatmul.mubr.f32.gmra.mrb[0].mxu0 %v1064
        %v1132 = vpop.f32.mrb[0].mxu0
        %v1133 = vadd.f32 0.0, %v1132
        %v1134 = vpop.f32.mrb[0].mxu0
        %1135 = vdwg.mxu0
        %1136 = vrot.lane.b32.xlu0 %v439, 32
        %v1137 = vpop.permute.xlu0 %1136
        %1138 = vrot.lane.b32.xlu0 %v534, 32
        %v1139 = vpop.permute.xlu0 %1138
        %v1140 = vsel %vm632, %v1137, 0
        %v1142 = vsel %vm632, %v1139, 0
        %1144 = vmatprep.subr.mxu0 0.0
        %1145 = vmatpush1.xpose.msra.mxu0 %v1142
        %1146 = vmatprep.subr.mxu0 0.0
        %1147 = vmatpush1.xpose.msra.mxu0 0.0
        %1148 = vmatprep.subr.mxu0 0.0
        %1149 = vmatpush1.xpose.msra.mxu0 0.0
        %1150 = vmatprep.subr.mxu0 0.0
        %1151 = vmatpush1.xpose.msra.mxu0 0.0
        %1152 = vmatprep.subr.mxu0 0.0
        %1153 = vmatpush1.xpose.msra.mxu0 0.0
        %1154 = vmatprep.subr.mxu0 0.0
        %1155 = vmatpush1.xpose.msra.mxu0 0.0
        %1156 = vmatprep.subr.mxu0 0.0
        %1157 = vmatpush1.xpose.msra.mxu0 0.0
        %1158 = vmatprep.subr.mxu0 0.0
        %1159 = vmatpush1.xpose.msra.mxu0 0.0
        %1160 = vmatprep.subr.mxu0 0.0
        %1161 = vmatpush1.xpose.msra.mxu0 0.0
        %1162 = vmatprep.subr.mxu0 0.0
        %1163 = vmatpush1.xpose.msra.mxu0 0.0
        %1164 = vmatprep.subr.mxu0 0.0
        %1165 = vmatpush1.xpose.msra.mxu0 0.0
        %1166 = vmatprep.subr.mxu0 0.0
        %1167 = vmatpush1.xpose.msra.mxu0 0.0
        %1168 = vmatprep.subr.mxu0 0.0
        %1169 = vmatpush1.xpose.msra.mxu0 0.0
        %1170 = vmatprep.subr.mxu0 0.0
        %1171 = vmatpush1.xpose.msra.mxu0 0.0
        %1172 = vmatprep.subr.mxu0 0.0
        %1173 = vmatpush1.xpose.msra.mxu0 0.0
        %1174 = vmatprep.subr.mxu0 0.0
        %1175 = vmatpush1.xpose.msra.mxu0 0.0
        %1176 = vmatprep.subr.mxu0 0.0
        %1177 = vmatpush1.xpose.msra.mxu0 0.0
        %1178 = vmatprep.subr.mxu0 0.0
        %1179 = vmatpush1.xpose.msra.mxu0 0.0
        %1180 = vmatprep.subr.mxu0 0.0
        %1181 = vmatpush1.xpose.msra.mxu0 0.0
        %1182 = vmatprep.subr.mxu0 0.0
        %1183 = vmatpush1.xpose.msra.mxu0 0.0
        %1184 = vmatprep.subr.mxu0 0.0
        %1185 = vmatpush1.xpose.msra.mxu0 0.0
        %1186 = vmatprep.subr.mxu0 0.0
        %1187 = vmatpush1.xpose.msra.mxu0 0.0
        %1188 = vmatprep.subr.mxu0 0.0
        %1189 = vmatpush1.xpose.msra.mxu0 0.0
        %1190 = vmatprep.subr.mxu0 0.0
        %1191 = vmatpush1.xpose.msra.mxu0 0.0
        %1192 = vmatprep.subr.mxu0 0.0
        %1193 = vmatpush1.xpose.msra.mxu0 0.0
        %1194 = vmatprep.subr.mxu0 0.0
        %1195 = vmatpush1.xpose.msra.mxu0 0.0
        %1196 = vmatprep.subr.mxu0 0.0
        %1197 = vmatpush1.xpose.msra.mxu0 0.0
        %1198 = vmatprep.subr.mxu0 0.0
        %1199 = vmatpush1.xpose.msra.mxu0 0.0
        %1200 = vmatprep.subr.mxu0 0.0
        %1201 = vmatpush1.xpose.msra.mxu0 0.0
        %1202 = vmatprep.subr.mxu0 0.0
        %1203 = vmatpush1.xpose.msra.mxu0 0.0
        %1204 = vmatprep.subr.mxu0 0.0
        %1205 = vmatpush1.xpose.msra.mxu0 0.0
        %1206 = vmatprep.subr.mxu0 0.0
        %1207 = vmatpush1.xpose.msra.mxu0 0.0
        %1208 = vmatprep.mubr.f32.mxu0 0.0
        %1209 = vmatmul.mubr.f32.gmra.mrb[0].mxu0 %v1140
        %v1210 = vpop.f32.mrb[0].mxu0
        %v1211 = vadd.f32 0.0, %v1210
        %v1212 = vpop.f32.mrb[0].mxu0
        %1213 = vdwg.mxu0
        %v1214 = vmul.f32 %v1211, 0.17677669
        %s1215 = scalar_lea.vmem %s3, 24
        %v1216 = vld [vmem:[%s1215] sm:$0xff]
        %v1217 = vadd.f32 %v1214, %v1216
        %v1218 = vsel %vm712, %v1217, -inf
        %1219 = vmax.xlane.f32.xlu0 %v1218
        %v1220 = vpop.xlane.xlu0 %1219
        %v1221 = vsub.f32 %v1217, %v1220
        %v1222 = vmul.f32 %v1221, 1.442695
        %v1223 = vpow.pop %v1222
        %v1224 = vsel %vm712, %v1223, 0.0
        %1225 = vadd.xlane.f32.xlu0 %v1224
        %v1226 = vpop.xlane.xlu0 %1225
        %v1227 = vrcp.pop %v1226
        %v1228 = vmul.f32 %v1223, %v1227
        %1229 = vrot.lane.b32.xlu0 %v629, 32
        %v1230 = vpop.permute.xlu0 %1229
        %v1233 = vsel %vm712, %v1228, 0
        %1235 = vmatprep.subr.mxu0 0.0
        %1236 = vmatpush1.msra.mxu0 %v1230
        %1237 = vmatprep.subr.mxu0 0.0
        %1238 = vmatpush1.msra.mxu0 0.0
        %1239 = vmatprep.subr.mxu0 0.0
        %1240 = vmatpush1.msra.mxu0 0.0
        %1241 = vmatprep.subr.mxu0 0.0
        %1242 = vmatpush1.msra.mxu0 0.0
        %1243 = vmatprep.subr.mxu0 0.0
        %1244 = vmatpush1.msra.mxu0 0.0
        %1245 = vmatprep.subr.mxu0 0.0
        %1246 = vmatpush1.msra.mxu0 0.0
        %1247 = vmatprep.subr.mxu0 0.0
        %1248 = vmatpush1.msra.mxu0 0.0
        %1249 = vmatprep.subr.mxu0 0.0
        %1250 = vmatpush1.msra.mxu0 0.0
        %1251 = vmatprep.subr.mxu0 0.0
        %1252 = vmatpush1.msra.mxu0 0.0
        %1253 = vmatprep.subr.mxu0 0.0
        %1254 = vmatpush1.msra.mxu0 0.0
        %1255 = vmatprep.subr.mxu0 0.0
        %1256 = vmatpush1.msra.mxu0 0.0
        %1257 = vmatprep.subr.mxu0 0.0
        %1258 = vmatpush1.msra.mxu0 0.0
        %1259 = vmatprep.subr.mxu0 0.0
        %1260 = vmatpush1.msra.mxu0 0.0
        %1261 = vmatprep.subr.mxu0 0.0
        %1262 = vmatpush1.msra.mxu0 0.0
        %1263 = vmatprep.subr.mxu0 0.0
        %1264 = vmatpush1.msra.mxu0 0.0
        %1265 = vmatprep.subr.mxu0 0.0
        %1266 = vmatpush1.msra.mxu0 0.0
        %1267 = vmatprep.subr.mxu0 0.0
        %1268 = vmatpush1.msra.mxu0 0.0
        %1269 = vmatprep.subr.mxu0 0.0
        %1270 = vmatpush1.msra.mxu0 0.0
        %1271 = vmatprep.subr.mxu0 0.0
        %1272 = vmatpush1.msra.mxu0 0.0
        %1273 = vmatprep.subr.mxu0 0.0
        %1274 = vmatpush1.msra.mxu0 0.0
        %1275 = vmatprep.subr.mxu0 0.0
        %1276 = vmatpush1.msra.mxu0 0.0
        %1277 = vmatprep.subr.mxu0 0.0
        %1278 = vmatpush1.msra.mxu0 0.0
        %1279 = vmatprep.subr.mxu0 0.0
        %1280 = vmatpush1.msra.mxu0 0.0
        %1281 = vmatprep.subr.mxu0 0.0
        %1282 = vmatpush1.msra.mxu0 0.0
        %1283 = vmatprep.subr.mxu0 0.0
        %1284 = vmatpush1.msra.mxu0 0.0
        %1285 = vmatprep.subr.mxu0 0.0
        %1286 = vmatpush1.msra.mxu0 0.0
        %1287 = vmatprep.subr.mxu0 0.0
        %1288 = vmatpush1.msra.mxu0 0.0
        %1289 = vmatprep.subr.mxu0 0.0
        %1290 = vmatpush1.msra.mxu0 0.0
        %1291 = vmatprep.subr.mxu0 0.0
        %1292 = vmatpush1.msra.mxu0 0.0
        %1293 = vmatprep.subr.mxu0 0.0
        %1294 = vmatpush1.msra.mxu0 0.0
        %1295 = vmatprep.subr.mxu0 0.0
        %1296 = vmatpush1.msra.mxu0 0.0
        %1297 = vmatprep.subr.mxu0 0.0
        %1298 = vmatpush1.msra.mxu0 0.0
        %1299 = vmatprep.mubr.f32.mxu0 0.0
        %1300 = vmatmul.mubr.f32.gmra.mrb[0].mxu0 %v1233
        %v1301 = vpop.f32.mrb[0].mxu0
        %v1302 = vadd.f32 0.0, %v1301
        %v1303 = vpop.f32.mrb[0].mxu0
        %1304 = vdwg.mxu0
        %1306 = vrot.lane.b32.xlu0 %v964, 32
        %v1307 = vpop.permute.xlu0 %1306
        %1310 = vrot.lane.b32.xlu0 %v1133, 64
        %v1311 = vpop.permute.xlu0 %1310
        %1314 = vrot.lane.b32.xlu0 %v1302, 96
        %v1315 = vpop.permute.xlu0 %1314
        %v1317 = vsel %vm632, %v794, %v1307
        %vm1318 = vcmask 523264
        %v1319 = vsel %vm1318, %v1317, %v1311
        %vm1320 = vcmask 785408
        %v1321 = vsel %vm1320, %v1319, %v1315
        %s1322 = scalar_lea.vmem [#allocation6], 384
        %v1323 = vld [vmem:[%s1322] sm:$0xff]
        %v1324 = vld [vmem:[%s1322 + $0x8] sm:$0xff]
        %v1325 = vld [vmem:[%s1322 + $0x10] sm:$0xff]
        %v1326 = vld [vmem:[%s1322 + $0x18] sm:$0xff]
        %v1327 = vld [vmem:[%s1322 + $0x20] sm:$0xff]
        %v1328 = vld [vmem:[%s1322 + $0x28] sm:$0xff]
        %v1329 = vld [vmem:[%s1322 + $0x30] sm:$0xff]
        %v1330 = vld [vmem:[%s1322 + $0x38] sm:$0xff]
        %v1331 = vld [vmem:[%s1322 + $0x40] sm:$0xff]
        %v1332 = vld [vmem:[%s1322 + $0x48] sm:$0xff]
        %v1333 = vld [vmem:[%s1322 + $0x50] sm:$0xff]
        %v1334 = vld [vmem:[%s1322 + $0x58] sm:$0xff]
        %v1335 = vld [vmem:[%s1322 + $0x60] sm:$0xff]
        %v1336 = vld [vmem:[%s1322 + $0x68] sm:$0xff]
        %v1337 = vld [vmem:[%s1322 + $0x70] sm:$0xff]
        %v1338 = vld [vmem:[%s1322 + $0x78] sm:$0xff]
        %s1339 = scalar_lea.vmem %s5, 3
        %v1340 = vld [vmem:[%s1339] sm:$0x1]
        %v1342 = vlaneseq
        %v1343 = vshrl.u32 %v1342, 7
        %v1344 = vsub.s32 0, %v1343
        %v1345 = vrot.slane %v1340, %v1344
        %1347 = vmatprep.subr.mxu0 0.0
        %1348 = vmatpush1.msra.mxu0 %v1323
        %1349 = vmatprep.subr.mxu0 0.0
        %1350 = vmatpush1.msra.mxu0 %v1324
        %1351 = vmatprep.subr.mxu0 0.0
        %1352 = vmatpush1.msra.mxu0 %v1325
        %1353 = vmatprep.subr.mxu0 0.0
        %1354 = vmatpush1.msra.mxu0 %v1326
        %1355 = vmatprep.subr.mxu0 0.0
        %1356 = vmatpush1.msra.mxu0 %v1327
        %1357 = vmatprep.subr.mxu0 0.0
        %1358 = vmatpush1.msra.mxu0 %v1328
        %1359 = vmatprep.subr.mxu0 0.0
        %1360 = vmatpush1.msra.mxu0 %v1329
        %1361 = vmatprep.subr.mxu0 0.0
        %1362 = vmatpush1.msra.mxu0 %v1330
        %1363 = vmatprep.subr.mxu0 0.0
        %1364 = vmatpush1.msra.mxu0 %v1331
        %1365 = vmatprep.subr.mxu0 0.0
        %1366 = vmatpush1.msra.mxu0 %v1332
        %1367 = vmatprep.subr.mxu0 0.0
        %1368 = vmatpush1.msra.mxu0 %v1333
        %1369 = vmatprep.subr.mxu0 0.0
        %1370 = vmatpush1.msra.mxu0 %v1334
        %1371 = vmatprep.subr.mxu0 0.0
        %1372 = vmatpush1.msra.mxu0 %v1335
        %1373 = vmatprep.subr.mxu0 0.0
        %1374 = vmatpush1.msra.mxu0 %v1336
        %1375 = vmatprep.subr.mxu0 0.0
        %1376 = vmatpush1.msra.mxu0 %v1337
        %1377 = vmatprep.subr.mxu0 0.0
        %1378 = vmatpush1.msra.mxu0 %v1338
        %1379 = vmatprep.subr.mxu0 0.0
        %1380 = vmatpush1.msra.mxu0 0.0
        %1381 = vmatprep.subr.mxu0 0.0
        %1382 = vmatpush1.msra.mxu0 0.0
        %1383 = vmatprep.subr.mxu0 0.0
        %1384 = vmatpush1.msra.mxu0 0.0
        %1385 = vmatprep.subr.mxu0 0.0
        %1386 = vmatpush1.msra.mxu0 0.0
        %1387 = vmatprep.subr.mxu0 0.0
        %1388 = vmatpush1.msra.mxu0 0.0
        %1389 = vmatprep.subr.mxu0 0.0
        %1390 = vmatpush1.msra.mxu0 0.0
        %1391 = vmatprep.subr.mxu0 0.0
        %1392 = vmatpush1.msra.mxu0 0.0
        %1393 = vmatprep.subr.mxu0 0.0
        %1394 = vmatpush1.msra.mxu0 0.0
        %1395 = vmatprep.subr.mxu0 0.0
        %1396 = vmatpush1.msra.mxu0 0.0
        %1397 = vmatprep.subr.mxu0 0.0
        %1398 = vmatpush1.msra.mxu0 0.0
        %1399 = vmatprep.subr.mxu0 0.0
        %1400 = vmatpush1.msra.mxu0 0.0
        %1401 = vmatprep.subr.mxu0 0.0
        %1402 = vmatpush1.msra.mxu0 0.0
        %1403 = vmatprep.subr.mxu0 0.0
        %1404 = vmatpush1.msra.mxu0 0.0
        %1405 = vmatprep.subr.mxu0 0.0
        %1406 = vmatpush1.msra.mxu0 0.0
        %1407 = vmatprep.subr.mxu0 0.0
        %1408 = vmatpush1.msra.mxu0 0.0
        %1409 = vmatprep.subr.mxu0 0.0
        %1410 = vmatpush1.msra.mxu0 0.0
        %1411 = vmatprep.mubr.f32.mxu0 0.0
        %1412 = vmatmul.mubr.f32.gmra.mrb[0].mxu0 %v1321
        %v1413 = vpop.f32.mrb[0].mxu0
        %v1414 = vadd.f32 %v1345, %v1413
        %v1415 = vpop.f32.mrb[0].mxu0
        %1416 = vdwg.mxu0
        %v1417 = vadd.f32 %v347, %v1414
        %v1418 = vld [vmem:[%s6] sm:$0x1]
        %s1419 = scalar_lea.vmem %s6, 1
        %v1420 = vld [vmem:[%s1419] sm:$0x1]
        %1421 = vadd.xlane.f32.xlu0 %v1417
        %v1422 = vpop.xlane.xlu0 %1421
        %v1423 = vrcp.pop 128.0
        %v1424 = vmul.f32 %v1422, %v1423
        %v1425 = vsub.f32 %v1417, %v1424
        %v1426 = vmul.f32 %v1425, %v1425
        %1427 = vadd.xlane.f32.xlu0 %v1426
        %v1428 = vpop.xlane.xlu0 %1427
        %v1429 = vmul.f32 %v1428, %v1423
        %v1430 = vadd.f32 %v1429, 1e-05
        %v1431 = vrsqrt.pop %v1430
        %v1432 = vmul.f32 %v1425, %v1431
        %v1434 = vlaneseq
        %v1435 = vshrl.u32 %v1434, 7
        %v1436 = vsub.s32 0, %v1435
        %v1437 = vrot.slane %v1418, %v1436
        %v1439 = vmul.f32 %v1432, %v1437
        %v1441 = vlaneseq
        %v1442 = vshrl.u32 %v1441, 7
        %v1443 = vsub.s32 0, %v1442
        %v1444 = vrot.slane %v1420, %v1443
        %v1446 = vadd.f32 %v1439, %v1444
        %1447 = vst [vmem:[%s344] sm:$0xff] %v1446
        %p1448 = scmp.lt.s32.totalorder %s24, 1
        %s1449 = scalar_select %p1448, %s24, 1
        %s1450 = smul.addr %s1449, 8
        %s1451 = scalar_lea.vmem %s7, %s1450
        // Predicated region
        $region61: #{transformer_decoder_forward.6} parent=47 // pred_check
          %p1452 = pneg %p199
        $region62: #{transformer_decoder_forward.6} parent=47 // pred_check_branch
          %1454 = sbr.rel (%p1452) target = $region64
        $region63: #{transformer_decoder_forward.6} parent=47 // pred_region
          _
        $region64: #{transformer_decoder_forward.6} parent=47 // pred_fallthru
          _
      $region48: #{transformer_decoder_forward.6} parent=5 // pred_fallthru
        _
      %p1455 = scmp.le.s32.totalorder 2, %s19
      // Predicated region
      $region65: #{transformer_decoder_forward.6} parent=5 // pred_check
        %p1456 = pneg %p1455
      $region66: #{transformer_decoder_forward.6} parent=5 // pred_check_branch
        %1458 = sbr.rel (%p1456) target = $region68
      $region67: #{transformer_decoder_forward.6} parent=5 // pred_region
        %s1459 = ssub.s32 %s19, 2
        // Predicated region
        $region69: #{transformer_decoder_forward.6} parent=67 // pred_check
          %p1460 = pneg %p205
        $region70: #{transformer_decoder_forward.6} parent=67 // pred_check_branch
          %1462 = sbr.rel (%p1460) target = $region72
        $region71: #{transformer_decoder_forward.6} parent=67 // pred_region
          %p1463 = scmp.lt.s32.totalorder %s25, 1
          %s1464 = scalar_select %p1463, %s25, 1
          %s1465 = smul.addr %s1464, 8
          %s1466 = scalar_lea.vmem %s7, %s1465
        $region72: #{transformer_decoder_forward.6} parent=67 // pred_fallthru
          _
      $region68: #{transformer_decoder_forward.6} parent=5 // pred_fallthru
        _
    $region6: #{transformer_decoder_forward.6} parent=1 // loop_footer
      %s23 = sadd.s32 1, %s19
    $region7: #{transformer_decoder_forward.6} parent=1 // loop_footer_branch
      %18 = sbr.rel target = $region3
    $region8: #{transformer_decoder_forward.6} parent=1 // loop_exit
      _
    %1467 = vsyncpa [#allocation3], 1
    %s1468 = scalar_lea.sflag [#allocation3], 1
    %1469 = vsyncpa %s1468, 1
    %1470 = vsyncpa [#allocation5], 1
    %s1471 = scalar_lea.sflag [#allocation5], 1
    %1472 = vsyncpa %s1471, 1

</llo_original>
